<compile_context>
chip_gen: v5e
topology: v5e:2x2
jax: 0.10.0
libtpu: 0.0.40
codegen_flags: <defaults>
</compile_context>

<pallas_src>
import functools
import math

import jax
import jax.numpy as jnp
from jax import lax
from jax.experimental import pallas as pl
from jax.experimental.pallas import tpu as pltpu

# ---- stand-ins for the `const` module used by the reference code ----
NUM_CHANNELS = 32
AGGREGATORS = ("mean", "min", "max", "std")
SCALERS = ("identity", "amplification", "attenuation")
NUM_TOWERS = 4
PRE_LAYERS = 1      # pre-NN is a single Linear
POST_LAYERS = 1     # post-NN is a single Linear
DEPTH = 2           # forward() only uses conv_layers[0 .. DEPTH-1]
DROPOUT = 0.3       # eval mode -> identity
BN_EPS = 1e-5

F_OUT = NUM_CHANNELS // NUM_TOWERS
N_AGG = len(AGGREGATORS)
N_SCALE = len(SCALERS)

EDGE_CHUNK = 8              # edges per min/max reduction step (sublane aligned)
BIG = 1e30                  # mask bias for min/max
N_GRAPH_INPUTS = 5          # x, adj, dst_oh, src_oh, deg
PER_LAYER_PARAMS = 10       # wpre_i, wpre_j, bpre, wx, wagg, bpost, wlin, blin,
                            # bn_scale, bn_shift


def _vmem_spec():
    return pl.BlockSpec(memory_space=pltpu.MemorySpace.VMEM)


# ----------------------------------------------------------------------------
# One PNAConv layer + folded eval-mode BatchNorm + ReLU (traced inline twice).
# ----------------------------------------------------------------------------
def _pna_layer(x, adj, dst_oh, src_oh, dst_oh_ref, msg_ref,
               inv_deg, amp, att, has_edges, refs, te):
    (wpre_i_ref, wpre_j_ref, bpre_ref, wx_ref, wagg_ref, bpost_ref,
     wlin_ref, blin_ref, bn_scale_ref, bn_shift_ref) = refs

    n = x.shape[0]
    e = adj.shape[1]

    # --- pre-NN (per-tower Linear on cat(x_i, x_j)), as sums of dots.
    # The edge gathers are fused into the MXU via one-hot incidence matmuls.
    xw_i = jnp.dot(x, wpre_i_ref[...], preferred_element_type=jnp.float32)
    xw_j = jnp.dot(x, wpre_j_ref[...], preferred_element_type=jnp.float32)
    msg = (jnp.dot(dst_oh, xw_i, preferred_element_type=jnp.float32)
           + jnp.dot(src_oh, xw_j, preferred_element_type=jnp.float32)
           + bpre_ref[...])                                    # [E, D]
    d = msg.shape[1]

    # --- mean / std via dense-incidence matmuls on the MXU
    s1 = jnp.dot(adj, msg, preferred_element_type=jnp.float32)
    s2 = jnp.dot(adj, msg * msg, preferred_element_type=jnp.float32)
    mean = s1 * inv_deg
    var = s2 * inv_deg - mean * mean
    # TODO(synk): E[x^2]-E[x]^2 can cancel for large-magnitude messages; this
    # matches the torch_geometric reference formula.
    std = jnp.sqrt(jnp.maximum(var, 0.0) + 1e-5)

    # --- min / max: chunked running reduction over edge tiles.  Never builds
    # the full [N, E, D] tensor; each step is a bounded [TE, N, D] candidate
    # with an additive +/-BIG mask bias, reduced over the leading axis (VPU).
    msg_ref[...] = msg
    nc = e // te

    def minmax_body(c, carry):
        mn, mx = carry
        start = c * te
        m = msg_ref[pl.ds(start, te), :]                       # [TE, D]
        mask = dst_oh_ref[pl.ds(start, te), :]                 # [TE, N]
        bias = (1.0 - mask) * BIG                              # [TE, N]
        lo = m[:, None, :] + bias[:, :, None]                  # [TE, N, D]
        mn = jnp.minimum(mn, jnp.min(lo, axis=0))
        hi = m[:, None, :] - bias[:, :, None]
        mx = jnp.maximum(mx, jnp.max(hi, axis=0))
        return mn, mx

    minv, maxv = lax.fori_loop(
        0, nc, minmax_body,
        (jnp.full((n, d), BIG, dtype=jnp.float32),
         jnp.full((n, d), -BIG, dtype=jnp.float32)),
        unroll=nc <= 8)
    minv = jnp.where(has_edges, minv, 0.0)
    maxv = jnp.where(has_edges, maxv, 0.0)

    # --- per-tower post-NN collapsed into block-diagonal matmuls; the degree
    # scalers are per-row scalings, so they commute with the dot and are
    # applied to the [N, 32] results instead of the [N, 12*D] inputs.
    aggs = (mean, minv, maxv, std)
    acc_id = jnp.zeros((n, NUM_CHANNELS), jnp.float32)
    acc_amp = jnp.zeros((n, NUM_CHANNELS), jnp.float32)
    acc_att = jnp.zeros((n, NUM_CHANNELS), jnp.float32)
    for a_idx in range(N_AGG):
        agg = aggs[a_idx]
        acc_id = acc_id + jnp.dot(agg, wagg_ref[a_idx * N_SCALE + 0],
                                  preferred_element_type=jnp.float32)
        acc_amp = acc_amp + jnp.dot(agg, wagg_ref[a_idx * N_SCALE + 1],
                                    preferred_element_type=jnp.float32)
        acc_att = acc_att + jnp.dot(agg, wagg_ref[a_idx * N_SCALE + 2],
                                    preferred_element_type=jnp.float32)
    out = (jnp.dot(x, wx_ref[...], preferred_element_type=jnp.float32)
           + acc_id + amp * acc_amp + att * acc_att + bpost_ref[...])

    # --- final Linear of PNAConv, folded eval-mode BatchNorm, ReLU
    y = jnp.dot(out, wlin_ref[...],
                preferred_element_type=jnp.float32) + blin_ref[...]
    y = y * bn_scale_ref[...] + bn_shift_ref[...]
    return jnp.maximum(y, 0.0)


# ----------------------------------------------------------------------------
# Fully fused forward: DEPTH x (PNAConv + BN + ReLU) + MLP head + log_softmax
# ----------------------------------------------------------------------------
def fused_pna_kernel(*refs, avg_log, te):
    n_in = N_GRAPH_INPUTS + DEPTH * PER_LAYER_PARAMS + 6
    x_ref, adj_ref, dst_oh_ref, src_oh_ref, deg_ref = refs[:N_GRAPH_INPUTS]
    layer_refs = [refs[N_GRAPH_INPUTS + i * PER_LAYER_PARAMS:
                       N_GRAPH_INPUTS + (i + 1) * PER_LAYER_PARAMS]
                  for i in range(DEPTH)]
    head_off = N_GRAPH_INPUTS + DEPTH * PER_LAYER_PARAMS
    w1_ref, b1_ref, w2_ref, b2_ref, w3_ref, b3_ref = refs[head_off:head_off + 6]
    out_ref = refs[n_in]
    msg_scratch = refs[n_in + 1:]

    x = x_ref[...]
    adj = adj_ref[...]
    dst_oh = dst_oh_ref[...]
    src_oh = src_oh_ref[...]
    deg = deg_ref[...]                                  # [N, 1], shared by layers

    deg_c = jnp.maximum(deg, 1.0)
    inv_deg = pl.reciprocal(deg_c, approx=True)         # EUP
    log_deg = jnp.log(deg_c + 1.0)
    amp = log_deg * (1.0 / avg_log)                     # amplification scaler
    att = avg_log * pl.reciprocal(log_deg, approx=True) # attenuation scaler
    has_edges = deg > 0.0

    h = x
    for i in range(DEPTH):
        h = _pna_layer(h, adj, dst_oh, src_oh, dst_oh_ref, msg_scratch[i],
                       inv_deg, amp, att, has_edges, layer_refs[i], te)
        # F.dropout(p=DROPOUT, training=False) is the identity in eval mode.

    # --- MLP head (Linear-ReLU-Linear-ReLU-Linear) + log_softmax(dim=1) ---
    h = jnp.maximum(jnp.dot(h, w1_ref[...],
                            preferred_element_type=jnp.float32) + b1_ref[...], 0.0)
    h = jnp.maximum(jnp.dot(h, w2_ref[...],
                            preferred_element_type=jnp.float32) + b2_ref[...], 0.0)
    z = jnp.dot(h, w3_ref[...],
                preferred_element_type=jnp.float32) + b3_ref[...]
    m = jnp.max(z, axis=1, keepdims=True)
    lse = jnp.log(jnp.sum(jnp.exp(z - m), axis=1, keepdims=True)) + m
    out_ref[...] = z - lse


def pna_forward(params, x, edge_index, avg_log, num_classes, te=EDGE_CHUNK):
    n, f0 = x.shape
    src, dst = edge_index[0], edge_index[1]     # messages flow src -> dst
    e = src.shape[0]
    e_pad = int(pl.cdiv(e, te)) * te

    # Dense incidence matrices, built once and reused by both conv layers.
    # TODO(synk): for large graphs replace these O(N*E) dense matmuls with
    # scalar-prefetched dst/src indices + segment accumulation, and tile the
    # node axis over a parallel grid dim (v7x dual TensorCore).
    node_ids = jnp.arange(n, dtype=dst.dtype)
    adj = (node_ids[:, None] == dst[None, :]).astype(jnp.float32)      # [N, E]
    dst_oh = (dst[:, None] == node_ids[None, :]).astype(jnp.float32)   # [E, N]
    src_oh = (src[:, None] == node_ids[None, :]).astype(jnp.float32)   # [E, N]
    if e_pad != e:
        pad = e_pad - e
        adj = jnp.pad(adj, ((0, 0), (0, pad)))         # zero columns: inert
        dst_oh = jnp.pad(dst_oh, ((0, pad), (0, 0)))
        src_oh = jnp.pad(src_oh, ((0, pad), (0, 0)))
    deg = jnp.sum(adj, axis=1, keepdims=True)                          # [N, 1]

    flat_inputs = [x, adj, dst_oh, src_oh, deg]
    for lp in params["convs"]:
        flat_inputs += [lp[k] for k in ("wpre_i", "wpre_j", "bpre", "wx", "wagg",
                                        "bpost", "wlin", "blin",
                                        "bn_scale", "bn_shift")]
    hp = params["head"]
    flat_inputs += [hp["w1"], hp["b1"], hp["w2"], hp["b2"], hp["w3"], hp["b3"]]

    d_layers = [NUM_TOWERS * f0] + [NUM_TOWERS * NUM_CHANNELS] * (DEPTH - 1)
    scratch_shapes = [pltpu.VMEM((e_pad, dl), jnp.float32) for dl in d_layers]

    kernel = functools.partial(fused_pna_kernel, avg_log=float(avg_log), te=te)
    return pl.pallas_call(
        kernel,
        out_shape=jax.ShapeDtypeStruct((n, num_classes), jnp.float32),
        in_specs=[_vmem_spec()] * len(flat_inputs),
        out_specs=_vmem_spec(),
        scratch_shapes=scratch_shapes,
    )(*flat_inputs)


# ----------------------------------------------------------------------------
# Parameter init (deterministic, synthetic), packed for the fused kernel.
# ----------------------------------------------------------------------------
def _dense(key, fan_in, fan_out):
    kw, kb = jax.random.split(key)
    s = 1.0 / math.sqrt(fan_in)
    w = jax.random.uniform(kw, (fan_in, fan_out), jnp.float32, -s, s)
    b = jax.random.uniform(kb, (1, fan_out), jnp.float32, -s, s)
    return w, b


def _block_diag(blocks):
    rows = sum(b.shape[0] for b in blocks)
    cols = sum(b.shape[1] for b in blocks)
    out = jnp.zeros((rows, cols), blocks[0].dtype)
    r = c = 0
    for b in blocks:
        out = out.at[r:r + b.shape[0], c:c + b.shape[1]].set(b)
        r += b.shape[0]
        c += b.shape[1]
    return out


def init_conv_params(key, f_in):
    keys = jax.random.split(key, 2 * NUM_TOWERS + 2)
    wpre_i_blocks, wpre_j_blocks, bpre_blocks = [], [], []
    wx_blocks, bpost_blocks = [], []
    wagg_parts = [[[] for _ in range(N_SCALE)] for _ in range(N_AGG)]

    for t in range(NUM_TOWERS):
        # pre-NN: Linear(2*F_in -> F_in); rows split into x_i / x_j halves
        w_pre, b_pre = _dense(keys[t], 2 * f_in, f_in)
        wpre_i_blocks.append(w_pre[:f_in])
        wpre_j_blocks.append(w_pre[f_in:])
        bpre_blocks.append(b_pre)
        # post-NN: Linear(13*F_in -> F_out); rows ordered [x | scaler-major,
        # aggregator-minor] exactly like torch_geometric's PNAConv.
        w_post, b_post = _dense(keys[NUM_TOWERS + t],
                                (1 + N_AGG * N_SCALE) * f_in, F_OUT)
        wx_blocks.append(w_post[:f_in])
        for s in range(N_SCALE):
            for a in range(N_AGG):
                blk = w_post[(1 + s * N_AGG + a) * f_in:
                             (2 + s * N_AGG + a) * f_in]
                wagg_parts[a][s].append(blk)
        bpost_blocks.append(b_post)

    wpre_i = jnp.concatenate(wpre_i_blocks, axis=1)        # [F_in, T*F_in]
    wpre_j = jnp.concatenate(wpre_j_blocks, axis=1)        # [F_in, T*F_in]
    bpre = jnp.concatenate(bpre_blocks, axis=1)            # [1, T*F_in]
    wx = jnp.concatenate(wx_blocks, axis=1)                # [F_in, NUM_CHANNELS]
    # wagg[a*N_SCALE + s] is the block-diagonal (towers) [T*F_in, NUM_CHANNELS]
    wagg = jnp.stack([_block_diag(wagg_parts[a][s])
                      for a in range(N_AGG) for s in range(N_SCALE)], axis=0)
    bpost = jnp.concatenate(bpost_blocks, axis=1)          # [1, NUM_CHANNELS]

    wlin, blin = _dense(keys[2 * NUM_TOWERS], NUM_CHANNELS, NUM_CHANNELS)

    kg, kb2, km, kv = jax.random.split(keys[2 * NUM_TOWERS + 1], 4)
    gamma = 1.0 + 0.1 * jax.random.normal(kg, (1, NUM_CHANNELS), jnp.float32)
    beta = 0.1 * jax.random.normal(kb2, (1, NUM_CHANNELS), jnp.float32)
    rmean = 0.1 * jax.random.normal(km, (1, NUM_CHANNELS), jnp.float32)
    rvar = 1.0 + 0.1 * jnp.abs(jax.random.normal(kv, (1, NUM_CHANNELS),
                                                 jnp.float32))
    bn_scale = gamma / jnp.sqrt(rvar + BN_EPS)
    bn_shift = beta - rmean * bn_scale
    return dict(wpre_i=wpre_i, wpre_j=wpre_j, bpre=bpre, wx=wx, wagg=wagg,
                bpost=bpost, wlin=wlin, blin=blin,
                bn_scale=bn_scale, bn_shift=bn_shift)


def init_params(key, num_node_features, num_classes):
    ks = jax.random.split(key, DEPTH + 4)
    convs = [init_conv_params(ks[0], num_node_features)]
    for i in range(1, DEPTH):
        convs.append(init_conv_params(ks[i], NUM_CHANNELS))
    # NOTE: the reference builds DEPTH+1 conv layers but forward() only uses
    # the first DEPTH of them; the extra layer is dead weight and omitted here.
    h1 = int(NUM_CHANNELS * 2 / 3)
    h2 = int(NUM_CHANNELS / 3)
    w1, b1 = _dense(ks[DEPTH + 0], NUM_CHANNELS, h1)
    w2, b2 = _dense(ks[DEPTH + 1], h1, h2)
    w3, b3 = _dense(ks[DEPTH + 2], h2, num_classes)
    head = dict(w1=w1, b1=b1, w2=w2, b2=b2, w3=w3, b3=b3)
    return dict(convs=convs, head=head)


if __name__ == "__main__":
    num_node_features = 8
    num_classes = 4
    N = 16

    key = jax.random.PRNGKey(0)
    kx, kp = jax.random.split(key)
    x = jax.random.normal(kx, (N, num_node_features), dtype=jnp.float32)

    # deterministic small graph: node i receives edges from (i+1), (i+2), (i+5)
    offsets = jnp.array([1, 2, 5], dtype=jnp.int32)
    dst = jnp.repeat(jnp.arange(N, dtype=jnp.int32), 3)
    src = (dst + jnp.tile(offsets, N)) % N
    edge_index = jnp.stack([src, dst], axis=0)            # [2, E], E = 48

    # PNAConv's avg_deg['log'] derived from the in-degree histogram
    indeg = jnp.zeros((N,), jnp.float32).at[dst].add(1.0)
    avg_log = float(jnp.mean(jnp.log(indeg + 1.0)))

    params = init_params(kp, num_node_features, num_classes)

    out = pna_forward(params, x, edge_index, avg_log, num_classes)
    out = jax.block_until_ready(out)
    assert out.shape == (N, num_classes)
    assert bool(jnp.all(jnp.isfinite(out)))
    # log_softmax rows should (log-)sum to ~0
    assert bool(jnp.allclose(jnp.sum(jnp.exp(out), axis=1), 1.0, atol=1e-4))
    print("KERNEL_OK")
</pallas_src>

<mosaic_0001>
module attributes {stable_mosaic.version = 11 : i64} {
  func.func @fused_pna_kernel(%arg0: memref<16x8xf32, #tpu.memory_space<vmem>>, %arg1: memref<16x48xf32, #tpu.memory_space<vmem>>, %arg2: memref<48x16xf32, #tpu.memory_space<vmem>>, %arg3: memref<48x16xf32, #tpu.memory_space<vmem>>, %arg4: memref<16x1xf32, #tpu.memory_space<vmem>>, %arg5: memref<8x32xf32, #tpu.memory_space<vmem>>, %arg6: memref<8x32xf32, #tpu.memory_space<vmem>>, %arg7: memref<1x32xf32, #tpu.memory_space<vmem>>, %arg8: memref<8x32xf32, #tpu.memory_space<vmem>>, %arg9: memref<12x32x32xf32, #tpu.memory_space<vmem>>, %arg10: memref<1x32xf32, #tpu.memory_space<vmem>>, %arg11: memref<32x32xf32, #tpu.memory_space<vmem>>, %arg12: memref<1x32xf32, #tpu.memory_space<vmem>>, %arg13: memref<1x32xf32, #tpu.memory_space<vmem>>, %arg14: memref<1x32xf32, #tpu.memory_space<vmem>>, %arg15: memref<32x128xf32, #tpu.memory_space<vmem>>, %arg16: memref<32x128xf32, #tpu.memory_space<vmem>>, %arg17: memref<1x128xf32, #tpu.memory_space<vmem>>, %arg18: memref<32x32xf32, #tpu.memory_space<vmem>>, %arg19: memref<12x128x32xf32, #tpu.memory_space<vmem>>, %arg20: memref<1x32xf32, #tpu.memory_space<vmem>>, %arg21: memref<32x32xf32, #tpu.memory_space<vmem>>, %arg22: memref<1x32xf32, #tpu.memory_space<vmem>>, %arg23: memref<1x32xf32, #tpu.memory_space<vmem>>, %arg24: memref<1x32xf32, #tpu.memory_space<vmem>>, %arg25: memref<32x21xf32, #tpu.memory_space<vmem>>, %arg26: memref<1x21xf32, #tpu.memory_space<vmem>>, %arg27: memref<21x10xf32, #tpu.memory_space<vmem>>, %arg28: memref<1x10xf32, #tpu.memory_space<vmem>>, %arg29: memref<10x4xf32, #tpu.memory_space<vmem>>, %arg30: memref<1x4xf32, #tpu.memory_space<vmem>>, %arg31: memref<16x4xf32, #tpu.memory_space<vmem>>, %arg32: memref<48x32xf32, #tpu.memory_space<vmem>>, %arg33: memref<48x128xf32, #tpu.memory_space<vmem>>) attributes {dimension_semantics = [], scalar_prefetch = 0 : i64, scratch_operands = 2 : i64, tpu.core_type = #tpu.core_type<tc>} {
    %c0 = arith.constant 0 : index
    %c0_0 = arith.constant 0 : index
    %0 = vector.load %arg0[%c0, %c0_0] : memref<16x8xf32, #tpu.memory_space<vmem>>, vector<16x8xf32>
    %c0_1 = arith.constant 0 : index
    %c0_2 = arith.constant 0 : index
    %1 = vector.load %arg1[%c0_1, %c0_2] : memref<16x48xf32, #tpu.memory_space<vmem>>, vector<16x48xf32>
    %c0_3 = arith.constant 0 : index
    %c0_4 = arith.constant 0 : index
    %2 = vector.load %arg2[%c0_3, %c0_4] : memref<48x16xf32, #tpu.memory_space<vmem>>, vector<48x16xf32>
    %c0_5 = arith.constant 0 : index
    %c0_6 = arith.constant 0 : index
    %3 = vector.load %arg3[%c0_5, %c0_6] : memref<48x16xf32, #tpu.memory_space<vmem>>, vector<48x16xf32>
    %c0_7 = arith.constant 0 : index
    %c0_8 = arith.constant 0 : index
    %4 = vector.load %arg4[%c0_7, %c0_8] : memref<16x1xf32, #tpu.memory_space<vmem>>, vector<16x1xf32>
    %cst = arith.constant 1.000000e+00 : f32
    %5 = vector.broadcast %cst : f32 to vector<16x1xf32>
    %6 = arith.maximumf %4, %5 : vector<16x1xf32>
    %7 = tpu.reciprocal %6 {approx = true} : vector<16x1xf32> -> vector<16x1xf32>
    %cst_9 = arith.constant 1.000000e+00 : f32
    %8 = vector.broadcast %cst_9 : f32 to vector<16x1xf32>
    %9 = arith.addf %6, %8 : vector<16x1xf32>
    %10 = math.log %9 : vector<16x1xf32>
    %cst_10 = arith.constant 0.721347391 : f32
    %11 = vector.broadcast %cst_10 : f32 to vector<16x1xf32>
    %12 = arith.mulf %10, %11 : vector<16x1xf32>
    %13 = tpu.reciprocal %10 {approx = true} : vector<16x1xf32> -> vector<16x1xf32>
    %cst_11 = arith.constant 1.3862946 : f32
    %14 = vector.broadcast %cst_11 : f32 to vector<16x1xf32>
    %15 = arith.mulf %14, %13 : vector<16x1xf32>
    %cst_12 = arith.constant 0.000000e+00 : f32
    %16 = vector.broadcast %cst_12 : f32 to vector<16x1xf32>
    %17 = arith.cmpf ogt, %4, %16 : vector<16x1xf32>
    %c0_13 = arith.constant 0 : index
    %c0_14 = arith.constant 0 : index
    %18 = vector.load %arg5[%c0_13, %c0_14] : memref<8x32xf32, #tpu.memory_space<vmem>>, vector<8x32xf32>
    %cst_15 = arith.constant dense<0.000000e+00> : vector<16x32xf32>
    %19 = tpu.matmul %0, %18, %cst_15 {dimension_numbers = #tpu.dot_dimension_numbers<[1], [0], [0], [1], [0, 0, 1, 1], [], []>} : vector<16x8xf32>, vector<8x32xf32>, vector<16x32xf32> -> vector<16x32xf32>
    %c0_16 = arith.constant 0 : index
    %c0_17 = arith.constant 0 : index
    %20 = vector.load %arg6[%c0_16, %c0_17] : memref<8x32xf32, #tpu.memory_space<vmem>>, vector<8x32xf32>
    %cst_18 = arith.constant dense<0.000000e+00> : vector<16x32xf32>
    %21 = tpu.matmul %0, %20, %cst_18 {dimension_numbers = #tpu.dot_dimension_numbers<[1], [0], [0], [1], [0, 0, 1, 1], [], []>} : vector<16x8xf32>, vector<8x32xf32>, vector<16x32xf32> -> vector<16x32xf32>
    %cst_19 = arith.constant dense<0.000000e+00> : vector<48x32xf32>
    %22 = tpu.matmul %2, %19, %cst_19 {dimension_numbers = #tpu.dot_dimension_numbers<[1], [0], [0], [1], [0, 0, 1, 1], [], []>} : vector<48x16xf32>, vector<16x32xf32>, vector<48x32xf32> -> vector<48x32xf32>
    %cst_20 = arith.constant dense<0.000000e+00> : vector<48x32xf32>
    %23 = tpu.matmul %3, %21, %cst_20 {dimension_numbers = #tpu.dot_dimension_numbers<[1], [0], [0], [1], [0, 0, 1, 1], [], []>} : vector<48x16xf32>, vector<16x32xf32>, vector<48x32xf32> -> vector<48x32xf32>
    %24 = arith.addf %22, %23 : vector<48x32xf32>
    %c0_21 = arith.constant 0 : index
    %c0_22 = arith.constant 0 : index
    %25 = vector.load %arg7[%c0_21, %c0_22] : memref<1x32xf32, #tpu.memory_space<vmem>>, vector<1x32xf32>
    %26 = vector.broadcast %25 : vector<1x32xf32> to vector<48x32xf32>
    %27 = arith.addf %24, %26 : vector<48x32xf32>
    %cst_23 = arith.constant dense<0.000000e+00> : vector<16x32xf32>
    %28 = tpu.matmul %1, %27, %cst_23 {dimension_numbers = #tpu.dot_dimension_numbers<[1], [0], [0], [1], [0, 0, 1, 1], [], []>} : vector<16x48xf32>, vector<48x32xf32>, vector<16x32xf32> -> vector<16x32xf32>
    %29 = arith.mulf %27, %27 : vector<48x32xf32>
    %cst_24 = arith.constant dense<0.000000e+00> : vector<16x32xf32>
    %30 = tpu.matmul %1, %29, %cst_24 {dimension_numbers = #tpu.dot_dimension_numbers<[1], [0], [0], [1], [0, 0, 1, 1], [], []>} : vector<16x48xf32>, vector<48x32xf32>, vector<16x32xf32> -> vector<16x32xf32>
    %31 = vector.broadcast %7 : vector<16x1xf32> to vector<16x32xf32>
    %32 = arith.mulf %28, %31 : vector<16x32xf32>
    %33 = vector.broadcast %7 : vector<16x1xf32> to vector<16x32xf32>
    %34 = arith.mulf %30, %33 : vector<16x32xf32>
    %35 = arith.mulf %32, %32 : vector<16x32xf32>
    %36 = arith.subf %34, %35 : vector<16x32xf32>
    %cst_25 = arith.constant 0.000000e+00 : f32
    %37 = vector.broadcast %cst_25 : f32 to vector<16x32xf32>
    %38 = arith.maximumf %36, %37 : vector<16x32xf32>
    %cst_26 = arith.constant 9.99999974E-6 : f32
    %39 = vector.broadcast %cst_26 : f32 to vector<16x32xf32>
    %40 = arith.addf %38, %39 : vector<16x32xf32>
    %41 = math.sqrt %40 : vector<16x32xf32>
    %c0_27 = arith.constant 0 : index
    %c0_28 = arith.constant 0 : index
    %42 = vector.load %arg32[%c0_27, %c0_28] : memref<48x32xf32, #tpu.memory_space<vmem>>, vector<48x32xf32>
    tpu.vector_store %arg32[%c0_27, %c0_28], %27 {strides = array<i32>} : memref<48x32xf32, #tpu.memory_space<vmem>>, vector<48x32xf32>,
    %cst_29 = arith.constant 1.000000e+30 : f32
    %43 = vector.broadcast %cst_29 : f32 to vector<16x32xf32>
    %cst_30 = arith.constant -1.000000e+30 : f32
    %44 = vector.broadcast %cst_30 : f32 to vector<16x32xf32>
    %c0_i32 = arith.constant 0 : i32
    %c8_i32 = arith.constant 8 : i32
    %45 = arith.muli %c0_i32, %c8_i32 : i32
    %46 = arith.index_cast %45 : i32 to index
    %c0_31 = arith.constant 0 : index
    %47 = vector.load %arg32[%46, %c0_31] : memref<48x32xf32, #tpu.memory_space<vmem>>, vector<8x32xf32>
    %48 = arith.index_cast %45 : i32 to index
    %c0_32 = arith.constant 0 : index
    %49 = vector.load %arg2[%48, %c0_32] : memref<48x16xf32, #tpu.memory_space<vmem>>, vector<8x16xf32>
    %cst_33 = arith.constant 1.000000e+00 : f32
    %50 = vector.broadcast %cst_33 : f32 to vector<8x16xf32>
    %51 = arith.subf %50, %49 : vector<8x16xf32>
    %cst_34 = arith.constant 1.000000e+30 : f32
    %52 = vector.broadcast %cst_34 : f32 to vector<8x16xf32>
    %53 = arith.mulf %51, %52 : vector<8x16xf32>
    %54 = vector.shape_cast %47 : vector<8x32xf32> to vector<8x1x32xf32>
    %55 = vector.shape_cast %53 : vector<8x16xf32> to vector<8x16x1xf32>
    %56 = vector.broadcast %54 : vector<8x1x32xf32> to vector<8x16x32xf32>
    %57 = vector.broadcast %55 : vector<8x16x1xf32> to vector<8x16x32xf32>
    %58 = arith.addf %56, %57 : vector<8x16x32xf32>
    %cst_35 = arith.constant dense<0x7F800000> : vector<16x32xf32>
    %59 = vector.multi_reduction <minimumf>, %58, %cst_35 [0] : vector<8x16x32xf32> to vector<16x32xf32>
    %60 = arith.minimumf %43, %59 : vector<16x32xf32>
    %61 = vector.shape_cast %47 : vector<8x32xf32> to vector<8x1x32xf32>
    %62 = vector.shape_cast %53 : vector<8x16xf32> to vector<8x16x1xf32>
    %63 = vector.broadcast %61 : vector<8x1x32xf32> to vector<8x16x32xf32>
    %64 = vector.broadcast %62 : vector<8x16x1xf32> to vector<8x16x32xf32>
    %65 = arith.subf %63, %64 : vector<8x16x32xf32>
    %cst_36 = arith.constant dense<0xFF800000> : vector<16x32xf32>
    %66 = vector.multi_reduction <maximumf>, %65, %cst_36 [0] : vector<8x16x32xf32> to vector<16x32xf32>
    %67 = arith.maximumf %44, %66 : vector<16x32xf32>
    %c1_i32 = arith.constant 1 : i32
    %c8_i32_37 = arith.constant 8 : i32
    %68 = arith.muli %c1_i32, %c8_i32_37 : i32
    %69 = arith.index_cast %68 : i32 to index
    %c0_38 = arith.constant 0 : index
    %70 = vector.load %arg32[%69, %c0_38] : memref<48x32xf32, #tpu.memory_space<vmem>>, vector<8x32xf32>
    %71 = arith.index_cast %68 : i32 to index
    %c0_39 = arith.constant 0 : index
    %72 = vector.load %arg2[%71, %c0_39] : memref<48x16xf32, #tpu.memory_space<vmem>>, vector<8x16xf32>
    %cst_40 = arith.constant 1.000000e+00 : f32
    %73 = vector.broadcast %cst_40 : f32 to vector<8x16xf32>
    %74 = arith.subf %73, %72 : vector<8x16xf32>
    %cst_41 = arith.constant 1.000000e+30 : f32
    %75 = vector.broadcast %cst_41 : f32 to vector<8x16xf32>
    %76 = arith.mulf %74, %75 : vector<8x16xf32>
    %77 = vector.shape_cast %70 : vector<8x32xf32> to vector<8x1x32xf32>
    %78 = vector.shape_cast %76 : vector<8x16xf32> to vector<8x16x1xf32>
    %79 = vector.broadcast %77 : vector<8x1x32xf32> to vector<8x16x32xf32>
    %80 = vector.broadcast %78 : vector<8x16x1xf32> to vector<8x16x32xf32>
    %81 = arith.addf %79, %80 : vector<8x16x32xf32>
    %cst_42 = arith.constant dense<0x7F800000> : vector<16x32xf32>
    %82 = vector.multi_reduction <minimumf>, %81, %cst_42 [0] : vector<8x16x32xf32> to vector<16x32xf32>
    %83 = arith.minimumf %60, %82 : vector<16x32xf32>
    %84 = vector.shape_cast %70 : vector<8x32xf32> to vector<8x1x32xf32>
    %85 = vector.shape_cast %76 : vector<8x16xf32> to vector<8x16x1xf32>
    %86 = vector.broadcast %84 : vector<8x1x32xf32> to vector<8x16x32xf32>
    %87 = vector.broadcast %85 : vector<8x16x1xf32> to vector<8x16x32xf32>
    %88 = arith.subf %86, %87 : vector<8x16x32xf32>
    %cst_43 = arith.constant dense<0xFF800000> : vector<16x32xf32>
    %89 = vector.multi_reduction <maximumf>, %88, %cst_43 [0] : vector<8x16x32xf32> to vector<16x32xf32>
    %90 = arith.maximumf %67, %89 : vector<16x32xf32>
    %c2_i32 = arith.constant 2 : i32
    %c8_i32_44 = arith.constant 8 : i32
    %91 = arith.muli %c2_i32, %c8_i32_44 : i32
    %92 = arith.index_cast %91 : i32 to index
    %c0_45 = arith.constant 0 : index
    %93 = vector.load %arg32[%92, %c0_45] : memref<48x32xf32, #tpu.memory_space<vmem>>, vector<8x32xf32>
    %94 = arith.index_cast %91 : i32 to index
    %c0_46 = arith.constant 0 : index
    %95 = vector.load %arg2[%94, %c0_46] : memref<48x16xf32, #tpu.memory_space<vmem>>, vector<8x16xf32>
    %cst_47 = arith.constant 1.000000e+00 : f32
    %96 = vector.broadcast %cst_47 : f32 to vector<8x16xf32>
    %97 = arith.subf %96, %95 : vector<8x16xf32>
    %cst_48 = arith.constant 1.000000e+30 : f32
    %98 = vector.broadcast %cst_48 : f32 to vector<8x16xf32>
    %99 = arith.mulf %97, %98 : vector<8x16xf32>
    %100 = vector.shape_cast %93 : vector<8x32xf32> to vector<8x1x32xf32>
    %101 = vector.shape_cast %99 : vector<8x16xf32> to vector<8x16x1xf32>
    %102 = vector.broadcast %100 : vector<8x1x32xf32> to vector<8x16x32xf32>
    %103 = vector.broadcast %101 : vector<8x16x1xf32> to vector<8x16x32xf32>
    %104 = arith.addf %102, %103 : vector<8x16x32xf32>
    %cst_49 = arith.constant dense<0x7F800000> : vector<16x32xf32>
    %105 = vector.multi_reduction <minimumf>, %104, %cst_49 [0] : vector<8x16x32xf32> to vector<16x32xf32>
    %106 = arith.minimumf %83, %105 : vector<16x32xf32>
    %107 = vector.shape_cast %93 : vector<8x32xf32> to vector<8x1x32xf32>
    %108 = vector.shape_cast %99 : vector<8x16xf32> to vector<8x16x1xf32>
    %109 = vector.broadcast %107 : vector<8x1x32xf32> to vector<8x16x32xf32>
    %110 = vector.broadcast %108 : vector<8x16x1xf32> to vector<8x16x32xf32>
    %111 = arith.subf %109, %110 : vector<8x16x32xf32>
    %cst_50 = arith.constant dense<0xFF800000> : vector<16x32xf32>
    %112 = vector.multi_reduction <maximumf>, %111, %cst_50 [0] : vector<8x16x32xf32> to vector<16x32xf32>
    %113 = arith.maximumf %90, %112 : vector<16x32xf32>
    %c3_i32 = arith.constant 3 : i32
    %c8_i32_51 = arith.constant 8 : i32
    %114 = arith.muli %c3_i32, %c8_i32_51 : i32
    %115 = arith.index_cast %114 : i32 to index
    %c0_52 = arith.constant 0 : index
    %116 = vector.load %arg32[%115, %c0_52] : memref<48x32xf32, #tpu.memory_space<vmem>>, vector<8x32xf32>
    %117 = arith.index_cast %114 : i32 to index
    %c0_53 = arith.constant 0 : index
    %118 = vector.load %arg2[%117, %c0_53] : memref<48x16xf32, #tpu.memory_space<vmem>>, vector<8x16xf32>
    %cst_54 = arith.constant 1.000000e+00 : f32
    %119 = vector.broadcast %cst_54 : f32 to vector<8x16xf32>
    %120 = arith.subf %119, %118 : vector<8x16xf32>
    %cst_55 = arith.constant 1.000000e+30 : f32
    %121 = vector.broadcast %cst_55 : f32 to vector<8x16xf32>
    %122 = arith.mulf %120, %121 : vector<8x16xf32>
    %123 = vector.shape_cast %116 : vector<8x32xf32> to vector<8x1x32xf32>
    %124 = vector.shape_cast %122 : vector<8x16xf32> to vector<8x16x1xf32>
    %125 = vector.broadcast %123 : vector<8x1x32xf32> to vector<8x16x32xf32>
    %126 = vector.broadcast %124 : vector<8x16x1xf32> to vector<8x16x32xf32>
    %127 = arith.addf %125, %126 : vector<8x16x32xf32>
    %cst_56 = arith.constant dense<0x7F800000> : vector<16x32xf32>
    %128 = vector.multi_reduction <minimumf>, %127, %cst_56 [0] : vector<8x16x32xf32> to vector<16x32xf32>
    %129 = arith.minimumf %106, %128 : vector<16x32xf32>
    %130 = vector.shape_cast %116 : vector<8x32xf32> to vector<8x1x32xf32>
    %131 = vector.shape_cast %122 : vector<8x16xf32> to vector<8x16x1xf32>
    %132 = vector.broadcast %130 : vector<8x1x32xf32> to vector<8x16x32xf32>
    %133 = vector.broadcast %131 : vector<8x16x1xf32> to vector<8x16x32xf32>
    %134 = arith.subf %132, %133 : vector<8x16x32xf32>
    %cst_57 = arith.constant dense<0xFF800000> : vector<16x32xf32>
    %135 = vector.multi_reduction <maximumf>, %134, %cst_57 [0] : vector<8x16x32xf32> to vector<16x32xf32>
    %136 = arith.maximumf %113, %135 : vector<16x32xf32>
    %c4_i32 = arith.constant 4 : i32
    %c8_i32_58 = arith.constant 8 : i32
    %137 = arith.muli %c4_i32, %c8_i32_58 : i32
    %138 = arith.index_cast %137 : i32 to index
    %c0_59 = arith.constant 0 : index
    %139 = vector.load %arg32[%138, %c0_59] : memref<48x32xf32, #tpu.memory_space<vmem>>, vector<8x32xf32>
    %140 = arith.index_cast %137 : i32 to index
    %c0_60 = arith.constant 0 : index
    %141 = vector.load %arg2[%140, %c0_60] : memref<48x16xf32, #tpu.memory_space<vmem>>, vector<8x16xf32>
    %cst_61 = arith.constant 1.000000e+00 : f32
    %142 = vector.broadcast %cst_61 : f32 to vector<8x16xf32>
    %143 = arith.subf %142, %141 : vector<8x16xf32>
    %cst_62 = arith.constant 1.000000e+30 : f32
    %144 = vector.broadcast %cst_62 : f32 to vector<8x16xf32>
    %145 = arith.mulf %143, %144 : vector<8x16xf32>
    %146 = vector.shape_cast %139 : vector<8x32xf32> to vector<8x1x32xf32>
    %147 = vector.shape_cast %145 : vector<8x16xf32> to vector<8x16x1xf32>
    %148 = vector.broadcast %146 : vector<8x1x32xf32> to vector<8x16x32xf32>
    %149 = vector.broadcast %147 : vector<8x16x1xf32> to vector<8x16x32xf32>
    %150 = arith.addf %148, %149 : vector<8x16x32xf32>
    %cst_63 = arith.constant dense<0x7F800000> : vector<16x32xf32>
    %151 = vector.multi_reduction <minimumf>, %150, %cst_63 [0] : vector<8x16x32xf32> to vector<16x32xf32>
    %152 = arith.minimumf %129, %151 : vector<16x32xf32>
    %153 = vector.shape_cast %139 : vector<8x32xf32> to vector<8x1x32xf32>
    %154 = vector.shape_cast %145 : vector<8x16xf32> to vector<8x16x1xf32>
    %155 = vector.broadcast %153 : vector<8x1x32xf32> to vector<8x16x32xf32>
    %156 = vector.broadcast %154 : vector<8x16x1xf32> to vector<8x16x32xf32>
    %157 = arith.subf %155, %156 : vector<8x16x32xf32>
    %cst_64 = arith.constant dense<0xFF800000> : vector<16x32xf32>
    %158 = vector.multi_reduction <maximumf>, %157, %cst_64 [0] : vector<8x16x32xf32> to vector<16x32xf32>
    %159 = arith.maximumf %136, %158 : vector<16x32xf32>
    %c5_i32 = arith.constant 5 : i32
    %c8_i32_65 = arith.constant 8 : i32
    %160 = arith.muli %c5_i32, %c8_i32_65 : i32
    %161 = arith.index_cast %160 : i32 to index
    %c0_66 = arith.constant 0 : index
    %162 = vector.load %arg32[%161, %c0_66] : memref<48x32xf32, #tpu.memory_space<vmem>>, vector<8x32xf32>
    %163 = arith.index_cast %160 : i32 to index
    %c0_67 = arith.constant 0 : index
    %164 = vector.load %arg2[%163, %c0_67] : memref<48x16xf32, #tpu.memory_space<vmem>>, vector<8x16xf32>
    %cst_68 = arith.constant 1.000000e+00 : f32
    %165 = vector.broadcast %cst_68 : f32 to vector<8x16xf32>
    %166 = arith.subf %165, %164 : vector<8x16xf32>
    %cst_69 = arith.constant 1.000000e+30 : f32
    %167 = vector.broadcast %cst_69 : f32 to vector<8x16xf32>
    %168 = arith.mulf %166, %167 : vector<8x16xf32>
    %169 = vector.shape_cast %162 : vector<8x32xf32> to vector<8x1x32xf32>
    %170 = vector.shape_cast %168 : vector<8x16xf32> to vector<8x16x1xf32>
    %171 = vector.broadcast %169 : vector<8x1x32xf32> to vector<8x16x32xf32>
    %172 = vector.broadcast %170 : vector<8x16x1xf32> to vector<8x16x32xf32>
    %173 = arith.addf %171, %172 : vector<8x16x32xf32>
    %cst_70 = arith.constant dense<0x7F800000> : vector<16x32xf32>
    %174 = vector.multi_reduction <minimumf>, %173, %cst_70 [0] : vector<8x16x32xf32> to vector<16x32xf32>
    %175 = arith.minimumf %152, %174 : vector<16x32xf32>
    %176 = vector.shape_cast %162 : vector<8x32xf32> to vector<8x1x32xf32>
    %177 = vector.shape_cast %168 : vector<8x16xf32> to vector<8x16x1xf32>
    %178 = vector.broadcast %176 : vector<8x1x32xf32> to vector<8x16x32xf32>
    %179 = vector.broadcast %177 : vector<8x16x1xf32> to vector<8x16x32xf32>
    %180 = arith.subf %178, %179 : vector<8x16x32xf32>
    %cst_71 = arith.constant dense<0xFF800000> : vector<16x32xf32>
    %181 = vector.multi_reduction <maximumf>, %180, %cst_71 [0] : vector<8x16x32xf32> to vector<16x32xf32>
    %182 = arith.maximumf %159, %181 : vector<16x32xf32>
    %c6_i32 = arith.constant 6 : i32
    %cst_72 = arith.constant 0.000000e+00 : f32
    %183 = vector.shape_cast %17 : vector<16x1xi1> to vector<16x1xi1>
    %184 = vector.broadcast %183 : vector<16x1xi1> to vector<16x32xi1>
    %185 = vector.broadcast %cst_72 : f32 to vector<16x32xf32>
    %186 = arith.select %184, %175, %185 : vector<16x32xi1>, vector<16x32xf32>
    %cst_73 = arith.constant 0.000000e+00 : f32
    %187 = vector.shape_cast %17 : vector<16x1xi1> to vector<16x1xi1>
    %188 = vector.broadcast %187 : vector<16x1xi1> to vector<16x32xi1>
    %189 = vector.broadcast %cst_73 : f32 to vector<16x32xf32>
    %190 = arith.select %188, %182, %189 : vector<16x32xi1>, vector<16x32xf32>
    %cst_74 = arith.constant 0.000000e+00 : f32
    %191 = vector.broadcast %cst_74 : f32 to vector<16x32xf32>
    %cst_75 = arith.constant 0.000000e+00 : f32
    %192 = vector.broadcast %cst_75 : f32 to vector<16x32xf32>
    %cst_76 = arith.constant 0.000000e+00 : f32
    %193 = vector.broadcast %cst_76 : f32 to vector<16x32xf32>
    %c0_77 = arith.constant 0 : index
    %c0_78 = arith.constant 0 : index
    %c0_79 = arith.constant 0 : index
    %194 = vector.load %arg9[%c0_77, %c0_78, %c0_79] : memref<12x32x32xf32, #tpu.memory_space<vmem>>, vector<1x32x32xf32>
    %195 = vector.shape_cast %194 : vector<1x32x32xf32> to vector<32x32xf32>
    %cst_80 = arith.constant dense<0.000000e+00> : vector<16x32xf32>
    %196 = tpu.matmul %32, %195, %cst_80 {dimension_numbers = #tpu.dot_dimension_numbers<[1], [0], [0], [1], [0, 0, 1, 1], [], []>} : vector<16x32xf32>, vector<32x32xf32>, vector<16x32xf32> -> vector<16x32xf32>
    %197 = arith.addf %191, %196 : vector<16x32xf32>
    %c1 = arith.constant 1 : index
    %c0_81 = arith.constant 0 : index
    %c0_82 = arith.constant 0 : index
    %198 = vector.load %arg9[%c1, %c0_81, %c0_82] : memref<12x32x32xf32, #tpu.memory_space<vmem>>, vector<1x32x32xf32>
    %199 = vector.shape_cast %198 : vector<1x32x32xf32> to vector<32x32xf32>
    %cst_83 = arith.constant dense<0.000000e+00> : vector<16x32xf32>
    %200 = tpu.matmul %32, %199, %cst_83 {dimension_numbers = #tpu.dot_dimension_numbers<[1], [0], [0], [1], [0, 0, 1, 1], [], []>} : vector<16x32xf32>, vector<32x32xf32>, vector<16x32xf32> -> vector<16x32xf32>
    %201 = arith.addf %192, %200 : vector<16x32xf32>
    %c2 = arith.constant 2 : index
    %c0_84 = arith.constant 0 : index
    %c0_85 = arith.constant 0 : index
    %202 = vector.load %arg9[%c2, %c0_84, %c0_85] : memref<12x32x32xf32, #tpu.memory_space<vmem>>, vector<1x32x32xf32>
    %203 = vector.shape_cast %202 : vector<1x32x32xf32> to vector<32x32xf32>
    %cst_86 = arith.constant dense<0.000000e+00> : vector<16x32xf32>
    %204 = tpu.matmul %32, %203, %cst_86 {dimension_numbers = #tpu.dot_dimension_numbers<[1], [0], [0], [1], [0, 0, 1, 1], [], []>} : vector<16x32xf32>, vector<32x32xf32>, vector<16x32xf32> -> vector<16x32xf32>
    %205 = arith.addf %193, %204 : vector<16x32xf32>
    %c3 = arith.constant 3 : index
    %c0_87 = arith.constant 0 : index
    %c0_88 = arith.constant 0 : index
    %206 = vector.load %arg9[%c3, %c0_87, %c0_88] : memref<12x32x32xf32, #tpu.memory_space<vmem>>, vector<1x32x32xf32>
    %207 = vector.shape_cast %206 : vector<1x32x32xf32> to vector<32x32xf32>
    %cst_89 = arith.constant dense<0.000000e+00> : vector<16x32xf32>
    %208 = tpu.matmul %186, %207, %cst_89 {dimension_numbers = #tpu.dot_dimension_numbers<[1], [0], [0], [1], [0, 0, 1, 1], [], []>} : vector<16x32xf32>, vector<32x32xf32>, vector<16x32xf32> -> vector<16x32xf32>
    %209 = arith.addf %197, %208 : vector<16x32xf32>
    %c4 = arith.constant 4 : index
    %c0_90 = arith.constant 0 : index
    %c0_91 = arith.constant 0 : index
    %210 = vector.load %arg9[%c4, %c0_90, %c0_91] : memref<12x32x32xf32, #tpu.memory_space<vmem>>, vector<1x32x32xf32>
    %211 = vector.shape_cast %210 : vector<1x32x32xf32> to vector<32x32xf32>
    %cst_92 = arith.constant dense<0.000000e+00> : vector<16x32xf32>
    %212 = tpu.matmul %186, %211, %cst_92 {dimension_numbers = #tpu.dot_dimension_numbers<[1], [0], [0], [1], [0, 0, 1, 1], [], []>} : vector<16x32xf32>, vector<32x32xf32>, vector<16x32xf32> -> vector<16x32xf32>
    %213 = arith.addf %201, %212 : vector<16x32xf32>
    %c5 = arith.constant 5 : index
    %c0_93 = arith.constant 0 : index
    %c0_94 = arith.constant 0 : index
    %214 = vector.load %arg9[%c5, %c0_93, %c0_94] : memref<12x32x32xf32, #tpu.memory_space<vmem>>, vector<1x32x32xf32>
    %215 = vector.shape_cast %214 : vector<1x32x32xf32> to vector<32x32xf32>
    %cst_95 = arith.constant dense<0.000000e+00> : vector<16x32xf32>
    %216 = tpu.matmul %186, %215, %cst_95 {dimension_numbers = #tpu.dot_dimension_numbers<[1], [0], [0], [1], [0, 0, 1, 1], [], []>} : vector<16x32xf32>, vector<32x32xf32>, vector<16x32xf32> -> vector<16x32xf32>
    %217 = arith.addf %205, %216 : vector<16x32xf32>
    %c6 = arith.constant 6 : index
    %c0_96 = arith.constant 0 : index
    %c0_97 = arith.constant 0 : index
    %218 = vector.load %arg9[%c6, %c0_96, %c0_97] : memref<12x32x32xf32, #tpu.memory_space<vmem>>, vector<1x32x32xf32>
    %219 = vector.shape_cast %218 : vector<1x32x32xf32> to vector<32x32xf32>
    %cst_98 = arith.constant dense<0.000000e+00> : vector<16x32xf32>
    %220 = tpu.matmul %190, %219, %cst_98 {dimension_numbers = #tpu.dot_dimension_numbers<[1], [0], [0], [1], [0, 0, 1, 1], [], []>} : vector<16x32xf32>, vector<32x32xf32>, vector<16x32xf32> -> vector<16x32xf32>
    %221 = arith.addf %209, %220 : vector<16x32xf32>
    %c7 = arith.constant 7 : index
    %c0_99 = arith.constant 0 : index
    %c0_100 = arith.constant 0 : index
    %222 = vector.load %arg9[%c7, %c0_99, %c0_100] : memref<12x32x32xf32, #tpu.memory_space<vmem>>, vector<1x32x32xf32>
    %223 = vector.shape_cast %222 : vector<1x32x32xf32> to vector<32x32xf32>
    %cst_101 = arith.constant dense<0.000000e+00> : vector<16x32xf32>
    %224 = tpu.matmul %190, %223, %cst_101 {dimension_numbers = #tpu.dot_dimension_numbers<[1], [0], [0], [1], [0, 0, 1, 1], [], []>} : vector<16x32xf32>, vector<32x32xf32>, vector<16x32xf32> -> vector<16x32xf32>
    %225 = arith.addf %213, %224 : vector<16x32xf32>
    %c8 = arith.constant 8 : index
    %c0_102 = arith.constant 0 : index
    %c0_103 = arith.constant 0 : index
    %226 = vector.load %arg9[%c8, %c0_102, %c0_103] : memref<12x32x32xf32, #tpu.memory_space<vmem>>, vector<1x32x32xf32>
    %227 = vector.shape_cast %226 : vector<1x32x32xf32> to vector<32x32xf32>
    %cst_104 = arith.constant dense<0.000000e+00> : vector<16x32xf32>
    %228 = tpu.matmul %190, %227, %cst_104 {dimension_numbers = #tpu.dot_dimension_numbers<[1], [0], [0], [1], [0, 0, 1, 1], [], []>} : vector<16x32xf32>, vector<32x32xf32>, vector<16x32xf32> -> vector<16x32xf32>
    %229 = arith.addf %217, %228 : vector<16x32xf32>
    %c9 = arith.constant 9 : index
    %c0_105 = arith.constant 0 : index
    %c0_106 = arith.constant 0 : index
    %230 = vector.load %arg9[%c9, %c0_105, %c0_106] : memref<12x32x32xf32, #tpu.memory_space<vmem>>, vector<1x32x32xf32>
    %231 = vector.shape_cast %230 : vector<1x32x32xf32> to vector<32x32xf32>
    %cst_107 = arith.constant dense<0.000000e+00> : vector<16x32xf32>
    %232 = tpu.matmul %41, %231, %cst_107 {dimension_numbers = #tpu.dot_dimension_numbers<[1], [0], [0], [1], [0, 0, 1, 1], [], []>} : vector<16x32xf32>, vector<32x32xf32>, vector<16x32xf32> -> vector<16x32xf32>
    %233 = arith.addf %221, %232 : vector<16x32xf32>
    %c10 = arith.constant 10 : index
    %c0_108 = arith.constant 0 : index
    %c0_109 = arith.constant 0 : index
    %234 = vector.load %arg9[%c10, %c0_108, %c0_109] : memref<12x32x32xf32, #tpu.memory_space<vmem>>, vector<1x32x32xf32>
    %235 = vector.shape_cast %234 : vector<1x32x32xf32> to vector<32x32xf32>
    %cst_110 = arith.constant dense<0.000000e+00> : vector<16x32xf32>
    %236 = tpu.matmul %41, %235, %cst_110 {dimension_numbers = #tpu.dot_dimension_numbers<[1], [0], [0], [1], [0, 0, 1, 1], [], []>} : vector<16x32xf32>, vector<32x32xf32>, vector<16x32xf32> -> vector<16x32xf32>
    %237 = arith.addf %225, %236 : vector<16x32xf32>
    %c11 = arith.constant 11 : index
    %c0_111 = arith.constant 0 : index
    %c0_112 = arith.constant 0 : index
    %238 = vector.load %arg9[%c11, %c0_111, %c0_112] : memref<12x32x32xf32, #tpu.memory_space<vmem>>, vector<1x32x32xf32>
    %239 = vector.shape_cast %238 : vector<1x32x32xf32> to vector<32x32xf32>
    %cst_113 = arith.constant dense<0.000000e+00> : vector<16x32xf32>
    %240 = tpu.matmul %41, %239, %cst_113 {dimension_numbers = #tpu.dot_dimension_numbers<[1], [0], [0], [1], [0, 0, 1, 1], [], []>} : vector<16x32xf32>, vector<32x32xf32>, vector<16x32xf32> -> vector<16x32xf32>
    %241 = arith.addf %229, %240 : vector<16x32xf32>
    %c0_114 = arith.constant 0 : index
    %c0_115 = arith.constant 0 : index
    %242 = vector.load %arg8[%c0_114, %c0_115] : memref<8x32xf32, #tpu.memory_space<vmem>>, vector<8x32xf32>
    %cst_116 = arith.constant dense<0.000000e+00> : vector<16x32xf32>
    %243 = tpu.matmul %0, %242, %cst_116 {dimension_numbers = #tpu.dot_dimension_numbers<[1], [0], [0], [1], [0, 0, 1, 1], [], []>} : vector<16x8xf32>, vector<8x32xf32>, vector<16x32xf32> -> vector<16x32xf32>
    %244 = arith.addf %243, %233 : vector<16x32xf32>
    %245 = vector.broadcast %12 : vector<16x1xf32> to vector<16x32xf32>
    %246 = arith.mulf %245, %237 : vector<16x32xf32>
    %247 = arith.addf %244, %246 : vector<16x32xf32>
    %248 = vector.broadcast %15 : vector<16x1xf32> to vector<16x32xf32>
    %249 = arith.mulf %248, %241 : vector<16x32xf32>
    %250 = arith.addf %247, %249 : vector<16x32xf32>
    %c0_117 = arith.constant 0 : index
    %c0_118 = arith.constant 0 : index
    %251 = vector.load %arg10[%c0_117, %c0_118] : memref<1x32xf32, #tpu.memory_space<vmem>>, vector<1x32xf32>
    %252 = vector.broadcast %251 : vector<1x32xf32> to vector<16x32xf32>
    %253 = arith.addf %250, %252 : vector<16x32xf32>
    %c0_119 = arith.constant 0 : index
    %c0_120 = arith.constant 0 : index
    %254 = vector.load %arg11[%c0_119, %c0_120] : memref<32x32xf32, #tpu.memory_space<vmem>>, vector<32x32xf32>
    %cst_121 = arith.constant dense<0.000000e+00> : vector<16x32xf32>
    %255 = tpu.matmul %253, %254, %cst_121 {dimension_numbers = #tpu.dot_dimension_numbers<[1], [0], [0], [1], [0, 0, 1, 1], [], []>} : vector<16x32xf32>, vector<32x32xf32>, vector<16x32xf32> -> vector<16x32xf32>
    %c0_122 = arith.constant 0 : index
    %c0_123 = arith.constant 0 : index
    %256 = vector.load %arg12[%c0_122, %c0_123] : memref<1x32xf32, #tpu.memory_space<vmem>>, vector<1x32xf32>
    %257 = vector.broadcast %256 : vector<1x32xf32> to vector<16x32xf32>
    %258 = arith.addf %255, %257 : vector<16x32xf32>
    %c0_124 = arith.constant 0 : index
    %c0_125 = arith.constant 0 : index
    %259 = vector.load %arg13[%c0_124, %c0_125] : memref<1x32xf32, #tpu.memory_space<vmem>>, vector<1x32xf32>
    %260 = vector.broadcast %259 : vector<1x32xf32> to vector<16x32xf32>
    %261 = arith.mulf %258, %260 : vector<16x32xf32>
    %c0_126 = arith.constant 0 : index
    %c0_127 = arith.constant 0 : index
    %262 = vector.load %arg14[%c0_126, %c0_127] : memref<1x32xf32, #tpu.memory_space<vmem>>, vector<1x32xf32>
    %263 = vector.broadcast %262 : vector<1x32xf32> to vector<16x32xf32>
    %264 = arith.addf %261, %263 : vector<16x32xf32>
    %cst_128 = arith.constant 0.000000e+00 : f32
    %265 = vector.broadcast %cst_128 : f32 to vector<16x32xf32>
    %266 = arith.maximumf %264, %265 : vector<16x32xf32>
    %c0_129 = arith.constant 0 : index
    %c0_130 = arith.constant 0 : index
    %267 = vector.load %arg15[%c0_129, %c0_130] : memref<32x128xf32, #tpu.memory_space<vmem>>, vector<32x128xf32>
    %cst_131 = arith.constant dense<0.000000e+00> : vector<16x128xf32>
    %268 = tpu.matmul %266, %267, %cst_131 {dimension_numbers = #tpu.dot_dimension_numbers<[1], [0], [0], [1], [0, 0, 1, 1], [], []>} : vector<16x32xf32>, vector<32x128xf32>, vector<16x128xf32> -> vector<16x128xf32>
    %c0_132 = arith.constant 0 : index
    %c0_133 = arith.constant 0 : index
    %269 = vector.load %arg16[%c0_132, %c0_133] : memref<32x128xf32, #tpu.memory_space<vmem>>, vector<32x128xf32>
    %cst_134 = arith.constant dense<0.000000e+00> : vector<16x128xf32>
    %270 = tpu.matmul %266, %269, %cst_134 {dimension_numbers = #tpu.dot_dimension_numbers<[1], [0], [0], [1], [0, 0, 1, 1], [], []>} : vector<16x32xf32>, vector<32x128xf32>, vector<16x128xf32> -> vector<16x128xf32>
    %cst_135 = arith.constant dense<0.000000e+00> : vector<48x128xf32>
    %271 = tpu.matmul %2, %268, %cst_135 {dimension_numbers = #tpu.dot_dimension_numbers<[1], [0], [0], [1], [0, 0, 1, 1], [], []>} : vector<48x16xf32>, vector<16x128xf32>, vector<48x128xf32> -> vector<48x128xf32>
    %cst_136 = arith.constant dense<0.000000e+00> : vector<48x128xf32>
    %272 = tpu.matmul %3, %270, %cst_136 {dimension_numbers = #tpu.dot_dimension_numbers<[1], [0], [0], [1], [0, 0, 1, 1], [], []>} : vector<48x16xf32>, vector<16x128xf32>, vector<48x128xf32> -> vector<48x128xf32>
    %273 = arith.addf %271, %272 : vector<48x128xf32>
    %c0_137 = arith.constant 0 : index
    %c0_138 = arith.constant 0 : index
    %274 = vector.load %arg17[%c0_137, %c0_138] : memref<1x128xf32, #tpu.memory_space<vmem>>, vector<1x128xf32>
    %275 = vector.broadcast %274 : vector<1x128xf32> to vector<48x128xf32>
    %276 = arith.addf %273, %275 : vector<48x128xf32>
    %cst_139 = arith.constant dense<0.000000e+00> : vector<16x128xf32>
    %277 = tpu.matmul %1, %276, %cst_139 {dimension_numbers = #tpu.dot_dimension_numbers<[1], [0], [0], [1], [0, 0, 1, 1], [], []>} : vector<16x48xf32>, vector<48x128xf32>, vector<16x128xf32> -> vector<16x128xf32>
    %278 = arith.mulf %276, %276 : vector<48x128xf32>
    %cst_140 = arith.constant dense<0.000000e+00> : vector<16x128xf32>
    %279 = tpu.matmul %1, %278, %cst_140 {dimension_numbers = #tpu.dot_dimension_numbers<[1], [0], [0], [1], [0, 0, 1, 1], [], []>} : vector<16x48xf32>, vector<48x128xf32>, vector<16x128xf32> -> vector<16x128xf32>
    %280 = vector.broadcast %7 : vector<16x1xf32> to vector<16x128xf32>
    %281 = arith.mulf %277, %280 : vector<16x128xf32>
    %282 = vector.broadcast %7 : vector<16x1xf32> to vector<16x128xf32>
    %283 = arith.mulf %279, %282 : vector<16x128xf32>
    %284 = arith.mulf %281, %281 : vector<16x128xf32>
    %285 = arith.subf %283, %284 : vector<16x128xf32>
    %cst_141 = arith.constant 0.000000e+00 : f32
    %286 = vector.broadcast %cst_141 : f32 to vector<16x128xf32>
    %287 = arith.maximumf %285, %286 : vector<16x128xf32>
    %cst_142 = arith.constant 9.99999974E-6 : f32
    %288 = vector.broadcast %cst_142 : f32 to vector<16x128xf32>
    %289 = arith.addf %287, %288 : vector<16x128xf32>
    %290 = math.sqrt %289 : vector<16x128xf32>
    %c0_143 = arith.constant 0 : index
    %c0_144 = arith.constant 0 : index
    %291 = vector.load %arg33[%c0_143, %c0_144] : memref<48x128xf32, #tpu.memory_space<vmem>>, vector<48x128xf32>
    tpu.vector_store %arg33[%c0_143, %c0_144], %276 {strides = array<i32>} : memref<48x128xf32, #tpu.memory_space<vmem>>, vector<48x128xf32>,
    %cst_145 = arith.constant 1.000000e+30 : f32
    %292 = vector.broadcast %cst_145 : f32 to vector<16x128xf32>
    %cst_146 = arith.constant -1.000000e+30 : f32
    %293 = vector.broadcast %cst_146 : f32 to vector<16x128xf32>
    %c0_i32_147 = arith.constant 0 : i32
    %c8_i32_148 = arith.constant 8 : i32
    %294 = arith.muli %c0_i32_147, %c8_i32_148 : i32
    %295 = arith.index_cast %294 : i32 to index
    %c0_149 = arith.constant 0 : index
    %296 = vector.load %arg33[%295, %c0_149] : memref<48x128xf32, #tpu.memory_space<vmem>>, vector<8x128xf32>
    %297 = arith.index_cast %294 : i32 to index
    %c0_150 = arith.constant 0 : index
    %298 = vector.load %arg2[%297, %c0_150] : memref<48x16xf32, #tpu.memory_space<vmem>>, vector<8x16xf32>
    %cst_151 = arith.constant 1.000000e+00 : f32
    %299 = vector.broadcast %cst_151 : f32 to vector<8x16xf32>
    %300 = arith.subf %299, %298 : vector<8x16xf32>
    %cst_152 = arith.constant 1.000000e+30 : f32
    %301 = vector.broadcast %cst_152 : f32 to vector<8x16xf32>
    %302 = arith.mulf %300, %301 : vector<8x16xf32>
    %303 = vector.shape_cast %296 : vector<8x128xf32> to vector<8x1x128xf32>
    %304 = vector.shape_cast %302 : vector<8x16xf32> to vector<8x16x1xf32>
    %305 = vector.broadcast %303 : vector<8x1x128xf32> to vector<8x16x128xf32>
    %306 = vector.broadcast %304 : vector<8x16x1xf32> to vector<8x16x128xf32>
    %307 = arith.addf %305, %306 : vector<8x16x128xf32>
    %cst_153 = arith.constant dense<0x7F800000> : vector<16x128xf32>
    %308 = vector.multi_reduction <minimumf>, %307, %cst_153 [0] : vector<8x16x128xf32> to vector<16x128xf32>
    %309 = arith.minimumf %292, %308 : vector<16x128xf32>
    %310 = vector.shape_cast %296 : vector<8x128xf32> to vector<8x1x128xf32>
    %311 = vector.shape_cast %302 : vector<8x16xf32> to vector<8x16x1xf32>
    %312 = vector.broadcast %310 : vector<8x1x128xf32> to vector<8x16x128xf32>
    %313 = vector.broadcast %311 : vector<8x16x1xf32> to vector<8x16x128xf32>
    %314 = arith.subf %312, %313 : vector<8x16x128xf32>
    %cst_154 = arith.constant dense<0xFF800000> : vector<16x128xf32>
    %315 = vector.multi_reduction <maximumf>, %314, %cst_154 [0] : vector<8x16x128xf32> to vector<16x128xf32>
    %316 = arith.maximumf %293, %315 : vector<16x128xf32>
    %c1_i32_155 = arith.constant 1 : i32
    %c8_i32_156 = arith.constant 8 : i32
    %317 = arith.muli %c1_i32_155, %c8_i32_156 : i32
    %318 = arith.index_cast %317 : i32 to index
    %c0_157 = arith.constant 0 : index
    %319 = vector.load %arg33[%318, %c0_157] : memref<48x128xf32, #tpu.memory_space<vmem>>, vector<8x128xf32>
    %320 = arith.index_cast %317 : i32 to index
    %c0_158 = arith.constant 0 : index
    %321 = vector.load %arg2[%320, %c0_158] : memref<48x16xf32, #tpu.memory_space<vmem>>, vector<8x16xf32>
    %cst_159 = arith.constant 1.000000e+00 : f32
    %322 = vector.broadcast %cst_159 : f32 to vector<8x16xf32>
    %323 = arith.subf %322, %321 : vector<8x16xf32>
    %cst_160 = arith.constant 1.000000e+30 : f32
    %324 = vector.broadcast %cst_160 : f32 to vector<8x16xf32>
    %325 = arith.mulf %323, %324 : vector<8x16xf32>
    %326 = vector.shape_cast %319 : vector<8x128xf32> to vector<8x1x128xf32>
    %327 = vector.shape_cast %325 : vector<8x16xf32> to vector<8x16x1xf32>
    %328 = vector.broadcast %326 : vector<8x1x128xf32> to vector<8x16x128xf32>
    %329 = vector.broadcast %327 : vector<8x16x1xf32> to vector<8x16x128xf32>
    %330 = arith.addf %328, %329 : vector<8x16x128xf32>
    %cst_161 = arith.constant dense<0x7F800000> : vector<16x128xf32>
    %331 = vector.multi_reduction <minimumf>, %330, %cst_161 [0] : vector<8x16x128xf32> to vector<16x128xf32>
    %332 = arith.minimumf %309, %331 : vector<16x128xf32>
    %333 = vector.shape_cast %319 : vector<8x128xf32> to vector<8x1x128xf32>
    %334 = vector.shape_cast %325 : vector<8x16xf32> to vector<8x16x1xf32>
    %335 = vector.broadcast %333 : vector<8x1x128xf32> to vector<8x16x128xf32>
    %336 = vector.broadcast %334 : vector<8x16x1xf32> to vector<8x16x128xf32>
    %337 = arith.subf %335, %336 : vector<8x16x128xf32>
    %cst_162 = arith.constant dense<0xFF800000> : vector<16x128xf32>
    %338 = vector.multi_reduction <maximumf>, %337, %cst_162 [0] : vector<8x16x128xf32> to vector<16x128xf32>
    %339 = arith.maximumf %316, %338 : vector<16x128xf32>
    %c2_i32_163 = arith.constant 2 : i32
    %c8_i32_164 = arith.constant 8 : i32
    %340 = arith.muli %c2_i32_163, %c8_i32_164 : i32
    %341 = arith.index_cast %340 : i32 to index
    %c0_165 = arith.constant 0 : index
    %342 = vector.load %arg33[%341, %c0_165] : memref<48x128xf32, #tpu.memory_space<vmem>>, vector<8x128xf32>
    %343 = arith.index_cast %340 : i32 to index
    %c0_166 = arith.constant 0 : index
    %344 = vector.load %arg2[%343, %c0_166] : memref<48x16xf32, #tpu.memory_space<vmem>>, vector<8x16xf32>
    %cst_167 = arith.constant 1.000000e+00 : f32
    %345 = vector.broadcast %cst_167 : f32 to vector<8x16xf32>
    %346 = arith.subf %345, %344 : vector<8x16xf32>
    %cst_168 = arith.constant 1.000000e+30 : f32
    %347 = vector.broadcast %cst_168 : f32 to vector<8x16xf32>
    %348 = arith.mulf %346, %347 : vector<8x16xf32>
    %349 = vector.shape_cast %342 : vector<8x128xf32> to vector<8x1x128xf32>
    %350 = vector.shape_cast %348 : vector<8x16xf32> to vector<8x16x1xf32>
    %351 = vector.broadcast %349 : vector<8x1x128xf32> to vector<8x16x128xf32>
    %352 = vector.broadcast %350 : vector<8x16x1xf32> to vector<8x16x128xf32>
    %353 = arith.addf %351, %352 : vector<8x16x128xf32>
    %cst_169 = arith.constant dense<0x7F800000> : vector<16x128xf32>
    %354 = vector.multi_reduction <minimumf>, %353, %cst_169 [0] : vector<8x16x128xf32> to vector<16x128xf32>
    %355 = arith.minimumf %332, %354 : vector<16x128xf32>
    %356 = vector.shape_cast %342 : vector<8x128xf32> to vector<8x1x128xf32>
    %357 = vector.shape_cast %348 : vector<8x16xf32> to vector<8x16x1xf32>
    %358 = vector.broadcast %356 : vector<8x1x128xf32> to vector<8x16x128xf32>
    %359 = vector.broadcast %357 : vector<8x16x1xf32> to vector<8x16x128xf32>
    %360 = arith.subf %358, %359 : vector<8x16x128xf32>
    %cst_170 = arith.constant dense<0xFF800000> : vector<16x128xf32>
    %361 = vector.multi_reduction <maximumf>, %360, %cst_170 [0] : vector<8x16x128xf32> to vector<16x128xf32>
    %362 = arith.maximumf %339, %361 : vector<16x128xf32>
    %c3_i32_171 = arith.constant 3 : i32
    %c8_i32_172 = arith.constant 8 : i32
    %363 = arith.muli %c3_i32_171, %c8_i32_172 : i32
    %364 = arith.index_cast %363 : i32 to index
    %c0_173 = arith.constant 0 : index
    %365 = vector.load %arg33[%364, %c0_173] : memref<48x128xf32, #tpu.memory_space<vmem>>, vector<8x128xf32>
    %366 = arith.index_cast %363 : i32 to index
    %c0_174 = arith.constant 0 : index
    %367 = vector.load %arg2[%366, %c0_174] : memref<48x16xf32, #tpu.memory_space<vmem>>, vector<8x16xf32>
    %cst_175 = arith.constant 1.000000e+00 : f32
    %368 = vector.broadcast %cst_175 : f32 to vector<8x16xf32>
    %369 = arith.subf %368, %367 : vector<8x16xf32>
    %cst_176 = arith.constant 1.000000e+30 : f32
    %370 = vector.broadcast %cst_176 : f32 to vector<8x16xf32>
    %371 = arith.mulf %369, %370 : vector<8x16xf32>
    %372 = vector.shape_cast %365 : vector<8x128xf32> to vector<8x1x128xf32>
    %373 = vector.shape_cast %371 : vector<8x16xf32> to vector<8x16x1xf32>
    %374 = vector.broadcast %372 : vector<8x1x128xf32> to vector<8x16x128xf32>
    %375 = vector.broadcast %373 : vector<8x16x1xf32> to vector<8x16x128xf32>
    %376 = arith.addf %374, %375 : vector<8x16x128xf32>
    %cst_177 = arith.constant dense<0x7F800000> : vector<16x128xf32>
    %377 = vector.multi_reduction <minimumf>, %376, %cst_177 [0] : vector<8x16x128xf32> to vector<16x128xf32>
    %378 = arith.minimumf %355, %377 : vector<16x128xf32>
    %379 = vector.shape_cast %365 : vector<8x128xf32> to vector<8x1x128xf32>
    %380 = vector.shape_cast %371 : vector<8x16xf32> to vector<8x16x1xf32>
    %381 = vector.broadcast %379 : vector<8x1x128xf32> to vector<8x16x128xf32>
    %382 = vector.broadcast %380 : vector<8x16x1xf32> to vector<8x16x128xf32>
    %383 = arith.subf %381, %382 : vector<8x16x128xf32>
    %cst_178 = arith.constant dense<0xFF800000> : vector<16x128xf32>
    %384 = vector.multi_reduction <maximumf>, %383, %cst_178 [0] : vector<8x16x128xf32> to vector<16x128xf32>
    %385 = arith.maximumf %362, %384 : vector<16x128xf32>
    %c4_i32_179 = arith.constant 4 : i32
    %c8_i32_180 = arith.constant 8 : i32
    %386 = arith.muli %c4_i32_179, %c8_i32_180 : i32
    %387 = arith.index_cast %386 : i32 to index
    %c0_181 = arith.constant 0 : index
    %388 = vector.load %arg33[%387, %c0_181] : memref<48x128xf32, #tpu.memory_space<vmem>>, vector<8x128xf32>
    %389 = arith.index_cast %386 : i32 to index
    %c0_182 = arith.constant 0 : index
    %390 = vector.load %arg2[%389, %c0_182] : memref<48x16xf32, #tpu.memory_space<vmem>>, vector<8x16xf32>
    %cst_183 = arith.constant 1.000000e+00 : f32
    %391 = vector.broadcast %cst_183 : f32 to vector<8x16xf32>
    %392 = arith.subf %391, %390 : vector<8x16xf32>
    %cst_184 = arith.constant 1.000000e+30 : f32
    %393 = vector.broadcast %cst_184 : f32 to vector<8x16xf32>
    %394 = arith.mulf %392, %393 : vector<8x16xf32>
    %395 = vector.shape_cast %388 : vector<8x128xf32> to vector<8x1x128xf32>
    %396 = vector.shape_cast %394 : vector<8x16xf32> to vector<8x16x1xf32>
    %397 = vector.broadcast %395 : vector<8x1x128xf32> to vector<8x16x128xf32>
    %398 = vector.broadcast %396 : vector<8x16x1xf32> to vector<8x16x128xf32>
    %399 = arith.addf %397, %398 : vector<8x16x128xf32>
    %cst_185 = arith.constant dense<0x7F800000> : vector<16x128xf32>
    %400 = vector.multi_reduction <minimumf>, %399, %cst_185 [0] : vector<8x16x128xf32> to vector<16x128xf32>
    %401 = arith.minimumf %378, %400 : vector<16x128xf32>
    %402 = vector.shape_cast %388 : vector<8x128xf32> to vector<8x1x128xf32>
    %403 = vector.shape_cast %394 : vector<8x16xf32> to vector<8x16x1xf32>
    %404 = vector.broadcast %402 : vector<8x1x128xf32> to vector<8x16x128xf32>
    %405 = vector.broadcast %403 : vector<8x16x1xf32> to vector<8x16x128xf32>
    %406 = arith.subf %404, %405 : vector<8x16x128xf32>
    %cst_186 = arith.constant dense<0xFF800000> : vector<16x128xf32>
    %407 = vector.multi_reduction <maximumf>, %406, %cst_186 [0] : vector<8x16x128xf32> to vector<16x128xf32>
    %408 = arith.maximumf %385, %407 : vector<16x128xf32>
    %c5_i32_187 = arith.constant 5 : i32
    %c8_i32_188 = arith.constant 8 : i32
    %409 = arith.muli %c5_i32_187, %c8_i32_188 : i32
    %410 = arith.index_cast %409 : i32 to index
    %c0_189 = arith.constant 0 : index
    %411 = vector.load %arg33[%410, %c0_189] : memref<48x128xf32, #tpu.memory_space<vmem>>, vector<8x128xf32>
    %412 = arith.index_cast %409 : i32 to index
    %c0_190 = arith.constant 0 : index
    %413 = vector.load %arg2[%412, %c0_190] : memref<48x16xf32, #tpu.memory_space<vmem>>, vector<8x16xf32>
    %cst_191 = arith.constant 1.000000e+00 : f32
    %414 = vector.broadcast %cst_191 : f32 to vector<8x16xf32>
    %415 = arith.subf %414, %413 : vector<8x16xf32>
    %cst_192 = arith.constant 1.000000e+30 : f32
    %416 = vector.broadcast %cst_192 : f32 to vector<8x16xf32>
    %417 = arith.mulf %415, %416 : vector<8x16xf32>
    %418 = vector.shape_cast %411 : vector<8x128xf32> to vector<8x1x128xf32>
    %419 = vector.shape_cast %417 : vector<8x16xf32> to vector<8x16x1xf32>
    %420 = vector.broadcast %418 : vector<8x1x128xf32> to vector<8x16x128xf32>
    %421 = vector.broadcast %419 : vector<8x16x1xf32> to vector<8x16x128xf32>
    %422 = arith.addf %420, %421 : vector<8x16x128xf32>
    %cst_193 = arith.constant dense<0x7F800000> : vector<16x128xf32>
    %423 = vector.multi_reduction <minimumf>, %422, %cst_193 [0] : vector<8x16x128xf32> to vector<16x128xf32>
    %424 = arith.minimumf %401, %423 : vector<16x128xf32>
    %425 = vector.shape_cast %411 : vector<8x128xf32> to vector<8x1x128xf32>
    %426 = vector.shape_cast %417 : vector<8x16xf32> to vector<8x16x1xf32>
    %427 = vector.broadcast %425 : vector<8x1x128xf32> to vector<8x16x128xf32>
    %428 = vector.broadcast %426 : vector<8x16x1xf32> to vector<8x16x128xf32>
    %429 = arith.subf %427, %428 : vector<8x16x128xf32>
    %cst_194 = arith.constant dense<0xFF800000> : vector<16x128xf32>
    %430 = vector.multi_reduction <maximumf>, %429, %cst_194 [0] : vector<8x16x128xf32> to vector<16x128xf32>
    %431 = arith.maximumf %408, %430 : vector<16x128xf32>
    %c6_i32_195 = arith.constant 6 : i32
    %cst_196 = arith.constant 0.000000e+00 : f32
    %432 = vector.shape_cast %17 : vector<16x1xi1> to vector<16x1xi1>
    %433 = vector.broadcast %432 : vector<16x1xi1> to vector<16x128xi1>
    %434 = vector.broadcast %cst_196 : f32 to vector<16x128xf32>
    %435 = arith.select %433, %424, %434 : vector<16x128xi1>, vector<16x128xf32>
    %cst_197 = arith.constant 0.000000e+00 : f32
    %436 = vector.shape_cast %17 : vector<16x1xi1> to vector<16x1xi1>
    %437 = vector.broadcast %436 : vector<16x1xi1> to vector<16x128xi1>
    %438 = vector.broadcast %cst_197 : f32 to vector<16x128xf32>
    %439 = arith.select %437, %431, %438 : vector<16x128xi1>, vector<16x128xf32>
    %cst_198 = arith.constant 0.000000e+00 : f32
    %440 = vector.broadcast %cst_198 : f32 to vector<16x32xf32>
    %cst_199 = arith.constant 0.000000e+00 : f32
    %441 = vector.broadcast %cst_199 : f32 to vector<16x32xf32>
    %cst_200 = arith.constant 0.000000e+00 : f32
    %442 = vector.broadcast %cst_200 : f32 to vector<16x32xf32>
    %c0_201 = arith.constant 0 : index
    %c0_202 = arith.constant 0 : index
    %c0_203 = arith.constant 0 : index
    %443 = vector.load %arg19[%c0_201, %c0_202, %c0_203] : memref<12x128x32xf32, #tpu.memory_space<vmem>>, vector<1x128x32xf32>
    %444 = vector.shape_cast %443 : vector<1x128x32xf32> to vector<128x32xf32>
    %cst_204 = arith.constant dense<0.000000e+00> : vector<16x32xf32>
    %445 = tpu.matmul %281, %444, %cst_204 {dimension_numbers = #tpu.dot_dimension_numbers<[1], [0], [0], [1], [0, 0, 1, 1], [], []>} : vector<16x128xf32>, vector<128x32xf32>, vector<16x32xf32> -> vector<16x32xf32>
    %446 = arith.addf %440, %445 : vector<16x32xf32>
    %c1_205 = arith.constant 1 : index
    %c0_206 = arith.constant 0 : index
    %c0_207 = arith.constant 0 : index
    %447 = vector.load %arg19[%c1_205, %c0_206, %c0_207] : memref<12x128x32xf32, #tpu.memory_space<vmem>>, vector<1x128x32xf32>
    %448 = vector.shape_cast %447 : vector<1x128x32xf32> to vector<128x32xf32>
    %cst_208 = arith.constant dense<0.000000e+00> : vector<16x32xf32>
    %449 = tpu.matmul %281, %448, %cst_208 {dimension_numbers = #tpu.dot_dimension_numbers<[1], [0], [0], [1], [0, 0, 1, 1], [], []>} : vector<16x128xf32>, vector<128x32xf32>, vector<16x32xf32> -> vector<16x32xf32>
    %450 = arith.addf %441, %449 : vector<16x32xf32>
    %c2_209 = arith.constant 2 : index
    %c0_210 = arith.constant 0 : index
    %c0_211 = arith.constant 0 : index
    %451 = vector.load %arg19[%c2_209, %c0_210, %c0_211] : memref<12x128x32xf32, #tpu.memory_space<vmem>>, vector<1x128x32xf32>
    %452 = vector.shape_cast %451 : vector<1x128x32xf32> to vector<128x32xf32>
    %cst_212 = arith.constant dense<0.000000e+00> : vector<16x32xf32>
    %453 = tpu.matmul %281, %452, %cst_212 {dimension_numbers = #tpu.dot_dimension_numbers<[1], [0], [0], [1], [0, 0, 1, 1], [], []>} : vector<16x128xf32>, vector<128x32xf32>, vector<16x32xf32> -> vector<16x32xf32>
    %454 = arith.addf %442, %453 : vector<16x32xf32>
    %c3_213 = arith.constant 3 : index
    %c0_214 = arith.constant 0 : index
    %c0_215 = arith.constant 0 : index
    %455 = vector.load %arg19[%c3_213, %c0_214, %c0_215] : memref<12x128x32xf32, #tpu.memory_space<vmem>>, vector<1x128x32xf32>
    %456 = vector.shape_cast %455 : vector<1x128x32xf32> to vector<128x32xf32>
    %cst_216 = arith.constant dense<0.000000e+00> : vector<16x32xf32>
    %457 = tpu.matmul %435, %456, %cst_216 {dimension_numbers = #tpu.dot_dimension_numbers<[1], [0], [0], [1], [0, 0, 1, 1], [], []>} : vector<16x128xf32>, vector<128x32xf32>, vector<16x32xf32> -> vector<16x32xf32>
    %458 = arith.addf %446, %457 : vector<16x32xf32>
    %c4_217 = arith.constant 4 : index
    %c0_218 = arith.constant 0 : index
    %c0_219 = arith.constant 0 : index
    %459 = vector.load %arg19[%c4_217, %c0_218, %c0_219] : memref<12x128x32xf32, #tpu.memory_space<vmem>>, vector<1x128x32xf32>
    %460 = vector.shape_cast %459 : vector<1x128x32xf32> to vector<128x32xf32>
    %cst_220 = arith.constant dense<0.000000e+00> : vector<16x32xf32>
    %461 = tpu.matmul %435, %460, %cst_220 {dimension_numbers = #tpu.dot_dimension_numbers<[1], [0], [0], [1], [0, 0, 1, 1], [], []>} : vector<16x128xf32>, vector<128x32xf32>, vector<16x32xf32> -> vector<16x32xf32>
    %462 = arith.addf %450, %461 : vector<16x32xf32>
    %c5_221 = arith.constant 5 : index
    %c0_222 = arith.constant 0 : index
    %c0_223 = arith.constant 0 : index
    %463 = vector.load %arg19[%c5_221, %c0_222, %c0_223] : memref<12x128x32xf32, #tpu.memory_space<vmem>>, vector<1x128x32xf32>
    %464 = vector.shape_cast %463 : vector<1x128x32xf32> to vector<128x32xf32>
    %cst_224 = arith.constant dense<0.000000e+00> : vector<16x32xf32>
    %465 = tpu.matmul %435, %464, %cst_224 {dimension_numbers = #tpu.dot_dimension_numbers<[1], [0], [0], [1], [0, 0, 1, 1], [], []>} : vector<16x128xf32>, vector<128x32xf32>, vector<16x32xf32> -> vector<16x32xf32>
    %466 = arith.addf %454, %465 : vector<16x32xf32>
    %c6_225 = arith.constant 6 : index
    %c0_226 = arith.constant 0 : index
    %c0_227 = arith.constant 0 : index
    %467 = vector.load %arg19[%c6_225, %c0_226, %c0_227] : memref<12x128x32xf32, #tpu.memory_space<vmem>>, vector<1x128x32xf32>
    %468 = vector.shape_cast %467 : vector<1x128x32xf32> to vector<128x32xf32>
    %cst_228 = arith.constant dense<0.000000e+00> : vector<16x32xf32>
    %469 = tpu.matmul %439, %468, %cst_228 {dimension_numbers = #tpu.dot_dimension_numbers<[1], [0], [0], [1], [0, 0, 1, 1], [], []>} : vector<16x128xf32>, vector<128x32xf32>, vector<16x32xf32> -> vector<16x32xf32>
    %470 = arith.addf %458, %469 : vector<16x32xf32>
    %c7_229 = arith.constant 7 : index
    %c0_230 = arith.constant 0 : index
    %c0_231 = arith.constant 0 : index
    %471 = vector.load %arg19[%c7_229, %c0_230, %c0_231] : memref<12x128x32xf32, #tpu.memory_space<vmem>>, vector<1x128x32xf32>
    %472 = vector.shape_cast %471 : vector<1x128x32xf32> to vector<128x32xf32>
    %cst_232 = arith.constant dense<0.000000e+00> : vector<16x32xf32>
    %473 = tpu.matmul %439, %472, %cst_232 {dimension_numbers = #tpu.dot_dimension_numbers<[1], [0], [0], [1], [0, 0, 1, 1], [], []>} : vector<16x128xf32>, vector<128x32xf32>, vector<16x32xf32> -> vector<16x32xf32>
    %474 = arith.addf %462, %473 : vector<16x32xf32>
    %c8_233 = arith.constant 8 : index
    %c0_234 = arith.constant 0 : index
    %c0_235 = arith.constant 0 : index
    %475 = vector.load %arg19[%c8_233, %c0_234, %c0_235] : memref<12x128x32xf32, #tpu.memory_space<vmem>>, vector<1x128x32xf32>
    %476 = vector.shape_cast %475 : vector<1x128x32xf32> to vector<128x32xf32>
    %cst_236 = arith.constant dense<0.000000e+00> : vector<16x32xf32>
    %477 = tpu.matmul %439, %476, %cst_236 {dimension_numbers = #tpu.dot_dimension_numbers<[1], [0], [0], [1], [0, 0, 1, 1], [], []>} : vector<16x128xf32>, vector<128x32xf32>, vector<16x32xf32> -> vector<16x32xf32>
    %478 = arith.addf %466, %477 : vector<16x32xf32>
    %c9_237 = arith.constant 9 : index
    %c0_238 = arith.constant 0 : index
    %c0_239 = arith.constant 0 : index
    %479 = vector.load %arg19[%c9_237, %c0_238, %c0_239] : memref<12x128x32xf32, #tpu.memory_space<vmem>>, vector<1x128x32xf32>
    %480 = vector.shape_cast %479 : vector<1x128x32xf32> to vector<128x32xf32>
    %cst_240 = arith.constant dense<0.000000e+00> : vector<16x32xf32>
    %481 = tpu.matmul %290, %480, %cst_240 {dimension_numbers = #tpu.dot_dimension_numbers<[1], [0], [0], [1], [0, 0, 1, 1], [], []>} : vector<16x128xf32>, vector<128x32xf32>, vector<16x32xf32> -> vector<16x32xf32>
    %482 = arith.addf %470, %481 : vector<16x32xf32>
    %c10_241 = arith.constant 10 : index
    %c0_242 = arith.constant 0 : index
    %c0_243 = arith.constant 0 : index
    %483 = vector.load %arg19[%c10_241, %c0_242, %c0_243] : memref<12x128x32xf32, #tpu.memory_space<vmem>>, vector<1x128x32xf32>
    %484 = vector.shape_cast %483 : vector<1x128x32xf32> to vector<128x32xf32>
    %cst_244 = arith.constant dense<0.000000e+00> : vector<16x32xf32>
    %485 = tpu.matmul %290, %484, %cst_244 {dimension_numbers = #tpu.dot_dimension_numbers<[1], [0], [0], [1], [0, 0, 1, 1], [], []>} : vector<16x128xf32>, vector<128x32xf32>, vector<16x32xf32> -> vector<16x32xf32>
    %486 = arith.addf %474, %485 : vector<16x32xf32>
    %c11_245 = arith.constant 11 : index
    %c0_246 = arith.constant 0 : index
    %c0_247 = arith.constant 0 : index
    %487 = vector.load %arg19[%c11_245, %c0_246, %c0_247] : memref<12x128x32xf32, #tpu.memory_space<vmem>>, vector<1x128x32xf32>
    %488 = vector.shape_cast %487 : vector<1x128x32xf32> to vector<128x32xf32>
    %cst_248 = arith.constant dense<0.000000e+00> : vector<16x32xf32>
    %489 = tpu.matmul %290, %488, %cst_248 {dimension_numbers = #tpu.dot_dimension_numbers<[1], [0], [0], [1], [0, 0, 1, 1], [], []>} : vector<16x128xf32>, vector<128x32xf32>, vector<16x32xf32> -> vector<16x32xf32>
    %490 = arith.addf %478, %489 : vector<16x32xf32>
    %c0_249 = arith.constant 0 : index
    %c0_250 = arith.constant 0 : index
    %491 = vector.load %arg18[%c0_249, %c0_250] : memref<32x32xf32, #tpu.memory_space<vmem>>, vector<32x32xf32>
    %cst_251 = arith.constant dense<0.000000e+00> : vector<16x32xf32>
    %492 = tpu.matmul %266, %491, %cst_251 {dimension_numbers = #tpu.dot_dimension_numbers<[1], [0], [0], [1], [0, 0, 1, 1], [], []>} : vector<16x32xf32>, vector<32x32xf32>, vector<16x32xf32> -> vector<16x32xf32>
    %493 = arith.addf %492, %482 : vector<16x32xf32>
    %494 = vector.broadcast %12 : vector<16x1xf32> to vector<16x32xf32>
    %495 = arith.mulf %494, %486 : vector<16x32xf32>
    %496 = arith.addf %493, %495 : vector<16x32xf32>
    %497 = vector.broadcast %15 : vector<16x1xf32> to vector<16x32xf32>
    %498 = arith.mulf %497, %490 : vector<16x32xf32>
    %499 = arith.addf %496, %498 : vector<16x32xf32>
    %c0_252 = arith.constant 0 : index
    %c0_253 = arith.constant 0 : index
    %500 = vector.load %arg20[%c0_252, %c0_253] : memref<1x32xf32, #tpu.memory_space<vmem>>, vector<1x32xf32>
    %501 = vector.broadcast %500 : vector<1x32xf32> to vector<16x32xf32>
    %502 = arith.addf %499, %501 : vector<16x32xf32>
    %c0_254 = arith.constant 0 : index
    %c0_255 = arith.constant 0 : index
    %503 = vector.load %arg21[%c0_254, %c0_255] : memref<32x32xf32, #tpu.memory_space<vmem>>, vector<32x32xf32>
    %cst_256 = arith.constant dense<0.000000e+00> : vector<16x32xf32>
    %504 = tpu.matmul %502, %503, %cst_256 {dimension_numbers = #tpu.dot_dimension_numbers<[1], [0], [0], [1], [0, 0, 1, 1], [], []>} : vector<16x32xf32>, vector<32x32xf32>, vector<16x32xf32> -> vector<16x32xf32>
    %c0_257 = arith.constant 0 : index
    %c0_258 = arith.constant 0 : index
    %505 = vector.load %arg22[%c0_257, %c0_258] : memref<1x32xf32, #tpu.memory_space<vmem>>, vector<1x32xf32>
    %506 = vector.broadcast %505 : vector<1x32xf32> to vector<16x32xf32>
    %507 = arith.addf %504, %506 : vector<16x32xf32>
    %c0_259 = arith.constant 0 : index
    %c0_260 = arith.constant 0 : index
    %508 = vector.load %arg23[%c0_259, %c0_260] : memref<1x32xf32, #tpu.memory_space<vmem>>, vector<1x32xf32>
    %509 = vector.broadcast %508 : vector<1x32xf32> to vector<16x32xf32>
    %510 = arith.mulf %507, %509 : vector<16x32xf32>
    %c0_261 = arith.constant 0 : index
    %c0_262 = arith.constant 0 : index
    %511 = vector.load %arg24[%c0_261, %c0_262] : memref<1x32xf32, #tpu.memory_space<vmem>>, vector<1x32xf32>
    %512 = vector.broadcast %511 : vector<1x32xf32> to vector<16x32xf32>
    %513 = arith.addf %510, %512 : vector<16x32xf32>
    %cst_263 = arith.constant 0.000000e+00 : f32
    %514 = vector.broadcast %cst_263 : f32 to vector<16x32xf32>
    %515 = arith.maximumf %513, %514 : vector<16x32xf32>
    %c0_264 = arith.constant 0 : index
    %c0_265 = arith.constant 0 : index
    %516 = vector.load %arg25[%c0_264, %c0_265] : memref<32x21xf32, #tpu.memory_space<vmem>>, vector<32x21xf32>
    %cst_266 = arith.constant dense<0.000000e+00> : vector<16x21xf32>
    %517 = tpu.matmul %515, %516, %cst_266 {dimension_numbers = #tpu.dot_dimension_numbers<[1], [0], [0], [1], [0, 0, 1, 1], [], []>} : vector<16x32xf32>, vector<32x21xf32>, vector<16x21xf32> -> vector<16x21xf32>
    %c0_267 = arith.constant 0 : index
    %c0_268 = arith.constant 0 : index
    %518 = vector.load %arg26[%c0_267, %c0_268] : memref<1x21xf32, #tpu.memory_space<vmem>>, vector<1x21xf32>
    %519 = vector.broadcast %518 : vector<1x21xf32> to vector<16x21xf32>
    %520 = arith.addf %517, %519 : vector<16x21xf32>
    %cst_269 = arith.constant 0.000000e+00 : f32
    %521 = vector.broadcast %cst_269 : f32 to vector<16x21xf32>
    %522 = arith.maximumf %520, %521 : vector<16x21xf32>
    %c0_270 = arith.constant 0 : index
    %c0_271 = arith.constant 0 : index
    %523 = vector.load %arg27[%c0_270, %c0_271] : memref<21x10xf32, #tpu.memory_space<vmem>>, vector<21x10xf32>
    %cst_272 = arith.constant dense<0.000000e+00> : vector<16x10xf32>
    %524 = tpu.matmul %522, %523, %cst_272 {dimension_numbers = #tpu.dot_dimension_numbers<[1], [0], [0], [1], [0, 0, 1, 1], [], []>} : vector<16x21xf32>, vector<21x10xf32>, vector<16x10xf32> -> vector<16x10xf32>
    %c0_273 = arith.constant 0 : index
    %c0_274 = arith.constant 0 : index
    %525 = vector.load %arg28[%c0_273, %c0_274] : memref<1x10xf32, #tpu.memory_space<vmem>>, vector<1x10xf32>
    %526 = vector.broadcast %525 : vector<1x10xf32> to vector<16x10xf32>
    %527 = arith.addf %524, %526 : vector<16x10xf32>
    %cst_275 = arith.constant 0.000000e+00 : f32
    %528 = vector.broadcast %cst_275 : f32 to vector<16x10xf32>
    %529 = arith.maximumf %527, %528 : vector<16x10xf32>
    %c0_276 = arith.constant 0 : index
    %c0_277 = arith.constant 0 : index
    %530 = vector.load %arg29[%c0_276, %c0_277] : memref<10x4xf32, #tpu.memory_space<vmem>>, vector<10x4xf32>
    %cst_278 = arith.constant dense<0.000000e+00> : vector<16x4xf32>
    %531 = tpu.matmul %529, %530, %cst_278 {dimension_numbers = #tpu.dot_dimension_numbers<[1], [0], [0], [1], [0, 0, 1, 1], [], []>} : vector<16x10xf32>, vector<10x4xf32>, vector<16x4xf32> -> vector<16x4xf32>
    %c0_279 = arith.constant 0 : index
    %c0_280 = arith.constant 0 : index
    %532 = vector.load %arg30[%c0_279, %c0_280] : memref<1x4xf32, #tpu.memory_space<vmem>>, vector<1x4xf32>
    %533 = vector.broadcast %532 : vector<1x4xf32> to vector<16x4xf32>
    %534 = arith.addf %531, %533 : vector<16x4xf32>
    %cst_281 = arith.constant dense<0xFF800000> : vector<16xf32>
    %535 = vector.multi_reduction <maximumf>, %534, %cst_281 [1] : vector<16x4xf32> to vector<16xf32>
    %536 = vector.shape_cast %535 : vector<16xf32> to vector<16x1xf32>
    %537 = vector.broadcast %536 : vector<16x1xf32> to vector<16x4xf32>
    %538 = arith.subf %534, %537 : vector<16x4xf32>
    %539 = math.exp %538 : vector<16x4xf32>
    %cst_282 = arith.constant dense<0.000000e+00> : vector<16xf32>
    %540 = vector.multi_reduction <add>, %539, %cst_282 [1] : vector<16x4xf32> to vector<16xf32>
    %541 = vector.shape_cast %540 : vector<16xf32> to vector<16x1xf32>
    %542 = math.log %541 : vector<16x1xf32>
    %543 = arith.addf %542, %536 : vector<16x1xf32>
    %544 = vector.broadcast %543 : vector<16x1xf32> to vector<16x4xf32>
    %545 = arith.subf %534, %544 : vector<16x4xf32>
    %c0_283 = arith.constant 0 : index
    %c0_284 = arith.constant 0 : index
    %546 = vector.load %arg31[%c0_283, %c0_284] : memref<16x4xf32, #tpu.memory_space<vmem>>, vector<16x4xf32>
    tpu.vector_store %arg31[%c0_283, %c0_284], %545 {strides = array<i32>} : memref<16x4xf32, #tpu.memory_space<vmem>>, vector<16x4xf32>,
    return
  }
}

</mosaic_0001>

<llo_original>
// kernel: tpu_custom_call.1
$region0: #{tpu_custom_call.1}
  #allocation0 [shape = 'u32[]', space=smem, size = 0x4, offset = 0x4, fixed_abs, tag = 'smem constant byte address 0x4 - core index']
  #allocation1 [shape = 'u32[72,128]{1,0:T(1,128)}', space=vmem, size = 0x9000, scoped, tag = 'internal scratch']
  #allocation2 [shape = 'f32[48,32]{1,0:T(8,128)}', space=vmem, size = 0x6000, scoped, tag = 'scratch operand']
  #allocation3 [shape = 'f32[48,128]{1,0:T(8,128)}', space=vmem, size = 0x6000, scoped, tag = 'scratch operand']
  %s0 = inlined_call_operand.smem [shape: u32[32], index: -1, kind: input, shape index: {}]
  %s1 = sld [smem:[%s0]]
  %s2 = scalar_lea.smem %s0, 1
  %s3 = sld [smem:[%s2]]
  %s4 = scalar_lea.smem %s0, 2
  %s5 = sld [smem:[%s4]]
  %s6 = scalar_lea.smem %s0, 3
  %s7 = sld [smem:[%s6]]
  %s8 = scalar_lea.smem %s0, 4
  %s9 = sld [smem:[%s8]]
  %s10 = scalar_lea.smem %s0, 5
  %s11 = sld [smem:[%s10]]
  %s12 = scalar_lea.smem %s0, 6
  %s13 = sld [smem:[%s12]]
  %s14 = scalar_lea.smem %s0, 7
  %s15 = sld [smem:[%s14]]
  %s16 = scalar_lea.smem %s0, 8
  %s17 = sld [smem:[%s16]]
  %s18 = scalar_lea.smem %s0, 9
  %s19 = sld [smem:[%s18]]
  %s20 = scalar_lea.smem %s0, 10
  %s21 = sld [smem:[%s20]]
  %s22 = scalar_lea.smem %s0, 11
  %s23 = sld [smem:[%s22]]
  %s24 = scalar_lea.smem %s0, 12
  %s25 = sld [smem:[%s24]]
  %s26 = scalar_lea.smem %s0, 13
  %s27 = sld [smem:[%s26]]
  %s28 = scalar_lea.smem %s0, 14
  %s29 = sld [smem:[%s28]]
  %s30 = scalar_lea.smem %s0, 15
  %s31 = sld [smem:[%s30]]
  %s32 = scalar_lea.smem %s0, 16
  %s33 = sld [smem:[%s32]]
  %s34 = scalar_lea.smem %s0, 17
  %s35 = sld [smem:[%s34]]
  %s36 = scalar_lea.smem %s0, 18
  %s37 = sld [smem:[%s36]]
  %s38 = scalar_lea.smem %s0, 19
  %s39 = sld [smem:[%s38]]
  %s40 = scalar_lea.smem %s0, 20
  %s41 = sld [smem:[%s40]]
  %s42 = scalar_lea.smem %s0, 21
  %s43 = sld [smem:[%s42]]
  %s44 = scalar_lea.smem %s0, 22
  %s45 = sld [smem:[%s44]]
  %s46 = scalar_lea.smem %s0, 23
  %s47 = sld [smem:[%s46]]
  %s48 = scalar_lea.smem %s0, 24
  %s49 = sld [smem:[%s48]]
  %s50 = scalar_lea.smem %s0, 25
  %s51 = sld [smem:[%s50]]
  %s52 = scalar_lea.smem %s0, 26
  %s53 = sld [smem:[%s52]]
  %s54 = scalar_lea.smem %s0, 27
  %s55 = sld [smem:[%s54]]
  %s56 = scalar_lea.smem %s0, 28
  %s57 = sld [smem:[%s56]]
  %s58 = scalar_lea.smem %s0, 29
  %s59 = sld [smem:[%s58]]
  %s60 = scalar_lea.smem %s0, 30
  %s61 = sld [smem:[%s60]]
  %s62 = scalar_lea.smem %s0, 31
  %s63 = sld [smem:[%s62]]
  %s64 = sld [smem:[#allocation0]]
  $region134: #{tpu_custom_call.1} parent=0
    _
  %s66 = ssub.s32 1, %s64
  %s67 = scalar_select 0, %s66, %s64
  // Predicated region
  $region2: #{tpu_custom_call.1} parent=0 // pred_check
    _
  $region3: #{tpu_custom_call.1} parent=0 // pred_check_branch
    %69 = sbr.rel (0) target = $region5
  $region4: #{tpu_custom_call.1} parent=0 // pred_region
    _
  $region5: #{tpu_custom_call.1} parent=0 // pred_fallthru
    _
  // Predicated region
  $region6: #{tpu_custom_call.1} parent=0 // pred_check
    _
  $region7: #{tpu_custom_call.1} parent=0 // pred_check_branch
    %71 = sbr.rel (0) target = $region9
  $region8: #{tpu_custom_call.1} parent=0 // pred_region
    _
  $region9: #{tpu_custom_call.1} parent=0 // pred_fallthru
    _
  // Predicated region
  $region10: #{tpu_custom_call.1} parent=0 // pred_check
    _
  $region11: #{tpu_custom_call.1} parent=0 // pred_check_branch
    %73 = sbr.rel (0) target = $region13
  $region12: #{tpu_custom_call.1} parent=0 // pred_region
    _
  $region13: #{tpu_custom_call.1} parent=0 // pred_fallthru
    _
  // Predicated region
  $region14: #{tpu_custom_call.1} parent=0 // pred_check
    _
  $region15: #{tpu_custom_call.1} parent=0 // pred_check_branch
    %75 = sbr.rel (0) target = $region17
  $region16: #{tpu_custom_call.1} parent=0 // pred_region
    _
  $region17: #{tpu_custom_call.1} parent=0 // pred_fallthru
    _
  // Predicated region
  $region18: #{tpu_custom_call.1} parent=0 // pred_check
    _
  $region19: #{tpu_custom_call.1} parent=0 // pred_check_branch
    %77 = sbr.rel (0) target = $region21
  $region20: #{tpu_custom_call.1} parent=0 // pred_region
    _
  $region21: #{tpu_custom_call.1} parent=0 // pred_fallthru
    _
  // Predicated region
  $region22: #{tpu_custom_call.1} parent=0 // pred_check
    _
  $region23: #{tpu_custom_call.1} parent=0 // pred_check_branch
    %79 = sbr.rel (0) target = $region25
  $region24: #{tpu_custom_call.1} parent=0 // pred_region
    _
  $region25: #{tpu_custom_call.1} parent=0 // pred_fallthru
    _
  // Predicated region
  $region26: #{tpu_custom_call.1} parent=0 // pred_check
    _
  $region27: #{tpu_custom_call.1} parent=0 // pred_check_branch
    %81 = sbr.rel (0) target = $region29
  $region28: #{tpu_custom_call.1} parent=0 // pred_region
    _
  $region29: #{tpu_custom_call.1} parent=0 // pred_fallthru
    _
  // Predicated region
  $region30: #{tpu_custom_call.1} parent=0 // pred_check
    _
  $region31: #{tpu_custom_call.1} parent=0 // pred_check_branch
    %83 = sbr.rel (0) target = $region33
  $region32: #{tpu_custom_call.1} parent=0 // pred_region
    _
  $region33: #{tpu_custom_call.1} parent=0 // pred_fallthru
    _
  // Predicated region
  $region34: #{tpu_custom_call.1} parent=0 // pred_check
    _
  $region35: #{tpu_custom_call.1} parent=0 // pred_check_branch
    %85 = sbr.rel (0) target = $region37
  $region36: #{tpu_custom_call.1} parent=0 // pred_region
    _
  $region37: #{tpu_custom_call.1} parent=0 // pred_fallthru
    _
  // Predicated region
  $region38: #{tpu_custom_call.1} parent=0 // pred_check
    _
  $region39: #{tpu_custom_call.1} parent=0 // pred_check_branch
    %87 = sbr.rel (0) target = $region41
  $region40: #{tpu_custom_call.1} parent=0 // pred_region
    _
  $region41: #{tpu_custom_call.1} parent=0 // pred_fallthru
    _
  // Predicated region
  $region42: #{tpu_custom_call.1} parent=0 // pred_check
    _
  $region43: #{tpu_custom_call.1} parent=0 // pred_check_branch
    %89 = sbr.rel (0) target = $region45
  $region44: #{tpu_custom_call.1} parent=0 // pred_region
    _
  $region45: #{tpu_custom_call.1} parent=0 // pred_fallthru
    _
  // Predicated region
  $region46: #{tpu_custom_call.1} parent=0 // pred_check
    _
  $region47: #{tpu_custom_call.1} parent=0 // pred_check_branch
    %91 = sbr.rel (0) target = $region49
  $region48: #{tpu_custom_call.1} parent=0 // pred_region
    _
  $region49: #{tpu_custom_call.1} parent=0 // pred_fallthru
    _
  // Predicated region
  $region50: #{tpu_custom_call.1} parent=0 // pred_check
    _
  $region51: #{tpu_custom_call.1} parent=0 // pred_check_branch
    %93 = sbr.rel (0) target = $region53
  $region52: #{tpu_custom_call.1} parent=0 // pred_region
    _
  $region53: #{tpu_custom_call.1} parent=0 // pred_fallthru
    _
  // Predicated region
  $region54: #{tpu_custom_call.1} parent=0 // pred_check
    _
  $region55: #{tpu_custom_call.1} parent=0 // pred_check_branch
    %95 = sbr.rel (0) target = $region57
  $region56: #{tpu_custom_call.1} parent=0 // pred_region
    _
  $region57: #{tpu_custom_call.1} parent=0 // pred_fallthru
    _
  // Predicated region
  $region58: #{tpu_custom_call.1} parent=0 // pred_check
    _
  $region59: #{tpu_custom_call.1} parent=0 // pred_check_branch
    %97 = sbr.rel (0) target = $region61
  $region60: #{tpu_custom_call.1} parent=0 // pred_region
    _
  $region61: #{tpu_custom_call.1} parent=0 // pred_fallthru
    _
  // Predicated region
  $region62: #{tpu_custom_call.1} parent=0 // pred_check
    _
  $region63: #{tpu_custom_call.1} parent=0 // pred_check_branch
    %99 = sbr.rel (0) target = $region65
  $region64: #{tpu_custom_call.1} parent=0 // pred_region
    _
  $region65: #{tpu_custom_call.1} parent=0 // pred_fallthru
    _
  // Predicated region
  $region66: #{tpu_custom_call.1} parent=0 // pred_check
    _
  $region67: #{tpu_custom_call.1} parent=0 // pred_check_branch
    %101 = sbr.rel (0) target = $region69
  $region68: #{tpu_custom_call.1} parent=0 // pred_region
    _
  $region69: #{tpu_custom_call.1} parent=0 // pred_fallthru
    _
  // Predicated region
  $region70: #{tpu_custom_call.1} parent=0 // pred_check
    _
  $region71: #{tpu_custom_call.1} parent=0 // pred_check_branch
    %103 = sbr.rel (0) target = $region73
  $region72: #{tpu_custom_call.1} parent=0 // pred_region
    _
  $region73: #{tpu_custom_call.1} parent=0 // pred_fallthru
    _
  // Predicated region
  $region74: #{tpu_custom_call.1} parent=0 // pred_check
    _
  $region75: #{tpu_custom_call.1} parent=0 // pred_check_branch
    %105 = sbr.rel (0) target = $region77
  $region76: #{tpu_custom_call.1} parent=0 // pred_region
    _
  $region77: #{tpu_custom_call.1} parent=0 // pred_fallthru
    _
  // Predicated region
  $region78: #{tpu_custom_call.1} parent=0 // pred_check
    _
  $region79: #{tpu_custom_call.1} parent=0 // pred_check_branch
    %107 = sbr.rel (0) target = $region81
  $region80: #{tpu_custom_call.1} parent=0 // pred_region
    _
  $region81: #{tpu_custom_call.1} parent=0 // pred_fallthru
    _
  // Predicated region
  $region82: #{tpu_custom_call.1} parent=0 // pred_check
    _
  $region83: #{tpu_custom_call.1} parent=0 // pred_check_branch
    %109 = sbr.rel (0) target = $region85
  $region84: #{tpu_custom_call.1} parent=0 // pred_region
    _
  $region85: #{tpu_custom_call.1} parent=0 // pred_fallthru
    _
  // Predicated region
  $region86: #{tpu_custom_call.1} parent=0 // pred_check
    _
  $region87: #{tpu_custom_call.1} parent=0 // pred_check_branch
    %111 = sbr.rel (0) target = $region89
  $region88: #{tpu_custom_call.1} parent=0 // pred_region
    _
  $region89: #{tpu_custom_call.1} parent=0 // pred_fallthru
    _
  // Predicated region
  $region90: #{tpu_custom_call.1} parent=0 // pred_check
    _
  $region91: #{tpu_custom_call.1} parent=0 // pred_check_branch
    %113 = sbr.rel (0) target = $region93
  $region92: #{tpu_custom_call.1} parent=0 // pred_region
    _
  $region93: #{tpu_custom_call.1} parent=0 // pred_fallthru
    _
  // Predicated region
  $region94: #{tpu_custom_call.1} parent=0 // pred_check
    _
  $region95: #{tpu_custom_call.1} parent=0 // pred_check_branch
    %115 = sbr.rel (0) target = $region97
  $region96: #{tpu_custom_call.1} parent=0 // pred_region
    _
  $region97: #{tpu_custom_call.1} parent=0 // pred_fallthru
    _
  // Predicated region
  $region98: #{tpu_custom_call.1} parent=0 // pred_check
    _
  $region99: #{tpu_custom_call.1} parent=0 // pred_check_branch
    %117 = sbr.rel (0) target = $region101
  $region100: #{tpu_custom_call.1} parent=0 // pred_region
    _
  $region101: #{tpu_custom_call.1} parent=0 // pred_fallthru
    _
  // Predicated region
  $region102: #{tpu_custom_call.1} parent=0 // pred_check
    _
  $region103: #{tpu_custom_call.1} parent=0 // pred_check_branch
    %119 = sbr.rel (0) target = $region105
  $region104: #{tpu_custom_call.1} parent=0 // pred_region
    _
  $region105: #{tpu_custom_call.1} parent=0 // pred_fallthru
    _
  // Predicated region
  $region106: #{tpu_custom_call.1} parent=0 // pred_check
    _
  $region107: #{tpu_custom_call.1} parent=0 // pred_check_branch
    %121 = sbr.rel (0) target = $region109
  $region108: #{tpu_custom_call.1} parent=0 // pred_region
    _
  $region109: #{tpu_custom_call.1} parent=0 // pred_fallthru
    _
  // Predicated region
  $region110: #{tpu_custom_call.1} parent=0 // pred_check
    _
  $region111: #{tpu_custom_call.1} parent=0 // pred_check_branch
    %123 = sbr.rel (0) target = $region113
  $region112: #{tpu_custom_call.1} parent=0 // pred_region
    _
  $region113: #{tpu_custom_call.1} parent=0 // pred_fallthru
    _
  // Predicated region
  $region114: #{tpu_custom_call.1} parent=0 // pred_check
    _
  $region115: #{tpu_custom_call.1} parent=0 // pred_check_branch
    %125 = sbr.rel (0) target = $region117
  $region116: #{tpu_custom_call.1} parent=0 // pred_region
    _
  $region117: #{tpu_custom_call.1} parent=0 // pred_fallthru
    _
  // Predicated region
  $region118: #{tpu_custom_call.1} parent=0 // pred_check
    _
  $region119: #{tpu_custom_call.1} parent=0 // pred_check_branch
    %127 = sbr.rel (0) target = $region121
  $region120: #{tpu_custom_call.1} parent=0 // pred_region
    _
  $region121: #{tpu_custom_call.1} parent=0 // pred_fallthru
    _
  // Predicated region
  $region122: #{tpu_custom_call.1} parent=0 // pred_check
    _
  $region123: #{tpu_custom_call.1} parent=0 // pred_check_branch
    %129 = sbr.rel (0) target = $region125
  $region124: #{tpu_custom_call.1} parent=0 // pred_region
    _
  $region125: #{tpu_custom_call.1} parent=0 // pred_fallthru
    _
  %v130 = vld [vmem:[%s1] sm:$0xff]
  %v131 = vld [vmem:[%s1 + $0x8] sm:$0xff]
  %v132 = vld [vmem:[%s3] sm:$0xff]
  %v133 = vld [vmem:[%s3 + $0x8] sm:$0xff]
  %v134 = vld [vmem:[%s5] sm:$0xff]
  %v135 = vld [vmem:[%s5 + $0x8] sm:$0xff]
  %v136 = vld [vmem:[%s5 + $0x10] sm:$0xff]
  %v137 = vld [vmem:[%s5 + $0x18] sm:$0xff]
  %v138 = vld [vmem:[%s5 + $0x20] sm:$0xff]
  %v139 = vld [vmem:[%s5 + $0x28] sm:$0xff]
  %v140 = vld [vmem:[%s7] sm:$0xff]
  %v141 = vld [vmem:[%s7 + $0x8] sm:$0xff]
  %v142 = vld [vmem:[%s7 + $0x10] sm:$0xff]
  %v143 = vld [vmem:[%s7 + $0x18] sm:$0xff]
  %v144 = vld [vmem:[%s7 + $0x20] sm:$0xff]
  %v145 = vld [vmem:[%s7 + $0x28] sm:$0xff]
  %v146 = vld [vmem:[%s9] sm:$0xff]
  %v147 = vld [vmem:[%s9 + $0x8] sm:$0xff]
  %v148 = vmax.f32 %v146, 1.0
  %v149 = vmax.f32 %v147, 1.0
  %v150 = vrcp.pop %v148
  %v151 = vrcp.pop %v149
  %v152 = vadd.f32 %v148, 1.0
  %v153 = vadd.f32 %v149, 1.0
  %v154 = vlog2.pop %v152
  %v155 = vmul.f32 %v154, 0.6931472
  %v156 = vlog2.pop %v153
  %v157 = vmul.f32 %v156, 0.6931472
  %v158 = vmul.f32 %v155, 0.7213474
  %v159 = vmul.f32 %v157, 0.7213474
  %v160 = vrcp.pop %v155
  %v161 = vrcp.pop %v157
  %v162 = vmul.f32 %v160, 1.3862946
  %v163 = vmul.f32 %v161, 1.3862946
  %vm164 = vcmp.gt.f32.partialorder %v146, 0.0
  %vm165 = vcmp.gt.f32.partialorder %v147, 0.0
  %v166 = vld [vmem:[%s11] sm:$0xff]
  %vm167 = vcmask 64512
  %v169 = vsel %vm167, %v130, 0
  %v172 = vsel %vm167, %v131, 0
  %174 = vmatpush.msra.mxu0 0.0
  %175 = vmatpush.msra.mxu0 0.0
  %176 = vmatpush.msra.mxu0 0.0
  %177 = vmatpush.msra.mxu0 0.0
  %178 = vmatpush.msra.mxu0 0.0
  %179 = vmatpush.msra.mxu0 0.0
  %180 = vmatpush.msra.mxu0 0.0
  %181 = vmatpush.msra.mxu0 0.0
  %182 = vmatpush.msra.mxu0 0.0
  %183 = vmatpush.msra.mxu0 0.0
  %184 = vmatpush.msra.mxu0 0.0
  %185 = vmatpush.msra.mxu0 0.0
  %186 = vmatpush.msra.mxu0 0.0
  %187 = vmatpush.msra.mxu0 0.0
  %188 = vmatpush.msra.mxu0 0.0
  %189 = vmatpush.msra.mxu0 %v166
  %190 = vmatmul.f32.gmra.mxu0 %v169
  %v191 = vpop.f32.mrf.mxu0
  %v192 = vadd.f32 0.0, %v191
  %193 = vmatmul.f32.gmra.mxu0 %v172
  %v194 = vpop.f32.mrf.mxu0
  %v195 = vadd.f32 0.0, %v194
  %196 = vdwg.mxu0
  %v197 = vld [vmem:[%s13] sm:$0xff]
  %198 = vmatpush.msra.mxu0 0.0
  %199 = vmatpush.msra.mxu0 0.0
  %200 = vmatpush.msra.mxu0 0.0
  %201 = vmatpush.msra.mxu0 0.0
  %202 = vmatpush.msra.mxu0 0.0
  %203 = vmatpush.msra.mxu0 0.0
  %204 = vmatpush.msra.mxu0 0.0
  %205 = vmatpush.msra.mxu0 0.0
  %206 = vmatpush.msra.mxu0 0.0
  %207 = vmatpush.msra.mxu0 0.0
  %208 = vmatpush.msra.mxu0 0.0
  %209 = vmatpush.msra.mxu0 0.0
  %210 = vmatpush.msra.mxu0 0.0
  %211 = vmatpush.msra.mxu0 0.0
  %212 = vmatpush.msra.mxu0 0.0
  %213 = vmatpush.msra.mxu0 %v197
  %214 = vmatmul.f32.gmra.mxu0 %v169
  %v215 = vpop.f32.mrf.mxu0
  %v216 = vadd.f32 0.0, %v215
  %217 = vmatmul.f32.gmra.mxu0 %v172
  %v218 = vpop.f32.mrf.mxu0
  %v219 = vadd.f32 0.0, %v218
  %220 = vdwg.mxu0
  %vm221 = vcmask 130048
  %v223 = vsel %vm221, %v140, 0
  %v226 = vsel %vm221, %v141, 0
  %v229 = vsel %vm221, %v142, 0
  %v232 = vsel %vm221, %v143, 0
  %v235 = vsel %vm221, %v144, 0
  %v238 = vsel %vm221, %v145, 0
  %240 = vmatpush.msra.mxu0 0.0
  %241 = vmatpush.msra.mxu0 0.0
  %242 = vmatpush.msra.mxu0 0.0
  %243 = vmatpush.msra.mxu0 0.0
  %244 = vmatpush.msra.mxu0 0.0
  %245 = vmatpush.msra.mxu0 0.0
  %246 = vmatpush.msra.mxu0 0.0
  %247 = vmatpush.msra.mxu0 0.0
  %248 = vmatpush.msra.mxu0 0.0
  %249 = vmatpush.msra.mxu0 0.0
  %250 = vmatpush.msra.mxu0 0.0
  %251 = vmatpush.msra.mxu0 0.0
  %252 = vmatpush.msra.mxu0 0.0
  %253 = vmatpush.msra.mxu0 0.0
  %254 = vmatpush.msra.mxu0 %v219
  %255 = vmatpush.msra.mxu0 %v216
  %256 = vmatmul.f32.gmra.mxu0 %v223
  %v257 = vpop.f32.mrf.mxu0
  %v258 = vadd.f32 0.0, %v257
  %259 = vmatmul.f32.gmra.mxu0 %v226
  %v260 = vpop.f32.mrf.mxu0
  %v261 = vadd.f32 0.0, %v260
  %262 = vmatmul.f32.gmra.mxu0 %v229
  %v263 = vpop.f32.mrf.mxu0
  %v264 = vadd.f32 0.0, %v263
  %265 = vmatmul.f32.gmra.mxu0 %v232
  %v266 = vpop.f32.mrf.mxu0
  %v267 = vadd.f32 0.0, %v266
  %268 = vmatmul.f32.gmra.mxu0 %v235
  %v269 = vpop.f32.mrf.mxu0
  %v270 = vadd.f32 0.0, %v269
  %271 = vmatmul.f32.gmra.mxu0 %v238
  %v272 = vpop.f32.mrf.mxu0
  %v273 = vadd.f32 0.0, %v272
  %274 = vdwg.mxu0
  %v276 = vsel %vm221, %v134, 0
  %v279 = vsel %vm221, %v135, 0
  %v282 = vsel %vm221, %v136, 0
  %v285 = vsel %vm221, %v137, 0
  %v288 = vsel %vm221, %v138, 0
  %v291 = vsel %vm221, %v139, 0
  %293 = vmatpush.msra.mxu0 0.0
  %294 = vmatpush.msra.mxu0 0.0
  %295 = vmatpush.msra.mxu0 0.0
  %296 = vmatpush.msra.mxu0 0.0
  %297 = vmatpush.msra.mxu0 0.0
  %298 = vmatpush.msra.mxu0 0.0
  %299 = vmatpush.msra.mxu0 0.0
  %300 = vmatpush.msra.mxu0 0.0
  %301 = vmatpush.msra.mxu0 0.0
  %302 = vmatpush.msra.mxu0 0.0
  %303 = vmatpush.msra.mxu0 0.0
  %304 = vmatpush.msra.mxu0 0.0
  %305 = vmatpush.msra.mxu0 0.0
  %306 = vmatpush.msra.mxu0 0.0
  %307 = vmatpush.msra.mxu0 %v195
  %308 = vmatpush.msra.mxu0 %v192
  %309 = vmatmul.f32.gmra.mxu0 %v276
  %v310 = vpop.f32.mrf.mxu0
  %v311 = vadd.f32 %v258, %v310
  %312 = vmatmul.f32.gmra.mxu0 %v279
  %v313 = vpop.f32.mrf.mxu0
  %v314 = vadd.f32 %v261, %v313
  %315 = vmatmul.f32.gmra.mxu0 %v282
  %v316 = vpop.f32.mrf.mxu0
  %v317 = vadd.f32 %v264, %v316
  %318 = vmatmul.f32.gmra.mxu0 %v285
  %v319 = vpop.f32.mrf.mxu0
  %v320 = vadd.f32 %v267, %v319
  %321 = vmatmul.f32.gmra.mxu0 %v288
  %v322 = vpop.f32.mrf.mxu0
  %v323 = vadd.f32 %v270, %v322
  %324 = vmatmul.f32.gmra.mxu0 %v291
  %v325 = vpop.f32.mrf.mxu0
  %v326 = vadd.f32 %v273, %v325
  %327 = vdwg.mxu0
  %v328 = vld [vmem:[%s15] sm:$0x1]
  %v330 = vperm.slane %v328, 0
  %v332 = vadd.f32 %v311, %v330
  %v333 = vadd.f32 %v314, %v330
  %v334 = vadd.f32 %v317, %v330
  %v335 = vadd.f32 %v320, %v330
  %v336 = vadd.f32 %v323, %v330
  %v337 = vadd.f32 %v326, %v330
  %vm338 = vcmask 392192
  %v340 = vsel %vm338, %v132, 0
  %v343 = vsel %vm338, %v133, 0
  %345 = vmatpush.msra.mxu0 0.0
  %346 = vmatpush.msra.mxu0 0.0
  %347 = vmatpush.msra.mxu0 0.0
  %348 = vmatpush.msra.mxu0 0.0
  %349 = vmatpush.msra.mxu0 0.0
  %350 = vmatpush.msra.mxu0 0.0
  %351 = vmatpush.msra.mxu0 0.0
  %352 = vmatpush.msra.mxu0 0.0
  %353 = vmatpush.msra.mxu0 0.0
  %354 = vmatpush.msra.mxu0 0.0
  %355 = vmatpush.msra.mxu0 %v337
  %356 = vmatpush.msra.mxu0 %v336
  %357 = vmatpush.msra.mxu0 %v335
  %358 = vmatpush.msra.mxu0 %v334
  %359 = vmatpush.msra.mxu0 %v333
  %360 = vmatpush.msra.mxu0 %v332
  %361 = vmatmul.f32.gmra.mxu0 %v340
  %v362 = vpop.f32.mrf.mxu0
  %v363 = vadd.f32 0.0, %v362
  %364 = vmatmul.f32.gmra.mxu0 %v343
  %v365 = vpop.f32.mrf.mxu0
  %v366 = vadd.f32 0.0, %v365
  %367 = vdwg.mxu0
  %v368 = vmul.f32 %v332, %v332
  %v369 = vmul.f32 %v333, %v333
  %v370 = vmul.f32 %v334, %v334
  %v371 = vmul.f32 %v335, %v335
  %v372 = vmul.f32 %v336, %v336
  %v373 = vmul.f32 %v337, %v337
  %374 = vmatpush.msra.mxu0 0.0
  %375 = vmatpush.msra.mxu0 0.0
  %376 = vmatpush.msra.mxu0 0.0
  %377 = vmatpush.msra.mxu0 0.0
  %378 = vmatpush.msra.mxu0 0.0
  %379 = vmatpush.msra.mxu0 0.0
  %380 = vmatpush.msra.mxu0 0.0
  %381 = vmatpush.msra.mxu0 0.0
  %382 = vmatpush.msra.mxu0 0.0
  %383 = vmatpush.msra.mxu0 0.0
  %384 = vmatpush.msra.mxu0 %v373
  %385 = vmatpush.msra.mxu0 %v372
  %386 = vmatpush.msra.mxu0 %v371
  %387 = vmatpush.msra.mxu0 %v370
  %388 = vmatpush.msra.mxu0 %v369
  %389 = vmatpush.msra.mxu0 %v368
  %390 = vmatmul.f32.gmra.mxu0 %v340
  %v391 = vpop.f32.mrf.mxu0
  %v392 = vadd.f32 0.0, %v391
  %393 = vmatmul.f32.gmra.mxu0 %v343
  %v394 = vpop.f32.mrf.mxu0
  %v395 = vadd.f32 0.0, %v394
  %396 = vdwg.mxu0
  %398 = vset.pattern.permute.xlu0 0
  %399 = vperm.xlu0 %398, %v150
  %v400 = vpop.permute.xlu0 %399
  %403 = vset.pattern.permute.xlu0 0
  %404 = vperm.xlu0 %403, %v151
  %v405 = vpop.permute.xlu0 %404
  %v407 = vmul.f32 %v363, %v400
  %v408 = vmul.f32 %v366, %v405
  %v409 = vmul.f32 %v392, %v400
  %v410 = vmul.f32 %v395, %v405
  %v411 = vmul.f32 %v407, %v407
  %v412 = vmul.f32 %v408, %v408
  %v413 = vsub.f32 %v409, %v411
  %v414 = vsub.f32 %v410, %v412
  %v415 = vmax.f32 %v413, 0.0
  %v416 = vmax.f32 %v414, 0.0
  %v417 = vadd.f32 %v415, 1e-05
  %v418 = vadd.f32 %v416, 1e-05
  %v419 = vrsqrt.pop %v417
  %v420 = vmul.f32 %v419, %v417
  %v421 = vmul.f32 %v420, %v419
  %v422 = vmul.f32 0.5, %v421
  %v423 = vsub.f32 1.5, %v422
  %v424 = vmul.f32 %v419, %v423
  %v425 = vmul.f32 %v417, %v424
  %vm426 = vcmp.eq.f32.partialorder %v417, inf
  %v427 = vsel %vm426, %v417, %v425
  %vm428 = vcmp.eq.f32.partialorder %v417, 0.0
  %v429 = vand.u32 %v417, 2147483648
  %v430 = vsel %vm428, %v429, %v427
  %v431 = vrsqrt.pop %v418
  %v432 = vmul.f32 %v431, %v418
  %v433 = vmul.f32 %v432, %v431
  %v434 = vmul.f32 0.5, %v433
  %v435 = vsub.f32 1.5, %v434
  %v436 = vmul.f32 %v431, %v435
  %v437 = vmul.f32 %v418, %v436
  %vm438 = vcmp.eq.f32.partialorder %v418, inf
  %v439 = vsel %vm438, %v418, %v437
  %vm440 = vcmp.eq.f32.partialorder %v418, 0.0
  %v441 = vand.u32 %v418, 2147483648
  %v442 = vsel %vm440, %v441, %v439
  %vm443 = vcmask 261120
  %444 = vst.msk [vmem:[#allocation2] sm:$0xff] %vm443, %v332
  %445 = vst.msk [vmem:[#allocation2 + $0x8] sm:$0xff] %vm443, %v333
  %446 = vst.msk [vmem:[#allocation2 + $0x10] sm:$0xff] %vm443, %v334
  %447 = vst.msk [vmem:[#allocation2 + $0x18] sm:$0xff] %vm443, %v335
  %448 = vst.msk [vmem:[#allocation2 + $0x20] sm:$0xff] %vm443, %v336
  %449 = vst.msk [vmem:[#allocation2 + $0x28] sm:$0xff] %vm443, %v337
  %v450 = vld [vmem:[#allocation2] sm:$0xff]
  %v451 = vld [vmem:[%s5] sm:$0xff]
  %v452 = vsub.f32 1.0, %v451
  %v453 = vmul.f32 %v452, 1e+30
  %v455 = vrot.slane %v450, 1
  %v456 = vrot.slane %v450, 2
  %v457 = vrot.slane %v450, 3
  %v458 = vrot.slane %v450, 4
  %v459 = vrot.slane %v450, 5
  %v460 = vrot.slane %v450, 6
  %v461 = vrot.slane %v450, 7
  %v462 = vperm.slane %v453, 0
  %v463 = vlaneseq
  %v464 = vshrl.u32 %v463, 7
  %466 = vset.pattern.permute.xlu0 %v464
  %467 = vperm.xlu0 %466, %v462
  %v468 = vpop.permute.xlu0 %467
  %v469 = vlaneseq
  %v470 = vshrl.u32 %v469, 7
  %v471 = vadd.s32 %v470, 8
  %472 = vset.pattern.permute.xlu0 %v471
  %473 = vperm.xlu0 %472, %v462
  %v474 = vpop.permute.xlu0 %473
  %v475 = vperm.slane %v453, 1
  %v476 = vlaneseq
  %v477 = vshrl.u32 %v476, 7
  %479 = vset.pattern.permute.xlu0 %v477
  %480 = vperm.xlu0 %479, %v475
  %v481 = vpop.permute.xlu0 %480
  %v482 = vlaneseq
  %v483 = vshrl.u32 %v482, 7
  %v484 = vadd.s32 %v483, 8
  %485 = vset.pattern.permute.xlu0 %v484
  %486 = vperm.xlu0 %485, %v475
  %v487 = vpop.permute.xlu0 %486
  %v488 = vperm.slane %v453, 2
  %v489 = vlaneseq
  %v490 = vshrl.u32 %v489, 7
  %492 = vset.pattern.permute.xlu0 %v490
  %493 = vperm.xlu0 %492, %v488
  %v494 = vpop.permute.xlu0 %493
  %v495 = vlaneseq
  %v496 = vshrl.u32 %v495, 7
  %v497 = vadd.s32 %v496, 8
  %498 = vset.pattern.permute.xlu0 %v497
  %499 = vperm.xlu0 %498, %v488
  %v500 = vpop.permute.xlu0 %499
  %v501 = vperm.slane %v453, 3
  %v502 = vlaneseq
  %v503 = vshrl.u32 %v502, 7
  %505 = vset.pattern.permute.xlu0 %v503
  %506 = vperm.xlu0 %505, %v501
  %v507 = vpop.permute.xlu0 %506
  %v508 = vlaneseq
  %v509 = vshrl.u32 %v508, 7
  %v510 = vadd.s32 %v509, 8
  %511 = vset.pattern.permute.xlu0 %v510
  %512 = vperm.xlu0 %511, %v501
  %v513 = vpop.permute.xlu0 %512
  %v514 = vperm.slane %v453, 4
  %v515 = vlaneseq
  %v516 = vshrl.u32 %v515, 7
  %518 = vset.pattern.permute.xlu0 %v516
  %519 = vperm.xlu0 %518, %v514
  %v520 = vpop.permute.xlu0 %519
  %v521 = vlaneseq
  %v522 = vshrl.u32 %v521, 7
  %v523 = vadd.s32 %v522, 8
  %524 = vset.pattern.permute.xlu0 %v523
  %525 = vperm.xlu0 %524, %v514
  %v526 = vpop.permute.xlu0 %525
  %v527 = vperm.slane %v453, 5
  %v528 = vlaneseq
  %v529 = vshrl.u32 %v528, 7
  %531 = vset.pattern.permute.xlu0 %v529
  %532 = vperm.xlu0 %531, %v527
  %v533 = vpop.permute.xlu0 %532
  %v534 = vlaneseq
  %v535 = vshrl.u32 %v534, 7
  %v536 = vadd.s32 %v535, 8
  %537 = vset.pattern.permute.xlu0 %v536
  %538 = vperm.xlu0 %537, %v527
  %v539 = vpop.permute.xlu0 %538
  %v540 = vperm.slane %v453, 6
  %v541 = vlaneseq
  %v542 = vshrl.u32 %v541, 7
  %544 = vset.pattern.permute.xlu0 %v542
  %545 = vperm.xlu0 %544, %v540
  %v546 = vpop.permute.xlu0 %545
  %v547 = vlaneseq
  %v548 = vshrl.u32 %v547, 7
  %v549 = vadd.s32 %v548, 8
  %550 = vset.pattern.permute.xlu0 %v549
  %551 = vperm.xlu0 %550, %v540
  %v552 = vpop.permute.xlu0 %551
  %v553 = vperm.slane %v453, 7
  %v554 = vlaneseq
  %v555 = vshrl.u32 %v554, 7
  %557 = vset.pattern.permute.xlu0 %v555
  %558 = vperm.xlu0 %557, %v553
  %v559 = vpop.permute.xlu0 %558
  %v560 = vlaneseq
  %v561 = vshrl.u32 %v560, 7
  %v562 = vadd.s32 %v561, 8
  %563 = vset.pattern.permute.xlu0 %v562
  %564 = vperm.xlu0 %563, %v553
  %v565 = vpop.permute.xlu0 %564
  %v566 = vperm.slane %v450, 0
  %v567 = vperm.slane %v455, 0
  %v568 = vperm.slane %v456, 0
  %v569 = vperm.slane %v457, 0
  %v570 = vperm.slane %v458, 0
  %v571 = vperm.slane %v459, 0
  %v572 = vperm.slane %v460, 0
  %v573 = vperm.slane %v461, 0
  %v582 = vadd.f32 %v566, %v468
  %v583 = vadd.f32 %v566, %v474
  %v584 = vadd.f32 %v567, %v481
  %v585 = vadd.f32 %v567, %v487
  %v586 = vadd.f32 %v568, %v494
  %v587 = vadd.f32 %v568, %v500
  %v588 = vadd.f32 %v569, %v507
  %v589 = vadd.f32 %v569, %v513
  %v590 = vadd.f32 %v570, %v520
  %v591 = vadd.f32 %v570, %v526
  %v592 = vadd.f32 %v571, %v533
  %v593 = vadd.f32 %v571, %v539
  %v594 = vadd.f32 %v572, %v546
  %v595 = vadd.f32 %v572, %v552
  %v596 = vadd.f32 %v573, %v559
  %v597 = vadd.f32 %v573, %v565
  %v598 = vsel %vm443, %v582, inf
  %v599 = vsel %vm443, %v584, inf
  %v600 = vsel %vm443, %v586, inf
  %v601 = vmin.f32 %v598, %v600
  %v602 = vsel %vm443, %v588, inf
  %v603 = vmin.f32 %v599, %v602
  %v604 = vsel %vm443, %v590, inf
  %v605 = vmin.f32 %v601, %v604
  %v606 = vsel %vm443, %v592, inf
  %v607 = vmin.f32 %v603, %v606
  %v608 = vsel %vm443, %v594, inf
  %v609 = vmin.f32 %v605, %v608
  %v610 = vsel %vm443, %v596, inf
  %v611 = vmin.f32 %v607, %v610
  %v612 = vmin.f32 %v609, %v611
  %v613 = vsel %vm443, %v583, inf
  %v614 = vsel %vm443, %v585, inf
  %v615 = vsel %vm443, %v587, inf
  %v616 = vmin.f32 %v613, %v615
  %v617 = vsel %vm443, %v589, inf
  %v618 = vmin.f32 %v614, %v617
  %v619 = vsel %vm443, %v591, inf
  %v620 = vmin.f32 %v616, %v619
  %v621 = vsel %vm443, %v593, inf
  %v622 = vmin.f32 %v618, %v621
  %v623 = vsel %vm443, %v595, inf
  %v624 = vmin.f32 %v620, %v623
  %v625 = vsel %vm443, %v597, inf
  %v626 = vmin.f32 %v622, %v625
  %v627 = vmin.f32 %v624, %v626
  %v628 = vmin.f32 %v612, 1e+30
  %v629 = vmin.f32 %v627, 1e+30
  %v630 = vsub.f32 %v566, %v468
  %v631 = vsub.f32 %v566, %v474
  %v632 = vsub.f32 %v567, %v481
  %v633 = vsub.f32 %v567, %v487
  %v634 = vsub.f32 %v568, %v494
  %v635 = vsub.f32 %v568, %v500
  %v636 = vsub.f32 %v569, %v507
  %v637 = vsub.f32 %v569, %v513
  %v638 = vsub.f32 %v570, %v520
  %v639 = vsub.f32 %v570, %v526
  %v640 = vsub.f32 %v571, %v533
  %v641 = vsub.f32 %v571, %v539
  %v642 = vsub.f32 %v572, %v546
  %v643 = vsub.f32 %v572, %v552
  %v644 = vsub.f32 %v573, %v559
  %v645 = vsub.f32 %v573, %v565
  %v646 = vsel %vm443, %v630, -inf
  %v647 = vsel %vm443, %v632, -inf
  %v648 = vsel %vm443, %v634, -inf
  %v649 = vmax.f32 %v646, %v648
  %v650 = vsel %vm443, %v636, -inf
  %v651 = vmax.f32 %v647, %v650
  %v652 = vsel %vm443, %v638, -inf
  %v653 = vmax.f32 %v649, %v652
  %v654 = vsel %vm443, %v640, -inf
  %v655 = vmax.f32 %v651, %v654
  %v656 = vsel %vm443, %v642, -inf
  %v657 = vmax.f32 %v653, %v656
  %v658 = vsel %vm443, %v644, -inf
  %v659 = vmax.f32 %v655, %v658
  %v660 = vmax.f32 %v657, %v659
  %v661 = vsel %vm443, %v631, -inf
  %v662 = vsel %vm443, %v633, -inf
  %v663 = vsel %vm443, %v635, -inf
  %v664 = vmax.f32 %v661, %v663
  %v665 = vsel %vm443, %v637, -inf
  %v666 = vmax.f32 %v662, %v665
  %v667 = vsel %vm443, %v639, -inf
  %v668 = vmax.f32 %v664, %v667
  %v669 = vsel %vm443, %v641, -inf
  %v670 = vmax.f32 %v666, %v669
  %v671 = vsel %vm443, %v643, -inf
  %v672 = vmax.f32 %v668, %v671
  %v673 = vsel %vm443, %v645, -inf
  %v674 = vmax.f32 %v670, %v673
  %v675 = vmax.f32 %v672, %v674
  %v676 = vmax.f32 %v660, -1e+30
  %v677 = vmax.f32 %v675, -1e+30
  %v678 = vld [vmem:[#allocation2 + $0x8] sm:$0xff]
  %v679 = vld [vmem:[%s5 + $0x8] sm:$0xff]
  %v680 = vsub.f32 1.0, %v679
  %v681 = vmul.f32 %v680, 1e+30
  %v683 = vrot.slane %v678, 1
  %v684 = vrot.slane %v678, 2
  %v685 = vrot.slane %v678, 3
  %v686 = vrot.slane %v678, 4
  %v687 = vrot.slane %v678, 5
  %v688 = vrot.slane %v678, 6
  %v689 = vrot.slane %v678, 7
  %v690 = vperm.slane %v681, 0
  %v691 = vlaneseq
  %v692 = vshrl.u32 %v691, 7
  %694 = vset.pattern.permute.xlu0 %v692
  %695 = vperm.xlu0 %694, %v690
  %v696 = vpop.permute.xlu0 %695
  %v697 = vlaneseq
  %v698 = vshrl.u32 %v697, 7
  %v699 = vadd.s32 %v698, 8
  %700 = vset.pattern.permute.xlu0 %v699
  %701 = vperm.xlu0 %700, %v690
  %v702 = vpop.permute.xlu0 %701
  %v703 = vperm.slane %v681, 1
  %v704 = vlaneseq
  %v705 = vshrl.u32 %v704, 7
  %707 = vset.pattern.permute.xlu0 %v705
  %708 = vperm.xlu0 %707, %v703
  %v709 = vpop.permute.xlu0 %708
  %v710 = vlaneseq
  %v711 = vshrl.u32 %v710, 7
  %v712 = vadd.s32 %v711, 8
  %713 = vset.pattern.permute.xlu0 %v712
  %714 = vperm.xlu0 %713, %v703
  %v715 = vpop.permute.xlu0 %714
  %v716 = vperm.slane %v681, 2
  %v717 = vlaneseq
  %v718 = vshrl.u32 %v717, 7
  %720 = vset.pattern.permute.xlu0 %v718
  %721 = vperm.xlu0 %720, %v716
  %v722 = vpop.permute.xlu0 %721
  %v723 = vlaneseq
  %v724 = vshrl.u32 %v723, 7
  %v725 = vadd.s32 %v724, 8
  %726 = vset.pattern.permute.xlu0 %v725
  %727 = vperm.xlu0 %726, %v716
  %v728 = vpop.permute.xlu0 %727
  %v729 = vperm.slane %v681, 3
  %v730 = vlaneseq
  %v731 = vshrl.u32 %v730, 7
  %733 = vset.pattern.permute.xlu0 %v731
  %734 = vperm.xlu0 %733, %v729
  %v735 = vpop.permute.xlu0 %734
  %v736 = vlaneseq
  %v737 = vshrl.u32 %v736, 7
  %v738 = vadd.s32 %v737, 8
  %739 = vset.pattern.permute.xlu0 %v738
  %740 = vperm.xlu0 %739, %v729
  %v741 = vpop.permute.xlu0 %740
  %v742 = vperm.slane %v681, 4
  %v743 = vlaneseq
  %v744 = vshrl.u32 %v743, 7
  %746 = vset.pattern.permute.xlu0 %v744
  %747 = vperm.xlu0 %746, %v742
  %v748 = vpop.permute.xlu0 %747
  %v749 = vlaneseq
  %v750 = vshrl.u32 %v749, 7
  %v751 = vadd.s32 %v750, 8
  %752 = vset.pattern.permute.xlu0 %v751
  %753 = vperm.xlu0 %752, %v742
  %v754 = vpop.permute.xlu0 %753
  %v755 = vperm.slane %v681, 5
  %v756 = vlaneseq
  %v757 = vshrl.u32 %v756, 7
  %759 = vset.pattern.permute.xlu0 %v757
  %760 = vperm.xlu0 %759, %v755
  %v761 = vpop.permute.xlu0 %760
  %v762 = vlaneseq
  %v763 = vshrl.u32 %v762, 7
  %v764 = vadd.s32 %v763, 8
  %765 = vset.pattern.permute.xlu0 %v764
  %766 = vperm.xlu0 %765, %v755
  %v767 = vpop.permute.xlu0 %766
  %v768 = vperm.slane %v681, 6
  %v769 = vlaneseq
  %v770 = vshrl.u32 %v769, 7
  %772 = vset.pattern.permute.xlu0 %v770
  %773 = vperm.xlu0 %772, %v768
  %v774 = vpop.permute.xlu0 %773
  %v775 = vlaneseq
  %v776 = vshrl.u32 %v775, 7
  %v777 = vadd.s32 %v776, 8
  %778 = vset.pattern.permute.xlu0 %v777
  %779 = vperm.xlu0 %778, %v768
  %v780 = vpop.permute.xlu0 %779
  %v781 = vperm.slane %v681, 7
  %v782 = vlaneseq
  %v783 = vshrl.u32 %v782, 7
  %785 = vset.pattern.permute.xlu0 %v783
  %786 = vperm.xlu0 %785, %v781
  %v787 = vpop.permute.xlu0 %786
  %v788 = vlaneseq
  %v789 = vshrl.u32 %v788, 7
  %v790 = vadd.s32 %v789, 8
  %791 = vset.pattern.permute.xlu0 %v790
  %792 = vperm.xlu0 %791, %v781
  %v793 = vpop.permute.xlu0 %792
  %v794 = vperm.slane %v678, 0
  %v795 = vperm.slane %v683, 0
  %v796 = vperm.slane %v684, 0
  %v797 = vperm.slane %v685, 0
  %v798 = vperm.slane %v686, 0
  %v799 = vperm.slane %v687, 0
  %v800 = vperm.slane %v688, 0
  %v801 = vperm.slane %v689, 0
  %v810 = vadd.f32 %v794, %v696
  %v811 = vadd.f32 %v794, %v702
  %v812 = vadd.f32 %v795, %v709
  %v813 = vadd.f32 %v795, %v715
  %v814 = vadd.f32 %v796, %v722
  %v815 = vadd.f32 %v796, %v728
  %v816 = vadd.f32 %v797, %v735
  %v817 = vadd.f32 %v797, %v741
  %v818 = vadd.f32 %v798, %v748
  %v819 = vadd.f32 %v798, %v754
  %v820 = vadd.f32 %v799, %v761
  %v821 = vadd.f32 %v799, %v767
  %v822 = vadd.f32 %v800, %v774
  %v823 = vadd.f32 %v800, %v780
  %v824 = vadd.f32 %v801, %v787
  %v825 = vadd.f32 %v801, %v793
  %v826 = vsel %vm443, %v810, inf
  %v827 = vsel %vm443, %v812, inf
  %v828 = vsel %vm443, %v814, inf
  %v829 = vmin.f32 %v826, %v828
  %v830 = vsel %vm443, %v816, inf
  %v831 = vmin.f32 %v827, %v830
  %v832 = vsel %vm443, %v818, inf
  %v833 = vmin.f32 %v829, %v832
  %v834 = vsel %vm443, %v820, inf
  %v835 = vmin.f32 %v831, %v834
  %v836 = vsel %vm443, %v822, inf
  %v837 = vmin.f32 %v833, %v836
  %v838 = vsel %vm443, %v824, inf
  %v839 = vmin.f32 %v835, %v838
  %v840 = vmin.f32 %v837, %v839
  %v841 = vsel %vm443, %v811, inf
  %v842 = vsel %vm443, %v813, inf
  %v843 = vsel %vm443, %v815, inf
  %v844 = vmin.f32 %v841, %v843
  %v845 = vsel %vm443, %v817, inf
  %v846 = vmin.f32 %v842, %v845
  %v847 = vsel %vm443, %v819, inf
  %v848 = vmin.f32 %v844, %v847
  %v849 = vsel %vm443, %v821, inf
  %v850 = vmin.f32 %v846, %v849
  %v851 = vsel %vm443, %v823, inf
  %v852 = vmin.f32 %v848, %v851
  %v853 = vsel %vm443, %v825, inf
  %v854 = vmin.f32 %v850, %v853
  %v855 = vmin.f32 %v852, %v854
  %v856 = vmin.f32 %v628, %v840
  %v857 = vmin.f32 %v629, %v855
  %v858 = vsub.f32 %v794, %v696
  %v859 = vsub.f32 %v794, %v702
  %v860 = vsub.f32 %v795, %v709
  %v861 = vsub.f32 %v795, %v715
  %v862 = vsub.f32 %v796, %v722
  %v863 = vsub.f32 %v796, %v728
  %v864 = vsub.f32 %v797, %v735
  %v865 = vsub.f32 %v797, %v741
  %v866 = vsub.f32 %v798, %v748
  %v867 = vsub.f32 %v798, %v754
  %v868 = vsub.f32 %v799, %v761
  %v869 = vsub.f32 %v799, %v767
  %v870 = vsub.f32 %v800, %v774
  %v871 = vsub.f32 %v800, %v780
  %v872 = vsub.f32 %v801, %v787
  %v873 = vsub.f32 %v801, %v793
  %v874 = vsel %vm443, %v858, -inf
  %v875 = vsel %vm443, %v860, -inf
  %v876 = vsel %vm443, %v862, -inf
  %v877 = vmax.f32 %v874, %v876
  %v878 = vsel %vm443, %v864, -inf
  %v879 = vmax.f32 %v875, %v878
  %v880 = vsel %vm443, %v866, -inf
  %v881 = vmax.f32 %v877, %v880
  %v882 = vsel %vm443, %v868, -inf
  %v883 = vmax.f32 %v879, %v882
  %v884 = vsel %vm443, %v870, -inf
  %v885 = vmax.f32 %v881, %v884
  %v886 = vsel %vm443, %v872, -inf
  %v887 = vmax.f32 %v883, %v886
  %v888 = vmax.f32 %v885, %v887
  %v889 = vsel %vm443, %v859, -inf
  %v890 = vsel %vm443, %v861, -inf
  %v891 = vsel %vm443, %v863, -inf
  %v892 = vmax.f32 %v889, %v891
  %v893 = vsel %vm443, %v865, -inf
  %v894 = vmax.f32 %v890, %v893
  %v895 = vsel %vm443, %v867, -inf
  %v896 = vmax.f32 %v892, %v895
  %v897 = vsel %vm443, %v869, -inf
  %v898 = vmax.f32 %v894, %v897
  %v899 = vsel %vm443, %v871, -inf
  %v900 = vmax.f32 %v896, %v899
  %v901 = vsel %vm443, %v873, -inf
  %v902 = vmax.f32 %v898, %v901
  %v903 = vmax.f32 %v900, %v902
  %v904 = vmax.f32 %v676, %v888
  %v905 = vmax.f32 %v677, %v903
  %v906 = vld [vmem:[#allocation2 + $0x10] sm:$0xff]
  %v907 = vld [vmem:[%s5 + $0x10] sm:$0xff]
  %v908 = vsub.f32 1.0, %v907
  %v909 = vmul.f32 %v908, 1e+30
  %v911 = vrot.slane %v906, 1
  %v912 = vrot.slane %v906, 2
  %v913 = vrot.slane %v906, 3
  %v914 = vrot.slane %v906, 4
  %v915 = vrot.slane %v906, 5
  %v916 = vrot.slane %v906, 6
  %v917 = vrot.slane %v906, 7
  %v918 = vperm.slane %v909, 0
  %v919 = vlaneseq
  %v920 = vshrl.u32 %v919, 7
  %922 = vset.pattern.permute.xlu0 %v920
  %923 = vperm.xlu0 %922, %v918
  %v924 = vpop.permute.xlu0 %923
  %v925 = vlaneseq
  %v926 = vshrl.u32 %v925, 7
  %v927 = vadd.s32 %v926, 8
  %928 = vset.pattern.permute.xlu0 %v927
  %929 = vperm.xlu0 %928, %v918
  %v930 = vpop.permute.xlu0 %929
  %v931 = vperm.slane %v909, 1
  %v932 = vlaneseq
  %v933 = vshrl.u32 %v932, 7
  %935 = vset.pattern.permute.xlu0 %v933
  %936 = vperm.xlu0 %935, %v931
  %v937 = vpop.permute.xlu0 %936
  %v938 = vlaneseq
  %v939 = vshrl.u32 %v938, 7
  %v940 = vadd.s32 %v939, 8
  %941 = vset.pattern.permute.xlu0 %v940
  %942 = vperm.xlu0 %941, %v931
  %v943 = vpop.permute.xlu0 %942
  %v944 = vperm.slane %v909, 2
  %v945 = vlaneseq
  %v946 = vshrl.u32 %v945, 7
  %948 = vset.pattern.permute.xlu0 %v946
  %949 = vperm.xlu0 %948, %v944
  %v950 = vpop.permute.xlu0 %949
  %v951 = vlaneseq
  %v952 = vshrl.u32 %v951, 7
  %v953 = vadd.s32 %v952, 8
  %954 = vset.pattern.permute.xlu0 %v953
  %955 = vperm.xlu0 %954, %v944
  %v956 = vpop.permute.xlu0 %955
  %v957 = vperm.slane %v909, 3
  %v958 = vlaneseq
  %v959 = vshrl.u32 %v958, 7
  %961 = vset.pattern.permute.xlu0 %v959
  %962 = vperm.xlu0 %961, %v957
  %v963 = vpop.permute.xlu0 %962
  %v964 = vlaneseq
  %v965 = vshrl.u32 %v964, 7
  %v966 = vadd.s32 %v965, 8
  %967 = vset.pattern.permute.xlu0 %v966
  %968 = vperm.xlu0 %967, %v957
  %v969 = vpop.permute.xlu0 %968
  %v970 = vperm.slane %v909, 4
  %v971 = vlaneseq
  %v972 = vshrl.u32 %v971, 7
  %974 = vset.pattern.permute.xlu0 %v972
  %975 = vperm.xlu0 %974, %v970
  %v976 = vpop.permute.xlu0 %975
  %v977 = vlaneseq
  %v978 = vshrl.u32 %v977, 7
  %v979 = vadd.s32 %v978, 8
  %980 = vset.pattern.permute.xlu0 %v979
  %981 = vperm.xlu0 %980, %v970
  %v982 = vpop.permute.xlu0 %981
  %v983 = vperm.slane %v909, 5
  %v984 = vlaneseq
  %v985 = vshrl.u32 %v984, 7
  %987 = vset.pattern.permute.xlu0 %v985
  %988 = vperm.xlu0 %987, %v983
  %v989 = vpop.permute.xlu0 %988
  %v990 = vlaneseq
  %v991 = vshrl.u32 %v990, 7
  %v992 = vadd.s32 %v991, 8
  %993 = vset.pattern.permute.xlu0 %v992
  %994 = vperm.xlu0 %993, %v983
  %v995 = vpop.permute.xlu0 %994
  %v996 = vperm.slane %v909, 6
  %v997 = vlaneseq
  %v998 = vshrl.u32 %v997, 7
  %1000 = vset.pattern.permute.xlu0 %v998
  %1001 = vperm.xlu0 %1000, %v996
  %v1002 = vpop.permute.xlu0 %1001
  %v1003 = vlaneseq
  %v1004 = vshrl.u32 %v1003, 7
  %v1005 = vadd.s32 %v1004, 8
  %1006 = vset.pattern.permute.xlu0 %v1005
  %1007 = vperm.xlu0 %1006, %v996
  %v1008 = vpop.permute.xlu0 %1007
  %v1009 = vperm.slane %v909, 7
  %v1010 = vlaneseq
  %v1011 = vshrl.u32 %v1010, 7
  %1013 = vset.pattern.permute.xlu0 %v1011
  %1014 = vperm.xlu0 %1013, %v1009
  %v1015 = vpop.permute.xlu0 %1014
  %v1016 = vlaneseq
  %v1017 = vshrl.u32 %v1016, 7
  %v1018 = vadd.s32 %v1017, 8
  %1019 = vset.pattern.permute.xlu0 %v1018
  %1020 = vperm.xlu0 %1019, %v1009
  %v1021 = vpop.permute.xlu0 %1020
  %v1022 = vperm.slane %v906, 0
  %v1023 = vperm.slane %v911, 0
  %v1024 = vperm.slane %v912, 0
  %v1025 = vperm.slane %v913, 0
  %v1026 = vperm.slane %v914, 0
  %v1027 = vperm.slane %v915, 0
  %v1028 = vperm.slane %v916, 0
  %v1029 = vperm.slane %v917, 0
  %v1038 = vadd.f32 %v1022, %v924
  %v1039 = vadd.f32 %v1022, %v930
  %v1040 = vadd.f32 %v1023, %v937
  %v1041 = vadd.f32 %v1023, %v943
  %v1042 = vadd.f32 %v1024, %v950
  %v1043 = vadd.f32 %v1024, %v956
  %v1044 = vadd.f32 %v1025, %v963
  %v1045 = vadd.f32 %v1025, %v969
  %v1046 = vadd.f32 %v1026, %v976
  %v1047 = vadd.f32 %v1026, %v982
  %v1048 = vadd.f32 %v1027, %v989
  %v1049 = vadd.f32 %v1027, %v995
  %v1050 = vadd.f32 %v1028, %v1002
  %v1051 = vadd.f32 %v1028, %v1008
  %v1052 = vadd.f32 %v1029, %v1015
  %v1053 = vadd.f32 %v1029, %v1021
  %v1054 = vsel %vm443, %v1038, inf
  %v1055 = vsel %vm443, %v1040, inf
  %v1056 = vsel %vm443, %v1042, inf
  %v1057 = vmin.f32 %v1054, %v1056
  %v1058 = vsel %vm443, %v1044, inf
  %v1059 = vmin.f32 %v1055, %v1058
  %v1060 = vsel %vm443, %v1046, inf
  %v1061 = vmin.f32 %v1057, %v1060
  %v1062 = vsel %vm443, %v1048, inf
  %v1063 = vmin.f32 %v1059, %v1062
  %v1064 = vsel %vm443, %v1050, inf
  %v1065 = vmin.f32 %v1061, %v1064
  %v1066 = vsel %vm443, %v1052, inf
  %v1067 = vmin.f32 %v1063, %v1066
  %v1068 = vmin.f32 %v1065, %v1067
  %v1069 = vsel %vm443, %v1039, inf
  %v1070 = vsel %vm443, %v1041, inf
  %v1071 = vsel %vm443, %v1043, inf
  %v1072 = vmin.f32 %v1069, %v1071
  %v1073 = vsel %vm443, %v1045, inf
  %v1074 = vmin.f32 %v1070, %v1073
  %v1075 = vsel %vm443, %v1047, inf
  %v1076 = vmin.f32 %v1072, %v1075
  %v1077 = vsel %vm443, %v1049, inf
  %v1078 = vmin.f32 %v1074, %v1077
  %v1079 = vsel %vm443, %v1051, inf
  %v1080 = vmin.f32 %v1076, %v1079
  %v1081 = vsel %vm443, %v1053, inf
  %v1082 = vmin.f32 %v1078, %v1081
  %v1083 = vmin.f32 %v1080, %v1082
  %v1084 = vmin.f32 %v856, %v1068
  %v1085 = vmin.f32 %v857, %v1083
  %v1086 = vsub.f32 %v1022, %v924
  %v1087 = vsub.f32 %v1022, %v930
  %v1088 = vsub.f32 %v1023, %v937
  %v1089 = vsub.f32 %v1023, %v943
  %v1090 = vsub.f32 %v1024, %v950
  %v1091 = vsub.f32 %v1024, %v956
  %v1092 = vsub.f32 %v1025, %v963
  %v1093 = vsub.f32 %v1025, %v969
  %v1094 = vsub.f32 %v1026, %v976
  %v1095 = vsub.f32 %v1026, %v982
  %v1096 = vsub.f32 %v1027, %v989
  %v1097 = vsub.f32 %v1027, %v995
  %v1098 = vsub.f32 %v1028, %v1002
  %v1099 = vsub.f32 %v1028, %v1008
  %v1100 = vsub.f32 %v1029, %v1015
  %v1101 = vsub.f32 %v1029, %v1021
  %v1102 = vsel %vm443, %v1086, -inf
  %v1103 = vsel %vm443, %v1088, -inf
  %v1104 = vsel %vm443, %v1090, -inf
  %v1105 = vmax.f32 %v1102, %v1104
  %v1106 = vsel %vm443, %v1092, -inf
  %v1107 = vmax.f32 %v1103, %v1106
  %v1108 = vsel %vm443, %v1094, -inf
  %v1109 = vmax.f32 %v1105, %v1108
  %v1110 = vsel %vm443, %v1096, -inf
  %v1111 = vmax.f32 %v1107, %v1110
  %v1112 = vsel %vm443, %v1098, -inf
  %v1113 = vmax.f32 %v1109, %v1112
  %v1114 = vsel %vm443, %v1100, -inf
  %v1115 = vmax.f32 %v1111, %v1114
  %v1116 = vmax.f32 %v1113, %v1115
  %v1117 = vsel %vm443, %v1087, -inf
  %v1118 = vsel %vm443, %v1089, -inf
  %v1119 = vsel %vm443, %v1091, -inf
  %v1120 = vmax.f32 %v1117, %v1119
  %v1121 = vsel %vm443, %v1093, -inf
  %v1122 = vmax.f32 %v1118, %v1121
  %v1123 = vsel %vm443, %v1095, -inf
  %v1124 = vmax.f32 %v1120, %v1123
  %v1125 = vsel %vm443, %v1097, -inf
  %v1126 = vmax.f32 %v1122, %v1125
  %v1127 = vsel %vm443, %v1099, -inf
  %v1128 = vmax.f32 %v1124, %v1127
  %v1129 = vsel %vm443, %v1101, -inf
  %v1130 = vmax.f32 %v1126, %v1129
  %v1131 = vmax.f32 %v1128, %v1130
  %v1132 = vmax.f32 %v904, %v1116
  %v1133 = vmax.f32 %v905, %v1131
  %v1134 = vld [vmem:[#allocation2 + $0x18] sm:$0xff]
  %v1135 = vld [vmem:[%s5 + $0x18] sm:$0xff]
  %v1136 = vsub.f32 1.0, %v1135
  %v1137 = vmul.f32 %v1136, 1e+30
  %v1139 = vrot.slane %v1134, 1
  %v1140 = vrot.slane %v1134, 2
  %v1141 = vrot.slane %v1134, 3
  %v1142 = vrot.slane %v1134, 4
  %v1143 = vrot.slane %v1134, 5
  %v1144 = vrot.slane %v1134, 6
  %v1145 = vrot.slane %v1134, 7
  %v1146 = vperm.slane %v1137, 0
  %v1147 = vlaneseq
  %v1148 = vshrl.u32 %v1147, 7
  %1150 = vset.pattern.permute.xlu0 %v1148
  %1151 = vperm.xlu0 %1150, %v1146
  %v1152 = vpop.permute.xlu0 %1151
  %v1153 = vlaneseq
  %v1154 = vshrl.u32 %v1153, 7
  %v1155 = vadd.s32 %v1154, 8
  %1156 = vset.pattern.permute.xlu0 %v1155
  %1157 = vperm.xlu0 %1156, %v1146
  %v1158 = vpop.permute.xlu0 %1157
  %v1159 = vperm.slane %v1137, 1
  %v1160 = vlaneseq
  %v1161 = vshrl.u32 %v1160, 7
  %1163 = vset.pattern.permute.xlu0 %v1161
  %1164 = vperm.xlu0 %1163, %v1159
  %v1165 = vpop.permute.xlu0 %1164
  %v1166 = vlaneseq
  %v1167 = vshrl.u32 %v1166, 7
  %v1168 = vadd.s32 %v1167, 8
  %1169 = vset.pattern.permute.xlu0 %v1168
  %1170 = vperm.xlu0 %1169, %v1159
  %v1171 = vpop.permute.xlu0 %1170
  %v1172 = vperm.slane %v1137, 2
  %v1173 = vlaneseq
  %v1174 = vshrl.u32 %v1173, 7
  %1176 = vset.pattern.permute.xlu0 %v1174
  %1177 = vperm.xlu0 %1176, %v1172
  %v1178 = vpop.permute.xlu0 %1177
  %v1179 = vlaneseq
  %v1180 = vshrl.u32 %v1179, 7
  %v1181 = vadd.s32 %v1180, 8
  %1182 = vset.pattern.permute.xlu0 %v1181
  %1183 = vperm.xlu0 %1182, %v1172
  %v1184 = vpop.permute.xlu0 %1183
  %v1185 = vperm.slane %v1137, 3
  %v1186 = vlaneseq
  %v1187 = vshrl.u32 %v1186, 7
  %1189 = vset.pattern.permute.xlu0 %v1187
  %1190 = vperm.xlu0 %1189, %v1185
  %v1191 = vpop.permute.xlu0 %1190
  %v1192 = vlaneseq
  %v1193 = vshrl.u32 %v1192, 7
  %v1194 = vadd.s32 %v1193, 8
  %1195 = vset.pattern.permute.xlu0 %v1194
  %1196 = vperm.xlu0 %1195, %v1185
  %v1197 = vpop.permute.xlu0 %1196
  %v1198 = vperm.slane %v1137, 4
  %v1199 = vlaneseq
  %v1200 = vshrl.u32 %v1199, 7
  %1202 = vset.pattern.permute.xlu0 %v1200
  %1203 = vperm.xlu0 %1202, %v1198
  %v1204 = vpop.permute.xlu0 %1203
  %v1205 = vlaneseq
  %v1206 = vshrl.u32 %v1205, 7
  %v1207 = vadd.s32 %v1206, 8
  %1208 = vset.pattern.permute.xlu0 %v1207
  %1209 = vperm.xlu0 %1208, %v1198
  %v1210 = vpop.permute.xlu0 %1209
  %v1211 = vperm.slane %v1137, 5
  %v1212 = vlaneseq
  %v1213 = vshrl.u32 %v1212, 7
  %1215 = vset.pattern.permute.xlu0 %v1213
  %1216 = vperm.xlu0 %1215, %v1211
  %v1217 = vpop.permute.xlu0 %1216
  %v1218 = vlaneseq
  %v1219 = vshrl.u32 %v1218, 7
  %v1220 = vadd.s32 %v1219, 8
  %1221 = vset.pattern.permute.xlu0 %v1220
  %1222 = vperm.xlu0 %1221, %v1211
  %v1223 = vpop.permute.xlu0 %1222
  %v1224 = vperm.slane %v1137, 6
  %v1225 = vlaneseq
  %v1226 = vshrl.u32 %v1225, 7
  %1228 = vset.pattern.permute.xlu0 %v1226
  %1229 = vperm.xlu0 %1228, %v1224
  %v1230 = vpop.permute.xlu0 %1229
  %v1231 = vlaneseq
  %v1232 = vshrl.u32 %v1231, 7
  %v1233 = vadd.s32 %v1232, 8
  %1234 = vset.pattern.permute.xlu0 %v1233
  %1235 = vperm.xlu0 %1234, %v1224
  %v1236 = vpop.permute.xlu0 %1235
  %v1237 = vperm.slane %v1137, 7
  %v1238 = vlaneseq
  %v1239 = vshrl.u32 %v1238, 7
  %1241 = vset.pattern.permute.xlu0 %v1239
  %1242 = vperm.xlu0 %1241, %v1237
  %v1243 = vpop.permute.xlu0 %1242
  %v1244 = vlaneseq
  %v1245 = vshrl.u32 %v1244, 7
  %v1246 = vadd.s32 %v1245, 8
  %1247 = vset.pattern.permute.xlu0 %v1246
  %1248 = vperm.xlu0 %1247, %v1237
  %v1249 = vpop.permute.xlu0 %1248
  %v1250 = vperm.slane %v1134, 0
  %v1251 = vperm.slane %v1139, 0
  %v1252 = vperm.slane %v1140, 0
  %v1253 = vperm.slane %v1141, 0
  %v1254 = vperm.slane %v1142, 0
  %v1255 = vperm.slane %v1143, 0
  %v1256 = vperm.slane %v1144, 0
  %v1257 = vperm.slane %v1145, 0
  %v1266 = vadd.f32 %v1250, %v1152
  %v1267 = vadd.f32 %v1250, %v1158
  %v1268 = vadd.f32 %v1251, %v1165
  %v1269 = vadd.f32 %v1251, %v1171
  %v1270 = vadd.f32 %v1252, %v1178
  %v1271 = vadd.f32 %v1252, %v1184
  %v1272 = vadd.f32 %v1253, %v1191
  %v1273 = vadd.f32 %v1253, %v1197
  %v1274 = vadd.f32 %v1254, %v1204
  %v1275 = vadd.f32 %v1254, %v1210
  %v1276 = vadd.f32 %v1255, %v1217
  %v1277 = vadd.f32 %v1255, %v1223
  %v1278 = vadd.f32 %v1256, %v1230
  %v1279 = vadd.f32 %v1256, %v1236
  %v1280 = vadd.f32 %v1257, %v1243
  %v1281 = vadd.f32 %v1257, %v1249
  %v1282 = vsel %vm443, %v1266, inf
  %v1283 = vsel %vm443, %v1268, inf
  %v1284 = vsel %vm443, %v1270, inf
  %v1285 = vmin.f32 %v1282, %v1284
  %v1286 = vsel %vm443, %v1272, inf
  %v1287 = vmin.f32 %v1283, %v1286
  %v1288 = vsel %vm443, %v1274, inf
  %v1289 = vmin.f32 %v1285, %v1288
  %v1290 = vsel %vm443, %v1276, inf
  %v1291 = vmin.f32 %v1287, %v1290
  %v1292 = vsel %vm443, %v1278, inf
  %v1293 = vmin.f32 %v1289, %v1292
  %v1294 = vsel %vm443, %v1280, inf
  %v1295 = vmin.f32 %v1291, %v1294
  %v1296 = vmin.f32 %v1293, %v1295
  %v1297 = vsel %vm443, %v1267, inf
  %v1298 = vsel %vm443, %v1269, inf
  %v1299 = vsel %vm443, %v1271, inf
  %v1300 = vmin.f32 %v1297, %v1299
  %v1301 = vsel %vm443, %v1273, inf
  %v1302 = vmin.f32 %v1298, %v1301
  %v1303 = vsel %vm443, %v1275, inf
  %v1304 = vmin.f32 %v1300, %v1303
  %v1305 = vsel %vm443, %v1277, inf
  %v1306 = vmin.f32 %v1302, %v1305
  %v1307 = vsel %vm443, %v1279, inf
  %v1308 = vmin.f32 %v1304, %v1307
  %v1309 = vsel %vm443, %v1281, inf
  %v1310 = vmin.f32 %v1306, %v1309
  %v1311 = vmin.f32 %v1308, %v1310
  %v1312 = vmin.f32 %v1084, %v1296
  %v1313 = vmin.f32 %v1085, %v1311
  %v1314 = vsub.f32 %v1250, %v1152
  %v1315 = vsub.f32 %v1250, %v1158
  %v1316 = vsub.f32 %v1251, %v1165
  %v1317 = vsub.f32 %v1251, %v1171
  %v1318 = vsub.f32 %v1252, %v1178
  %v1319 = vsub.f32 %v1252, %v1184
  %v1320 = vsub.f32 %v1253, %v1191
  %v1321 = vsub.f32 %v1253, %v1197
  %v1322 = vsub.f32 %v1254, %v1204
  %v1323 = vsub.f32 %v1254, %v1210
  %v1324 = vsub.f32 %v1255, %v1217
  %v1325 = vsub.f32 %v1255, %v1223
  %v1326 = vsub.f32 %v1256, %v1230
  %v1327 = vsub.f32 %v1256, %v1236
  %v1328 = vsub.f32 %v1257, %v1243
  %v1329 = vsub.f32 %v1257, %v1249
  %v1330 = vsel %vm443, %v1314, -inf
  %v1331 = vsel %vm443, %v1316, -inf
  %v1332 = vsel %vm443, %v1318, -inf
  %v1333 = vmax.f32 %v1330, %v1332
  %v1334 = vsel %vm443, %v1320, -inf
  %v1335 = vmax.f32 %v1331, %v1334
  %v1336 = vsel %vm443, %v1322, -inf
  %v1337 = vmax.f32 %v1333, %v1336
  %v1338 = vsel %vm443, %v1324, -inf
  %v1339 = vmax.f32 %v1335, %v1338
  %v1340 = vsel %vm443, %v1326, -inf
  %v1341 = vmax.f32 %v1337, %v1340
  %v1342 = vsel %vm443, %v1328, -inf
  %v1343 = vmax.f32 %v1339, %v1342
  %v1344 = vmax.f32 %v1341, %v1343
  %v1345 = vsel %vm443, %v1315, -inf
  %v1346 = vsel %vm443, %v1317, -inf
  %v1347 = vsel %vm443, %v1319, -inf
  %v1348 = vmax.f32 %v1345, %v1347
  %v1349 = vsel %vm443, %v1321, -inf
  %v1350 = vmax.f32 %v1346, %v1349
  %v1351 = vsel %vm443, %v1323, -inf
  %v1352 = vmax.f32 %v1348, %v1351
  %v1353 = vsel %vm443, %v1325, -inf
  %v1354 = vmax.f32 %v1350, %v1353
  %v1355 = vsel %vm443, %v1327, -inf
  %v1356 = vmax.f32 %v1352, %v1355
  %v1357 = vsel %vm443, %v1329, -inf
  %v1358 = vmax.f32 %v1354, %v1357
  %v1359 = vmax.f32 %v1356, %v1358
  %v1360 = vmax.f32 %v1132, %v1344
  %v1361 = vmax.f32 %v1133, %v1359
  %v1362 = vld [vmem:[#allocation2 + $0x20] sm:$0xff]
  %v1363 = vld [vmem:[%s5 + $0x20] sm:$0xff]
  %v1364 = vsub.f32 1.0, %v1363
  %v1365 = vmul.f32 %v1364, 1e+30
  %v1367 = vrot.slane %v1362, 1
  %v1368 = vrot.slane %v1362, 2
  %v1369 = vrot.slane %v1362, 3
  %v1370 = vrot.slane %v1362, 4
  %v1371 = vrot.slane %v1362, 5
  %v1372 = vrot.slane %v1362, 6
  %v1373 = vrot.slane %v1362, 7
  %v1374 = vperm.slane %v1365, 0
  %v1375 = vlaneseq
  %v1376 = vshrl.u32 %v1375, 7
  %1378 = vset.pattern.permute.xlu0 %v1376
  %1379 = vperm.xlu0 %1378, %v1374
  %v1380 = vpop.permute.xlu0 %1379
  %v1381 = vlaneseq
  %v1382 = vshrl.u32 %v1381, 7
  %v1383 = vadd.s32 %v1382, 8
  %1384 = vset.pattern.permute.xlu0 %v1383
  %1385 = vperm.xlu0 %1384, %v1374
  %v1386 = vpop.permute.xlu0 %1385
  %v1387 = vperm.slane %v1365, 1
  %v1388 = vlaneseq
  %v1389 = vshrl.u32 %v1388, 7
  %1391 = vset.pattern.permute.xlu0 %v1389
  %1392 = vperm.xlu0 %1391, %v1387
  %v1393 = vpop.permute.xlu0 %1392
  %v1394 = vlaneseq
  %v1395 = vshrl.u32 %v1394, 7
  %v1396 = vadd.s32 %v1395, 8
  %1397 = vset.pattern.permute.xlu0 %v1396
  %1398 = vperm.xlu0 %1397, %v1387
  %v1399 = vpop.permute.xlu0 %1398
  %v1400 = vperm.slane %v1365, 2
  %v1401 = vlaneseq
  %v1402 = vshrl.u32 %v1401, 7
  %1404 = vset.pattern.permute.xlu0 %v1402
  %1405 = vperm.xlu0 %1404, %v1400
  %v1406 = vpop.permute.xlu0 %1405
  %v1407 = vlaneseq
  %v1408 = vshrl.u32 %v1407, 7
  %v1409 = vadd.s32 %v1408, 8
  %1410 = vset.pattern.permute.xlu0 %v1409
  %1411 = vperm.xlu0 %1410, %v1400
  %v1412 = vpop.permute.xlu0 %1411
  %v1413 = vperm.slane %v1365, 3
  %v1414 = vlaneseq
  %v1415 = vshrl.u32 %v1414, 7
  %1417 = vset.pattern.permute.xlu0 %v1415
  %1418 = vperm.xlu0 %1417, %v1413
  %v1419 = vpop.permute.xlu0 %1418
  %v1420 = vlaneseq
  %v1421 = vshrl.u32 %v1420, 7
  %v1422 = vadd.s32 %v1421, 8
  %1423 = vset.pattern.permute.xlu0 %v1422
  %1424 = vperm.xlu0 %1423, %v1413
  %v1425 = vpop.permute.xlu0 %1424
  %v1426 = vperm.slane %v1365, 4
  %v1427 = vlaneseq
  %v1428 = vshrl.u32 %v1427, 7
  %1430 = vset.pattern.permute.xlu0 %v1428
  %1431 = vperm.xlu0 %1430, %v1426
  %v1432 = vpop.permute.xlu0 %1431
  %v1433 = vlaneseq
  %v1434 = vshrl.u32 %v1433, 7
  %v1435 = vadd.s32 %v1434, 8
  %1436 = vset.pattern.permute.xlu0 %v1435
  %1437 = vperm.xlu0 %1436, %v1426
  %v1438 = vpop.permute.xlu0 %1437
  %v1439 = vperm.slane %v1365, 5
  %v1440 = vlaneseq
  %v1441 = vshrl.u32 %v1440, 7
  %1443 = vset.pattern.permute.xlu0 %v1441
  %1444 = vperm.xlu0 %1443, %v1439
  %v1445 = vpop.permute.xlu0 %1444
  %v1446 = vlaneseq
  %v1447 = vshrl.u32 %v1446, 7
  %v1448 = vadd.s32 %v1447, 8
  %1449 = vset.pattern.permute.xlu0 %v1448
  %1450 = vperm.xlu0 %1449, %v1439
  %v1451 = vpop.permute.xlu0 %1450
  %v1452 = vperm.slane %v1365, 6
  %v1453 = vlaneseq
  %v1454 = vshrl.u32 %v1453, 7
  %1456 = vset.pattern.permute.xlu0 %v1454
  %1457 = vperm.xlu0 %1456, %v1452
  %v1458 = vpop.permute.xlu0 %1457
  %v1459 = vlaneseq
  %v1460 = vshrl.u32 %v1459, 7
  %v1461 = vadd.s32 %v1460, 8
  %1462 = vset.pattern.permute.xlu0 %v1461
  %1463 = vperm.xlu0 %1462, %v1452
  %v1464 = vpop.permute.xlu0 %1463
  %v1465 = vperm.slane %v1365, 7
  %v1466 = vlaneseq
  %v1467 = vshrl.u32 %v1466, 7
  %1469 = vset.pattern.permute.xlu0 %v1467
  %1470 = vperm.xlu0 %1469, %v1465
  %v1471 = vpop.permute.xlu0 %1470
  %v1472 = vlaneseq
  %v1473 = vshrl.u32 %v1472, 7
  %v1474 = vadd.s32 %v1473, 8
  %1475 = vset.pattern.permute.xlu0 %v1474
  %1476 = vperm.xlu0 %1475, %v1465
  %v1477 = vpop.permute.xlu0 %1476
  %v1478 = vperm.slane %v1362, 0
  %v1479 = vperm.slane %v1367, 0
  %v1480 = vperm.slane %v1368, 0
  %v1481 = vperm.slane %v1369, 0
  %v1482 = vperm.slane %v1370, 0
  %v1483 = vperm.slane %v1371, 0
  %v1484 = vperm.slane %v1372, 0
  %v1485 = vperm.slane %v1373, 0
  %v1494 = vadd.f32 %v1478, %v1380
  %v1495 = vadd.f32 %v1478, %v1386
  %v1496 = vadd.f32 %v1479, %v1393
  %v1497 = vadd.f32 %v1479, %v1399
  %v1498 = vadd.f32 %v1480, %v1406
  %v1499 = vadd.f32 %v1480, %v1412
  %v1500 = vadd.f32 %v1481, %v1419
  %v1501 = vadd.f32 %v1481, %v1425
  %v1502 = vadd.f32 %v1482, %v1432
  %v1503 = vadd.f32 %v1482, %v1438
  %v1504 = vadd.f32 %v1483, %v1445
  %v1505 = vadd.f32 %v1483, %v1451
  %v1506 = vadd.f32 %v1484, %v1458
  %v1507 = vadd.f32 %v1484, %v1464
  %v1508 = vadd.f32 %v1485, %v1471
  %v1509 = vadd.f32 %v1485, %v1477
  %v1510 = vsel %vm443, %v1494, inf
  %v1511 = vsel %vm443, %v1496, inf
  %v1512 = vsel %vm443, %v1498, inf
  %v1513 = vmin.f32 %v1510, %v1512
  %v1514 = vsel %vm443, %v1500, inf
  %v1515 = vmin.f32 %v1511, %v1514
  %v1516 = vsel %vm443, %v1502, inf
  %v1517 = vmin.f32 %v1513, %v1516
  %v1518 = vsel %vm443, %v1504, inf
  %v1519 = vmin.f32 %v1515, %v1518
  %v1520 = vsel %vm443, %v1506, inf
  %v1521 = vmin.f32 %v1517, %v1520
  %v1522 = vsel %vm443, %v1508, inf
  %v1523 = vmin.f32 %v1519, %v1522
  %v1524 = vmin.f32 %v1521, %v1523
  %v1525 = vsel %vm443, %v1495, inf
  %v1526 = vsel %vm443, %v1497, inf
  %v1527 = vsel %vm443, %v1499, inf
  %v1528 = vmin.f32 %v1525, %v1527
  %v1529 = vsel %vm443, %v1501, inf
  %v1530 = vmin.f32 %v1526, %v1529
  %v1531 = vsel %vm443, %v1503, inf
  %v1532 = vmin.f32 %v1528, %v1531
  %v1533 = vsel %vm443, %v1505, inf
  %v1534 = vmin.f32 %v1530, %v1533
  %v1535 = vsel %vm443, %v1507, inf
  %v1536 = vmin.f32 %v1532, %v1535
  %v1537 = vsel %vm443, %v1509, inf
  %v1538 = vmin.f32 %v1534, %v1537
  %v1539 = vmin.f32 %v1536, %v1538
  %v1540 = vmin.f32 %v1312, %v1524
  %v1541 = vmin.f32 %v1313, %v1539
  %v1542 = vsub.f32 %v1478, %v1380
  %v1543 = vsub.f32 %v1478, %v1386
  %v1544 = vsub.f32 %v1479, %v1393
  %v1545 = vsub.f32 %v1479, %v1399
  %v1546 = vsub.f32 %v1480, %v1406
  %v1547 = vsub.f32 %v1480, %v1412
  %v1548 = vsub.f32 %v1481, %v1419
  %v1549 = vsub.f32 %v1481, %v1425
  %v1550 = vsub.f32 %v1482, %v1432
  %v1551 = vsub.f32 %v1482, %v1438
  %v1552 = vsub.f32 %v1483, %v1445
  %v1553 = vsub.f32 %v1483, %v1451
  %v1554 = vsub.f32 %v1484, %v1458
  %v1555 = vsub.f32 %v1484, %v1464
  %v1556 = vsub.f32 %v1485, %v1471
  %v1557 = vsub.f32 %v1485, %v1477
  %v1558 = vsel %vm443, %v1542, -inf
  %v1559 = vsel %vm443, %v1544, -inf
  %v1560 = vsel %vm443, %v1546, -inf
  %v1561 = vmax.f32 %v1558, %v1560
  %v1562 = vsel %vm443, %v1548, -inf
  %v1563 = vmax.f32 %v1559, %v1562
  %v1564 = vsel %vm443, %v1550, -inf
  %v1565 = vmax.f32 %v1561, %v1564
  %v1566 = vsel %vm443, %v1552, -inf
  %v1567 = vmax.f32 %v1563, %v1566
  %v1568 = vsel %vm443, %v1554, -inf
  %v1569 = vmax.f32 %v1565, %v1568
  %v1570 = vsel %vm443, %v1556, -inf
  %v1571 = vmax.f32 %v1567, %v1570
  %v1572 = vmax.f32 %v1569, %v1571
  %v1573 = vsel %vm443, %v1543, -inf
  %v1574 = vsel %vm443, %v1545, -inf
  %v1575 = vsel %vm443, %v1547, -inf
  %v1576 = vmax.f32 %v1573, %v1575
  %v1577 = vsel %vm443, %v1549, -inf
  %v1578 = vmax.f32 %v1574, %v1577
  %v1579 = vsel %vm443, %v1551, -inf
  %v1580 = vmax.f32 %v1576, %v1579
  %v1581 = vsel %vm443, %v1553, -inf
  %v1582 = vmax.f32 %v1578, %v1581
  %v1583 = vsel %vm443, %v1555, -inf
  %v1584 = vmax.f32 %v1580, %v1583
  %v1585 = vsel %vm443, %v1557, -inf
  %v1586 = vmax.f32 %v1582, %v1585
  %v1587 = vmax.f32 %v1584, %v1586
  %v1588 = vmax.f32 %v1360, %v1572
  %v1589 = vmax.f32 %v1361, %v1587
  %v1590 = vld [vmem:[#allocation2 + $0x28] sm:$0xff]
  %v1591 = vld [vmem:[%s5 + $0x28] sm:$0xff]
  %v1592 = vsub.f32 1.0, %v1591
  %v1593 = vmul.f32 %v1592, 1e+30
  %v1595 = vrot.slane %v1590, 1
  %v1596 = vrot.slane %v1590, 2
  %v1597 = vrot.slane %v1590, 3
  %v1598 = vrot.slane %v1590, 4
  %v1599 = vrot.slane %v1590, 5
  %v1600 = vrot.slane %v1590, 6
  %v1601 = vrot.slane %v1590, 7
  %v1602 = vperm.slane %v1593, 0
  %v1603 = vlaneseq
  %v1604 = vshrl.u32 %v1603, 7
  %1606 = vset.pattern.permute.xlu0 %v1604
  %1607 = vperm.xlu0 %1606, %v1602
  %v1608 = vpop.permute.xlu0 %1607
  %v1609 = vlaneseq
  %v1610 = vshrl.u32 %v1609, 7
  %v1611 = vadd.s32 %v1610, 8
  %1612 = vset.pattern.permute.xlu0 %v1611
  %1613 = vperm.xlu0 %1612, %v1602
  %v1614 = vpop.permute.xlu0 %1613
  %v1615 = vperm.slane %v1593, 1
  %v1616 = vlaneseq
  %v1617 = vshrl.u32 %v1616, 7
  %1619 = vset.pattern.permute.xlu0 %v1617
  %1620 = vperm.xlu0 %1619, %v1615
  %v1621 = vpop.permute.xlu0 %1620
  %v1622 = vlaneseq
  %v1623 = vshrl.u32 %v1622, 7
  %v1624 = vadd.s32 %v1623, 8
  %1625 = vset.pattern.permute.xlu0 %v1624
  %1626 = vperm.xlu0 %1625, %v1615
  %v1627 = vpop.permute.xlu0 %1626
  %v1628 = vperm.slane %v1593, 2
  %v1629 = vlaneseq
  %v1630 = vshrl.u32 %v1629, 7
  %1632 = vset.pattern.permute.xlu0 %v1630
  %1633 = vperm.xlu0 %1632, %v1628
  %v1634 = vpop.permute.xlu0 %1633
  %v1635 = vlaneseq
  %v1636 = vshrl.u32 %v1635, 7
  %v1637 = vadd.s32 %v1636, 8
  %1638 = vset.pattern.permute.xlu0 %v1637
  %1639 = vperm.xlu0 %1638, %v1628
  %v1640 = vpop.permute.xlu0 %1639
  %v1641 = vperm.slane %v1593, 3
  %v1642 = vlaneseq
  %v1643 = vshrl.u32 %v1642, 7
  %1645 = vset.pattern.permute.xlu0 %v1643
  %1646 = vperm.xlu0 %1645, %v1641
  %v1647 = vpop.permute.xlu0 %1646
  %v1648 = vlaneseq
  %v1649 = vshrl.u32 %v1648, 7
  %v1650 = vadd.s32 %v1649, 8
  %1651 = vset.pattern.permute.xlu0 %v1650
  %1652 = vperm.xlu0 %1651, %v1641
  %v1653 = vpop.permute.xlu0 %1652
  %v1654 = vperm.slane %v1593, 4
  %v1655 = vlaneseq
  %v1656 = vshrl.u32 %v1655, 7
  %1658 = vset.pattern.permute.xlu0 %v1656
  %1659 = vperm.xlu0 %1658, %v1654
  %v1660 = vpop.permute.xlu0 %1659
  %v1661 = vlaneseq
  %v1662 = vshrl.u32 %v1661, 7
  %v1663 = vadd.s32 %v1662, 8
  %1664 = vset.pattern.permute.xlu0 %v1663
  %1665 = vperm.xlu0 %1664, %v1654
  %v1666 = vpop.permute.xlu0 %1665
  %v1667 = vperm.slane %v1593, 5
  %v1668 = vlaneseq
  %v1669 = vshrl.u32 %v1668, 7
  %1671 = vset.pattern.permute.xlu0 %v1669
  %1672 = vperm.xlu0 %1671, %v1667
  %v1673 = vpop.permute.xlu0 %1672
  %v1674 = vlaneseq
  %v1675 = vshrl.u32 %v1674, 7
  %v1676 = vadd.s32 %v1675, 8
  %1677 = vset.pattern.permute.xlu0 %v1676
  %1678 = vperm.xlu0 %1677, %v1667
  %v1679 = vpop.permute.xlu0 %1678
  %v1680 = vperm.slane %v1593, 6
  %v1681 = vlaneseq
  %v1682 = vshrl.u32 %v1681, 7
  %1684 = vset.pattern.permute.xlu0 %v1682
  %1685 = vperm.xlu0 %1684, %v1680
  %v1686 = vpop.permute.xlu0 %1685
  %v1687 = vlaneseq
  %v1688 = vshrl.u32 %v1687, 7
  %v1689 = vadd.s32 %v1688, 8
  %1690 = vset.pattern.permute.xlu0 %v1689
  %1691 = vperm.xlu0 %1690, %v1680
  %v1692 = vpop.permute.xlu0 %1691
  %v1693 = vperm.slane %v1593, 7
  %v1694 = vlaneseq
  %v1695 = vshrl.u32 %v1694, 7
  %1697 = vset.pattern.permute.xlu0 %v1695
  %1698 = vperm.xlu0 %1697, %v1693
  %v1699 = vpop.permute.xlu0 %1698
  %v1700 = vlaneseq
  %v1701 = vshrl.u32 %v1700, 7
  %v1702 = vadd.s32 %v1701, 8
  %1703 = vset.pattern.permute.xlu0 %v1702
  %1704 = vperm.xlu0 %1703, %v1693
  %v1705 = vpop.permute.xlu0 %1704
  %v1706 = vperm.slane %v1590, 0
  %v1707 = vperm.slane %v1595, 0
  %v1708 = vperm.slane %v1596, 0
  %v1709 = vperm.slane %v1597, 0
  %v1710 = vperm.slane %v1598, 0
  %v1711 = vperm.slane %v1599, 0
  %v1712 = vperm.slane %v1600, 0
  %v1713 = vperm.slane %v1601, 0
  %v1722 = vadd.f32 %v1706, %v1608
  %v1723 = vadd.f32 %v1706, %v1614
  %v1724 = vadd.f32 %v1707, %v1621
  %v1725 = vadd.f32 %v1707, %v1627
  %v1726 = vadd.f32 %v1708, %v1634
  %v1727 = vadd.f32 %v1708, %v1640
  %v1728 = vadd.f32 %v1709, %v1647
  %v1729 = vadd.f32 %v1709, %v1653
  %v1730 = vadd.f32 %v1710, %v1660
  %v1731 = vadd.f32 %v1710, %v1666
  %v1732 = vadd.f32 %v1711, %v1673
  %v1733 = vadd.f32 %v1711, %v1679
  %v1734 = vadd.f32 %v1712, %v1686
  %v1735 = vadd.f32 %v1712, %v1692
  %v1736 = vadd.f32 %v1713, %v1699
  %v1737 = vadd.f32 %v1713, %v1705
  %v1738 = vsel %vm443, %v1722, inf
  %v1739 = vsel %vm443, %v1724, inf
  %v1740 = vsel %vm443, %v1726, inf
  %v1741 = vmin.f32 %v1738, %v1740
  %v1742 = vsel %vm443, %v1728, inf
  %v1743 = vmin.f32 %v1739, %v1742
  %v1744 = vsel %vm443, %v1730, inf
  %v1745 = vmin.f32 %v1741, %v1744
  %v1746 = vsel %vm443, %v1732, inf
  %v1747 = vmin.f32 %v1743, %v1746
  %v1748 = vsel %vm443, %v1734, inf
  %v1749 = vmin.f32 %v1745, %v1748
  %v1750 = vsel %vm443, %v1736, inf
  %v1751 = vmin.f32 %v1747, %v1750
  %v1752 = vmin.f32 %v1749, %v1751
  %v1753 = vsel %vm443, %v1723, inf
  %v1754 = vsel %vm443, %v1725, inf
  %v1755 = vsel %vm443, %v1727, inf
  %v1756 = vmin.f32 %v1753, %v1755
  %v1757 = vsel %vm443, %v1729, inf
  %v1758 = vmin.f32 %v1754, %v1757
  %v1759 = vsel %vm443, %v1731, inf
  %v1760 = vmin.f32 %v1756, %v1759
  %v1761 = vsel %vm443, %v1733, inf
  %v1762 = vmin.f32 %v1758, %v1761
  %v1763 = vsel %vm443, %v1735, inf
  %v1764 = vmin.f32 %v1760, %v1763
  %v1765 = vsel %vm443, %v1737, inf
  %v1766 = vmin.f32 %v1762, %v1765
  %v1767 = vmin.f32 %v1764, %v1766
  %v1768 = vmin.f32 %v1540, %v1752
  %v1769 = vmin.f32 %v1541, %v1767
  %v1770 = vsub.f32 %v1706, %v1608
  %v1771 = vsub.f32 %v1706, %v1614
  %v1772 = vsub.f32 %v1707, %v1621
  %v1773 = vsub.f32 %v1707, %v1627
  %v1774 = vsub.f32 %v1708, %v1634
  %v1775 = vsub.f32 %v1708, %v1640
  %v1776 = vsub.f32 %v1709, %v1647
  %v1777 = vsub.f32 %v1709, %v1653
  %v1778 = vsub.f32 %v1710, %v1660
  %v1779 = vsub.f32 %v1710, %v1666
  %v1780 = vsub.f32 %v1711, %v1673
  %v1781 = vsub.f32 %v1711, %v1679
  %v1782 = vsub.f32 %v1712, %v1686
  %v1783 = vsub.f32 %v1712, %v1692
  %v1784 = vsub.f32 %v1713, %v1699
  %v1785 = vsub.f32 %v1713, %v1705
  %v1786 = vsel %vm443, %v1770, -inf
  %v1787 = vsel %vm443, %v1772, -inf
  %v1788 = vsel %vm443, %v1774, -inf
  %v1789 = vmax.f32 %v1786, %v1788
  %v1790 = vsel %vm443, %v1776, -inf
  %v1791 = vmax.f32 %v1787, %v1790
  %v1792 = vsel %vm443, %v1778, -inf
  %v1793 = vmax.f32 %v1789, %v1792
  %v1794 = vsel %vm443, %v1780, -inf
  %v1795 = vmax.f32 %v1791, %v1794
  %v1796 = vsel %vm443, %v1782, -inf
  %v1797 = vmax.f32 %v1793, %v1796
  %v1798 = vsel %vm443, %v1784, -inf
  %v1799 = vmax.f32 %v1795, %v1798
  %v1800 = vmax.f32 %v1797, %v1799
  %v1801 = vsel %vm443, %v1771, -inf
  %v1802 = vsel %vm443, %v1773, -inf
  %v1803 = vsel %vm443, %v1775, -inf
  %v1804 = vmax.f32 %v1801, %v1803
  %v1805 = vsel %vm443, %v1777, -inf
  %v1806 = vmax.f32 %v1802, %v1805
  %v1807 = vsel %vm443, %v1779, -inf
  %v1808 = vmax.f32 %v1804, %v1807
  %v1809 = vsel %vm443, %v1781, -inf
  %v1810 = vmax.f32 %v1806, %v1809
  %v1811 = vsel %vm443, %v1783, -inf
  %v1812 = vmax.f32 %v1808, %v1811
  %v1813 = vsel %vm443, %v1785, -inf
  %v1814 = vmax.f32 %v1810, %v1813
  %v1815 = vmax.f32 %v1812, %v1814
  %v1816 = vmax.f32 %v1588, %v1800
  %v1817 = vmax.f32 %v1589, %v1815
  %v1818 = vsel %vm164, 1, 0
  %v1819 = vsel %vm165, 1, 0
  %1820 = vset.pattern.permute.xlu0 0
  %1821 = vperm.xlu0 %1820, %v1818
  %v1822 = vpop.permute.xlu0 %1821
  %1823 = vset.pattern.permute.xlu0 0
  %1824 = vperm.xlu0 %1823, %v1819
  %v1825 = vpop.permute.xlu0 %1824
  %vm1826 = vcmp.eq.s32.totalorder %v1822, 1
  %vm1827 = vcmp.eq.s32.totalorder %v1825, 1
  %v1828 = vsel %vm1826, %v1768, 0.0
  %v1829 = vsel %vm1827, %v1769, 0.0
  %v1830 = vsel %vm1826, %v1816, 0.0
  %v1831 = vsel %vm1827, %v1817, 0.0
  %v1832 = vld [vmem:[%s19] sm:$0xff]
  %v1833 = vld [vmem:[%s19 + $0x8] sm:$0xff]
  %v1834 = vld [vmem:[%s19 + $0x10] sm:$0xff]
  %v1835 = vld [vmem:[%s19 + $0x18] sm:$0xff]
  %s1836 = scalar_lea.vmem %s19, 32
  %v1837 = vld [vmem:[%s1836] sm:$0xff]
  %v1838 = vld [vmem:[%s1836 + $0x8] sm:$0xff]
  %v1839 = vld [vmem:[%s1836 + $0x10] sm:$0xff]
  %v1840 = vld [vmem:[%s1836 + $0x18] sm:$0xff]
  %s1841 = scalar_lea.vmem %s19, 64
  %v1842 = vld [vmem:[%s1841] sm:$0xff]
  %v1843 = vld [vmem:[%s1841 + $0x8] sm:$0xff]
  %v1844 = vld [vmem:[%s1841 + $0x10] sm:$0xff]
  %v1845 = vld [vmem:[%s1841 + $0x18] sm:$0xff]
  %s1846 = scalar_lea.vmem %s19, 96
  %v1847 = vld [vmem:[%s1846] sm:$0xff]
  %v1848 = vld [vmem:[%s1846 + $0x8] sm:$0xff]
  %v1849 = vld [vmem:[%s1846 + $0x10] sm:$0xff]
  %v1850 = vld [vmem:[%s1846 + $0x18] sm:$0xff]
  %v1852 = vsel %vm443, %v1828, 0
  %v1855 = vsel %vm443, %v1829, 0
  %1857 = vmatpush.msra.mxu0 0.0
  %1858 = vmatpush.msra.mxu0 0.0
  %1859 = vmatpush.msra.mxu0 0.0
  %1860 = vmatpush.msra.mxu0 0.0
  %1861 = vmatpush.msra.mxu0 0.0
  %1862 = vmatpush.msra.mxu0 0.0
  %1863 = vmatpush.msra.mxu0 0.0
  %1864 = vmatpush.msra.mxu0 0.0
  %1865 = vmatpush.msra.mxu0 0.0
  %1866 = vmatpush.msra.mxu0 0.0
  %1867 = vmatpush.msra.mxu0 0.0
  %1868 = vmatpush.msra.mxu0 0.0
  %1869 = vmatpush.msra.mxu0 %v1850
  %1870 = vmatpush.msra.mxu0 %v1849
  %1871 = vmatpush.msra.mxu0 %v1848
  %1872 = vmatpush.msra.mxu0 %v1847
  %1873 = vmatmul.f32.gmra.mxu0 %v1852
  %v1874 = vpop.f32.mrf.mxu0
  %v1875 = vadd.f32 0.0, %v1874
  %1876 = vmatmul.f32.gmra.mxu0 %v1855
  %v1877 = vpop.f32.mrf.mxu0
  %v1878 = vadd.f32 0.0, %v1877
  %1879 = vdwg.mxu0
  %v1881 = vsel %vm443, %v407, 0
  %v1884 = vsel %vm443, %v408, 0
  %1886 = vmatpush.msra.mxu0 0.0
  %1887 = vmatpush.msra.mxu0 0.0
  %1888 = vmatpush.msra.mxu0 0.0
  %1889 = vmatpush.msra.mxu0 0.0
  %1890 = vmatpush.msra.mxu0 0.0
  %1891 = vmatpush.msra.mxu0 0.0
  %1892 = vmatpush.msra.mxu0 0.0
  %1893 = vmatpush.msra.mxu0 0.0
  %1894 = vmatpush.msra.mxu0 0.0
  %1895 = vmatpush.msra.mxu0 0.0
  %1896 = vmatpush.msra.mxu0 0.0
  %1897 = vmatpush.msra.mxu0 0.0
  %1898 = vmatpush.msra.mxu0 %v1835
  %1899 = vmatpush.msra.mxu0 %v1834
  %1900 = vmatpush.msra.mxu0 %v1833
  %1901 = vmatpush.msra.mxu0 %v1832
  %1902 = vmatmul.f32.gmra.mxu0 %v1881
  %v1903 = vpop.f32.mrf.mxu0
  %v1904 = vadd.f32 %v1875, %v1903
  %1905 = vmatmul.f32.gmra.mxu0 %v1884
  %v1906 = vpop.f32.mrf.mxu0
  %v1907 = vadd.f32 %v1878, %v1906
  %1908 = vdwg.mxu0
  %s1909 = scalar_lea.vmem %s19, 128
  %v1910 = vld [vmem:[%s1909] sm:$0xff]
  %v1911 = vld [vmem:[%s1909 + $0x8] sm:$0xff]
  %v1912 = vld [vmem:[%s1909 + $0x10] sm:$0xff]
  %v1913 = vld [vmem:[%s1909 + $0x18] sm:$0xff]
  %1914 = vmatpush.msra.mxu0 0.0
  %1915 = vmatpush.msra.mxu0 0.0
  %1916 = vmatpush.msra.mxu0 0.0
  %1917 = vmatpush.msra.mxu0 0.0
  %1918 = vmatpush.msra.mxu0 0.0
  %1919 = vmatpush.msra.mxu0 0.0
  %1920 = vmatpush.msra.mxu0 0.0
  %1921 = vmatpush.msra.mxu0 0.0
  %1922 = vmatpush.msra.mxu0 0.0
  %1923 = vmatpush.msra.mxu0 0.0
  %1924 = vmatpush.msra.mxu0 0.0
  %1925 = vmatpush.msra.mxu0 0.0
  %1926 = vmatpush.msra.mxu0 %v1913
  %1927 = vmatpush.msra.mxu0 %v1912
  %1928 = vmatpush.msra.mxu0 %v1911
  %1929 = vmatpush.msra.mxu0 %v1910
  %1930 = vmatmul.f32.gmra.mxu0 %v1852
  %v1931 = vpop.f32.mrf.mxu0
  %v1932 = vadd.f32 0.0, %v1931
  %1933 = vmatmul.f32.gmra.mxu0 %v1855
  %v1934 = vpop.f32.mrf.mxu0
  %v1935 = vadd.f32 0.0, %v1934
  %1936 = vdwg.mxu0
  %1937 = vmatpush.msra.mxu0 0.0
  %1938 = vmatpush.msra.mxu0 0.0
  %1939 = vmatpush.msra.mxu0 0.0
  %1940 = vmatpush.msra.mxu0 0.0
  %1941 = vmatpush.msra.mxu0 0.0
  %1942 = vmatpush.msra.mxu0 0.0
  %1943 = vmatpush.msra.mxu0 0.0
  %1944 = vmatpush.msra.mxu0 0.0
  %1945 = vmatpush.msra.mxu0 0.0
  %1946 = vmatpush.msra.mxu0 0.0
  %1947 = vmatpush.msra.mxu0 0.0
  %1948 = vmatpush.msra.mxu0 0.0
  %1949 = vmatpush.msra.mxu0 %v1840
  %1950 = vmatpush.msra.mxu0 %v1839
  %1951 = vmatpush.msra.mxu0 %v1838
  %1952 = vmatpush.msra.mxu0 %v1837
  %1953 = vmatmul.f32.gmra.mxu0 %v1881
  %v1954 = vpop.f32.mrf.mxu0
  %v1955 = vadd.f32 %v1932, %v1954
  %1956 = vmatmul.f32.gmra.mxu0 %v1884
  %v1957 = vpop.f32.mrf.mxu0
  %v1958 = vadd.f32 %v1935, %v1957
  %1959 = vdwg.mxu0
  %s1960 = scalar_lea.vmem %s19, 160
  %v1961 = vld [vmem:[%s1960] sm:$0xff]
  %v1962 = vld [vmem:[%s1960 + $0x8] sm:$0xff]
  %v1963 = vld [vmem:[%s1960 + $0x10] sm:$0xff]
  %v1964 = vld [vmem:[%s1960 + $0x18] sm:$0xff]
  %1965 = vmatpush.msra.mxu0 0.0
  %1966 = vmatpush.msra.mxu0 0.0
  %1967 = vmatpush.msra.mxu0 0.0
  %1968 = vmatpush.msra.mxu0 0.0
  %1969 = vmatpush.msra.mxu0 0.0
  %1970 = vmatpush.msra.mxu0 0.0
  %1971 = vmatpush.msra.mxu0 0.0
  %1972 = vmatpush.msra.mxu0 0.0
  %1973 = vmatpush.msra.mxu0 0.0
  %1974 = vmatpush.msra.mxu0 0.0
  %1975 = vmatpush.msra.mxu0 0.0
  %1976 = vmatpush.msra.mxu0 0.0
  %1977 = vmatpush.msra.mxu0 %v1964
  %1978 = vmatpush.msra.mxu0 %v1963
  %1979 = vmatpush.msra.mxu0 %v1962
  %1980 = vmatpush.msra.mxu0 %v1961
  %1981 = vmatmul.f32.gmra.mxu0 %v1852
  %v1982 = vpop.f32.mrf.mxu0
  %v1983 = vadd.f32 0.0, %v1982
  %1984 = vmatmul.f32.gmra.mxu0 %v1855
  %v1985 = vpop.f32.mrf.mxu0
  %v1986 = vadd.f32 0.0, %v1985
  %1987 = vdwg.mxu0
  %1988 = vmatpush.msra.mxu0 0.0
  %1989 = vmatpush.msra.mxu0 0.0
  %1990 = vmatpush.msra.mxu0 0.0
  %1991 = vmatpush.msra.mxu0 0.0
  %1992 = vmatpush.msra.mxu0 0.0
  %1993 = vmatpush.msra.mxu0 0.0
  %1994 = vmatpush.msra.mxu0 0.0
  %1995 = vmatpush.msra.mxu0 0.0
  %1996 = vmatpush.msra.mxu0 0.0
  %1997 = vmatpush.msra.mxu0 0.0
  %1998 = vmatpush.msra.mxu0 0.0
  %1999 = vmatpush.msra.mxu0 0.0
  %2000 = vmatpush.msra.mxu0 %v1845
  %2001 = vmatpush.msra.mxu0 %v1844
  %2002 = vmatpush.msra.mxu0 %v1843
  %2003 = vmatpush.msra.mxu0 %v1842
  %2004 = vmatmul.f32.gmra.mxu0 %v1881
  %v2005 = vpop.f32.mrf.mxu0
  %v2006 = vadd.f32 %v1983, %v2005
  %2007 = vmatmul.f32.gmra.mxu0 %v1884
  %v2008 = vpop.f32.mrf.mxu0
  %v2009 = vadd.f32 %v1986, %v2008
  %2010 = vdwg.mxu0
  %s2011 = scalar_lea.vmem %s19, 192
  %v2012 = vld [vmem:[%s2011] sm:$0xff]
  %v2013 = vld [vmem:[%s2011 + $0x8] sm:$0xff]
  %v2014 = vld [vmem:[%s2011 + $0x10] sm:$0xff]
  %v2015 = vld [vmem:[%s2011 + $0x18] sm:$0xff]
  %v2017 = vsel %vm443, %v1830, 0
  %v2020 = vsel %vm443, %v1831, 0
  %2022 = vmatpush.msra.mxu0 0.0
  %2023 = vmatpush.msra.mxu0 0.0
  %2024 = vmatpush.msra.mxu0 0.0
  %2025 = vmatpush.msra.mxu0 0.0
  %2026 = vmatpush.msra.mxu0 0.0
  %2027 = vmatpush.msra.mxu0 0.0
  %2028 = vmatpush.msra.mxu0 0.0
  %2029 = vmatpush.msra.mxu0 0.0
  %2030 = vmatpush.msra.mxu0 0.0
  %2031 = vmatpush.msra.mxu0 0.0
  %2032 = vmatpush.msra.mxu0 0.0
  %2033 = vmatpush.msra.mxu0 0.0
  %2034 = vmatpush.msra.mxu0 %v2015
  %2035 = vmatpush.msra.mxu0 %v2014
  %2036 = vmatpush.msra.mxu0 %v2013
  %2037 = vmatpush.msra.mxu0 %v2012
  %2038 = vmatmul.f32.gmra.mxu0 %v2017
  %v2039 = vpop.f32.mrf.mxu0
  %v2040 = vadd.f32 0.0, %v2039
  %2041 = vmatmul.f32.gmra.mxu0 %v2020
  %v2042 = vpop.f32.mrf.mxu0
  %v2043 = vadd.f32 0.0, %v2042
  %2044 = vdwg.mxu0
  %v2045 = vadd.f32 %v1904, %v2040
  %v2046 = vadd.f32 %v1907, %v2043
  %s2047 = scalar_lea.vmem %s19, 224
  %v2048 = vld [vmem:[%s2047] sm:$0xff]
  %v2049 = vld [vmem:[%s2047 + $0x8] sm:$0xff]
  %v2050 = vld [vmem:[%s2047 + $0x10] sm:$0xff]
  %v2051 = vld [vmem:[%s2047 + $0x18] sm:$0xff]
  %2052 = vmatpush.msra.mxu0 0.0
  %2053 = vmatpush.msra.mxu0 0.0
  %2054 = vmatpush.msra.mxu0 0.0
  %2055 = vmatpush.msra.mxu0 0.0
  %2056 = vmatpush.msra.mxu0 0.0
  %2057 = vmatpush.msra.mxu0 0.0
  %2058 = vmatpush.msra.mxu0 0.0
  %2059 = vmatpush.msra.mxu0 0.0
  %2060 = vmatpush.msra.mxu0 0.0
  %2061 = vmatpush.msra.mxu0 0.0
  %2062 = vmatpush.msra.mxu0 0.0
  %2063 = vmatpush.msra.mxu0 0.0
  %2064 = vmatpush.msra.mxu0 %v2051
  %2065 = vmatpush.msra.mxu0 %v2050
  %2066 = vmatpush.msra.mxu0 %v2049
  %2067 = vmatpush.msra.mxu0 %v2048
  %2068 = vmatmul.f32.gmra.mxu0 %v2017
  %v2069 = vpop.f32.mrf.mxu0
  %v2070 = vadd.f32 0.0, %v2069
  %2071 = vmatmul.f32.gmra.mxu0 %v2020
  %v2072 = vpop.f32.mrf.mxu0
  %v2073 = vadd.f32 0.0, %v2072
  %2074 = vdwg.mxu0
  %v2075 = vadd.f32 %v1955, %v2070
  %v2076 = vadd.f32 %v1958, %v2073
  %s2077 = scalar_lea.vmem %s19, 256
  %v2078 = vld [vmem:[%s2077] sm:$0xff]
  %v2079 = vld [vmem:[%s2077 + $0x8] sm:$0xff]
  %v2080 = vld [vmem:[%s2077 + $0x10] sm:$0xff]
  %v2081 = vld [vmem:[%s2077 + $0x18] sm:$0xff]
  %2082 = vmatpush.msra.mxu0 0.0
  %2083 = vmatpush.msra.mxu0 0.0
  %2084 = vmatpush.msra.mxu0 0.0
  %2085 = vmatpush.msra.mxu0 0.0
  %2086 = vmatpush.msra.mxu0 0.0
  %2087 = vmatpush.msra.mxu0 0.0
  %2088 = vmatpush.msra.mxu0 0.0
  %2089 = vmatpush.msra.mxu0 0.0
  %2090 = vmatpush.msra.mxu0 0.0
  %2091 = vmatpush.msra.mxu0 0.0
  %2092 = vmatpush.msra.mxu0 0.0
  %2093 = vmatpush.msra.mxu0 0.0
  %2094 = vmatpush.msra.mxu0 %v2081
  %2095 = vmatpush.msra.mxu0 %v2080
  %2096 = vmatpush.msra.mxu0 %v2079
  %2097 = vmatpush.msra.mxu0 %v2078
  %2098 = vmatmul.f32.gmra.mxu0 %v2017
  %v2099 = vpop.f32.mrf.mxu0
  %v2100 = vadd.f32 0.0, %v2099
  %2101 = vmatmul.f32.gmra.mxu0 %v2020
  %v2102 = vpop.f32.mrf.mxu0
  %v2103 = vadd.f32 0.0, %v2102
  %2104 = vdwg.mxu0
  %v2105 = vadd.f32 %v2006, %v2100
  %v2106 = vadd.f32 %v2009, %v2103
  %s2107 = scalar_lea.vmem %s19, 288
  %v2108 = vld [vmem:[%s2107] sm:$0xff]
  %v2109 = vld [vmem:[%s2107 + $0x8] sm:$0xff]
  %v2110 = vld [vmem:[%s2107 + $0x10] sm:$0xff]
  %v2111 = vld [vmem:[%s2107 + $0x18] sm:$0xff]
  %v2113 = vsel %vm443, %v430, 0
  %v2116 = vsel %vm443, %v442, 0
  %2118 = vmatpush.msra.mxu0 0.0
  %2119 = vmatpush.msra.mxu0 0.0
  %2120 = vmatpush.msra.mxu0 0.0
  %2121 = vmatpush.msra.mxu0 0.0
  %2122 = vmatpush.msra.mxu0 0.0
  %2123 = vmatpush.msra.mxu0 0.0
  %2124 = vmatpush.msra.mxu0 0.0
  %2125 = vmatpush.msra.mxu0 0.0
  %2126 = vmatpush.msra.mxu0 0.0
  %2127 = vmatpush.msra.mxu0 0.0
  %2128 = vmatpush.msra.mxu0 0.0
  %2129 = vmatpush.msra.mxu0 0.0
  %2130 = vmatpush.msra.mxu0 %v2111
  %2131 = vmatpush.msra.mxu0 %v2110
  %2132 = vmatpush.msra.mxu0 %v2109
  %2133 = vmatpush.msra.mxu0 %v2108
  %2134 = vmatmul.f32.gmra.mxu0 %v2113
  %v2135 = vpop.f32.mrf.mxu0
  %v2136 = vadd.f32 0.0, %v2135
  %2137 = vmatmul.f32.gmra.mxu0 %v2116
  %v2138 = vpop.f32.mrf.mxu0
  %v2139 = vadd.f32 0.0, %v2138
  %2140 = vdwg.mxu0
  %v2141 = vadd.f32 %v2045, %v2136
  %v2142 = vadd.f32 %v2046, %v2139
  %s2143 = scalar_lea.vmem %s19, 320
  %v2144 = vld [vmem:[%s2143] sm:$0xff]
  %v2145 = vld [vmem:[%s2143 + $0x8] sm:$0xff]
  %v2146 = vld [vmem:[%s2143 + $0x10] sm:$0xff]
  %v2147 = vld [vmem:[%s2143 + $0x18] sm:$0xff]
  %2148 = vmatpush.msra.mxu0 0.0
  %2149 = vmatpush.msra.mxu0 0.0
  %2150 = vmatpush.msra.mxu0 0.0
  %2151 = vmatpush.msra.mxu0 0.0
  %2152 = vmatpush.msra.mxu0 0.0
  %2153 = vmatpush.msra.mxu0 0.0
  %2154 = vmatpush.msra.mxu0 0.0
  %2155 = vmatpush.msra.mxu0 0.0
  %2156 = vmatpush.msra.mxu0 0.0
  %2157 = vmatpush.msra.mxu0 0.0
  %2158 = vmatpush.msra.mxu0 0.0
  %2159 = vmatpush.msra.mxu0 0.0
  %2160 = vmatpush.msra.mxu0 %v2147
  %2161 = vmatpush.msra.mxu0 %v2146
  %2162 = vmatpush.msra.mxu0 %v2145
  %2163 = vmatpush.msra.mxu0 %v2144
  %2164 = vmatmul.f32.gmra.mxu0 %v2113
  %v2165 = vpop.f32.mrf.mxu0
  %v2166 = vadd.f32 0.0, %v2165
  %2167 = vmatmul.f32.gmra.mxu0 %v2116
  %v2168 = vpop.f32.mrf.mxu0
  %v2169 = vadd.f32 0.0, %v2168
  %2170 = vdwg.mxu0
  %v2171 = vadd.f32 %v2075, %v2166
  %v2172 = vadd.f32 %v2076, %v2169
  %s2173 = scalar_lea.vmem %s19, 352
  %v2174 = vld [vmem:[%s2173] sm:$0xff]
  %v2175 = vld [vmem:[%s2173 + $0x8] sm:$0xff]
  %v2176 = vld [vmem:[%s2173 + $0x10] sm:$0xff]
  %v2177 = vld [vmem:[%s2173 + $0x18] sm:$0xff]
  %2178 = vmatpush.msra.mxu0 0.0
  %2179 = vmatpush.msra.mxu0 0.0
  %2180 = vmatpush.msra.mxu0 0.0
  %2181 = vmatpush.msra.mxu0 0.0
  %2182 = vmatpush.msra.mxu0 0.0
  %2183 = vmatpush.msra.mxu0 0.0
  %2184 = vmatpush.msra.mxu0 0.0
  %2185 = vmatpush.msra.mxu0 0.0
  %2186 = vmatpush.msra.mxu0 0.0
  %2187 = vmatpush.msra.mxu0 0.0
  %2188 = vmatpush.msra.mxu0 0.0
  %2189 = vmatpush.msra.mxu0 0.0
  %2190 = vmatpush.msra.mxu0 %v2177
  %2191 = vmatpush.msra.mxu0 %v2176
  %2192 = vmatpush.msra.mxu0 %v2175
  %2193 = vmatpush.msra.mxu0 %v2174
  %2194 = vmatmul.f32.gmra.mxu0 %v2113
  %v2195 = vpop.f32.mrf.mxu0
  %v2196 = vadd.f32 0.0, %v2195
  %2197 = vmatmul.f32.gmra.mxu0 %v2116
  %v2198 = vpop.f32.mrf.mxu0
  %v2199 = vadd.f32 0.0, %v2198
  %2200 = vdwg.mxu0
  %v2201 = vadd.f32 %v2105, %v2196
  %v2202 = vadd.f32 %v2106, %v2199
  %v2203 = vld [vmem:[%s17] sm:$0xff]
  %2204 = vmatpush.msra.mxu0 0.0
  %2205 = vmatpush.msra.mxu0 0.0
  %2206 = vmatpush.msra.mxu0 0.0
  %2207 = vmatpush.msra.mxu0 0.0
  %2208 = vmatpush.msra.mxu0 0.0
  %2209 = vmatpush.msra.mxu0 0.0
  %2210 = vmatpush.msra.mxu0 0.0
  %2211 = vmatpush.msra.mxu0 0.0
  %2212 = vmatpush.msra.mxu0 0.0
  %2213 = vmatpush.msra.mxu0 0.0
  %2214 = vmatpush.msra.mxu0 0.0
  %2215 = vmatpush.msra.mxu0 0.0
  %2216 = vmatpush.msra.mxu0 0.0
  %2217 = vmatpush.msra.mxu0 0.0
  %2218 = vmatpush.msra.mxu0 0.0
  %2219 = vmatpush.msra.mxu0 %v2203
  %2220 = vmatmul.f32.gmra.mxu0 %v169
  %v2221 = vpop.f32.mrf.mxu0
  %v2222 = vadd.f32 %v2141, %v2221
  %2223 = vmatmul.f32.gmra.mxu0 %v172
  %v2224 = vpop.f32.mrf.mxu0
  %v2225 = vadd.f32 %v2142, %v2224
  %2226 = vdwg.mxu0
  %2228 = vset.pattern.permute.xlu0 0
  %2229 = vperm.xlu0 %2228, %v158
  %v2230 = vpop.permute.xlu0 %2229
  %2233 = vset.pattern.permute.xlu0 0
  %2234 = vperm.xlu0 %2233, %v159
  %v2235 = vpop.permute.xlu0 %2234
  %v2237 = vmul.f32 %v2230, %v2171
  %v2238 = vmul.f32 %v2235, %v2172
  %v2239 = vadd.f32 %v2222, %v2237
  %v2240 = vadd.f32 %v2225, %v2238
  %2242 = vset.pattern.permute.xlu0 0
  %2243 = vperm.xlu0 %2242, %v162
  %v2244 = vpop.permute.xlu0 %2243
  %2247 = vset.pattern.permute.xlu0 0
  %2248 = vperm.xlu0 %2247, %v163
  %v2249 = vpop.permute.xlu0 %2248
  %v2251 = vmul.f32 %v2244, %v2201
  %v2252 = vmul.f32 %v2249, %v2202
  %v2253 = vadd.f32 %v2239, %v2251
  %v2254 = vadd.f32 %v2240, %v2252
  %v2255 = vld [vmem:[%s21] sm:$0x1]
  %v2257 = vperm.slane %v2255, 0
  %v2259 = vadd.f32 %v2253, %v2257
  %v2260 = vadd.f32 %v2254, %v2257
  %v2261 = vld [vmem:[%s23] sm:$0xff]
  %v2262 = vld [vmem:[%s23 + $0x8] sm:$0xff]
  %v2263 = vld [vmem:[%s23 + $0x10] sm:$0xff]
  %v2264 = vld [vmem:[%s23 + $0x18] sm:$0xff]
  %v2265 = vld [vmem:[%s25] sm:$0x1]
  %v2267 = vperm.slane %v2265, 0
  %v2270 = vsel %vm443, %v2259, 0
  %v2273 = vsel %vm443, %v2260, 0
  %2275 = vmatpush.msra.mxu0 0.0
  %2276 = vmatpush.msra.mxu0 0.0
  %2277 = vmatpush.msra.mxu0 0.0
  %2278 = vmatpush.msra.mxu0 0.0
  %2279 = vmatpush.msra.mxu0 0.0
  %2280 = vmatpush.msra.mxu0 0.0
  %2281 = vmatpush.msra.mxu0 0.0
  %2282 = vmatpush.msra.mxu0 0.0
  %2283 = vmatpush.msra.mxu0 0.0
  %2284 = vmatpush.msra.mxu0 0.0
  %2285 = vmatpush.msra.mxu0 0.0
  %2286 = vmatpush.msra.mxu0 0.0
  %2287 = vmatpush.msra.mxu0 %v2264
  %2288 = vmatpush.msra.mxu0 %v2263
  %2289 = vmatpush.msra.mxu0 %v2262
  %2290 = vmatpush.msra.mxu0 %v2261
  %2291 = vmatmul.f32.gmra.mxu0 %v2270
  %v2292 = vpop.f32.mrf.mxu0
  %v2293 = vadd.f32 %v2267, %v2292
  %2294 = vmatmul.f32.gmra.mxu0 %v2273
  %v2295 = vpop.f32.mrf.mxu0
  %v2296 = vadd.f32 %v2267, %v2295
  %2297 = vdwg.mxu0
  %v2298 = vld [vmem:[%s27] sm:$0x1]
  %v2300 = vperm.slane %v2298, 0
  %v2302 = vmul.f32 %v2293, %v2300
  %v2303 = vmul.f32 %v2296, %v2300
  %v2304 = vld [vmem:[%s29] sm:$0x1]
  %v2306 = vperm.slane %v2304, 0
  %v2308 = vadd.f32 %v2302, %v2306
  %v2309 = vadd.f32 %v2303, %v2306
  %v2310 = vmax.f32 %v2308, 0.0
  %v2311 = vmax.f32 %v2309, 0.0
  %v2312 = vld [vmem:[%s31] sm:$0xff]
  %v2313 = vld [vmem:[%s31 + $0x8] sm:$0xff]
  %v2314 = vld [vmem:[%s31 + $0x10] sm:$0xff]
  %v2315 = vld [vmem:[%s31 + $0x18] sm:$0xff]
  %v2317 = vsel %vm443, %v2310, 0
  %v2320 = vsel %vm443, %v2311, 0
  %2322 = vmatpush.msra.mxu0 0.0
  %2323 = vmatpush.msra.mxu0 0.0
  %2324 = vmatpush.msra.mxu0 0.0
  %2325 = vmatpush.msra.mxu0 0.0
  %2326 = vmatpush.msra.mxu0 0.0
  %2327 = vmatpush.msra.mxu0 0.0
  %2328 = vmatpush.msra.mxu0 0.0
  %2329 = vmatpush.msra.mxu0 0.0
  %2330 = vmatpush.msra.mxu0 0.0
  %2331 = vmatpush.msra.mxu0 0.0
  %2332 = vmatpush.msra.mxu0 0.0
  %2333 = vmatpush.msra.mxu0 0.0
  %2334 = vmatpush.msra.mxu0 %v2315
  %2335 = vmatpush.msra.mxu0 %v2314
  %2336 = vmatpush.msra.mxu0 %v2313
  %2337 = vmatpush.msra.mxu0 %v2312
  %2338 = vmatmul.f32.gmra.mxu0 %v2317
  %v2339 = vpop.f32.mrf.mxu0
  %v2340 = vadd.f32 0.0, %v2339
  %2341 = vmatmul.f32.gmra.mxu0 %v2320
  %v2342 = vpop.f32.mrf.mxu0
  %v2343 = vadd.f32 0.0, %v2342
  %2344 = vdwg.mxu0
  %v2345 = vld [vmem:[%s33] sm:$0xff]
  %v2346 = vld [vmem:[%s33 + $0x8] sm:$0xff]
  %v2347 = vld [vmem:[%s33 + $0x10] sm:$0xff]
  %v2348 = vld [vmem:[%s33 + $0x18] sm:$0xff]
  %2349 = vmatpush.msra.mxu0 0.0
  %2350 = vmatpush.msra.mxu0 0.0
  %2351 = vmatpush.msra.mxu0 0.0
  %2352 = vmatpush.msra.mxu0 0.0
  %2353 = vmatpush.msra.mxu0 0.0
  %2354 = vmatpush.msra.mxu0 0.0
  %2355 = vmatpush.msra.mxu0 0.0
  %2356 = vmatpush.msra.mxu0 0.0
  %2357 = vmatpush.msra.mxu0 0.0
  %2358 = vmatpush.msra.mxu0 0.0
  %2359 = vmatpush.msra.mxu0 0.0
  %2360 = vmatpush.msra.mxu0 0.0
  %2361 = vmatpush.msra.mxu0 %v2348
  %2362 = vmatpush.msra.mxu0 %v2347
  %2363 = vmatpush.msra.mxu0 %v2346
  %2364 = vmatpush.msra.mxu0 %v2345
  %2365 = vmatmul.f32.gmra.mxu0 %v2317
  %v2366 = vpop.f32.mrf.mxu0
  %v2367 = vadd.f32 0.0, %v2366
  %2368 = vmatmul.f32.gmra.mxu0 %v2320
  %v2369 = vpop.f32.mrf.mxu0
  %v2370 = vadd.f32 0.0, %v2369
  %2371 = vdwg.mxu0
  %2372 = vmatpush.msra.mxu0 0.0
  %2373 = vmatpush.msra.mxu0 0.0
  %2374 = vmatpush.msra.mxu0 0.0
  %2375 = vmatpush.msra.mxu0 0.0
  %2376 = vmatpush.msra.mxu0 0.0
  %2377 = vmatpush.msra.mxu0 0.0
  %2378 = vmatpush.msra.mxu0 0.0
  %2379 = vmatpush.msra.mxu0 0.0
  %2380 = vmatpush.msra.mxu0 0.0
  %2381 = vmatpush.msra.mxu0 0.0
  %2382 = vmatpush.msra.mxu0 0.0
  %2383 = vmatpush.msra.mxu0 0.0
  %2384 = vmatpush.msra.mxu0 0.0
  %2385 = vmatpush.msra.mxu0 0.0
  %2386 = vmatpush.msra.mxu0 %v2370
  %2387 = vmatpush.msra.mxu0 %v2367
  %2388 = vmatmul.f32.gmra.mxu0 %v223
  %v2389 = vpop.f32.mrf.mxu0
  %v2390 = vadd.f32 0.0, %v2389
  %2391 = vmatmul.f32.gmra.mxu0 %v226
  %v2392 = vpop.f32.mrf.mxu0
  %v2393 = vadd.f32 0.0, %v2392
  %2394 = vmatmul.f32.gmra.mxu0 %v229
  %v2395 = vpop.f32.mrf.mxu0
  %v2396 = vadd.f32 0.0, %v2395
  %2397 = vmatmul.f32.gmra.mxu0 %v232
  %v2398 = vpop.f32.mrf.mxu0
  %v2399 = vadd.f32 0.0, %v2398
  %2400 = vmatmul.f32.gmra.mxu0 %v235
  %v2401 = vpop.f32.mrf.mxu0
  %v2402 = vadd.f32 0.0, %v2401
  %2403 = vmatmul.f32.gmra.mxu0 %v238
  %v2404 = vpop.f32.mrf.mxu0
  %v2405 = vadd.f32 0.0, %v2404
  %2406 = vdwg.mxu0
  %2407 = vmatpush.msra.mxu0 0.0
  %2408 = vmatpush.msra.mxu0 0.0
  %2409 = vmatpush.msra.mxu0 0.0
  %2410 = vmatpush.msra.mxu0 0.0
  %2411 = vmatpush.msra.mxu0 0.0
  %2412 = vmatpush.msra.mxu0 0.0
  %2413 = vmatpush.msra.mxu0 0.0
  %2414 = vmatpush.msra.mxu0 0.0
  %2415 = vmatpush.msra.mxu0 0.0
  %2416 = vmatpush.msra.mxu0 0.0
  %2417 = vmatpush.msra.mxu0 0.0
  %2418 = vmatpush.msra.mxu0 0.0
  %2419 = vmatpush.msra.mxu0 0.0
  %2420 = vmatpush.msra.mxu0 0.0
  %2421 = vmatpush.msra.mxu0 %v2343
  %2422 = vmatpush.msra.mxu0 %v2340
  %2423 = vmatmul.f32.gmra.mxu0 %v276
  %v2424 = vpop.f32.mrf.mxu0
  %v2425 = vadd.f32 %v2390, %v2424
  %2426 = vmatmul.f32.gmra.mxu0 %v279
  %v2427 = vpop.f32.mrf.mxu0
  %v2428 = vadd.f32 %v2393, %v2427
  %2429 = vmatmul.f32.gmra.mxu0 %v282
  %v2430 = vpop.f32.mrf.mxu0
  %v2431 = vadd.f32 %v2396, %v2430
  %2432 = vmatmul.f32.gmra.mxu0 %v285
  %v2433 = vpop.f32.mrf.mxu0
  %v2434 = vadd.f32 %v2399, %v2433
  %2435 = vmatmul.f32.gmra.mxu0 %v288
  %v2436 = vpop.f32.mrf.mxu0
  %v2437 = vadd.f32 %v2402, %v2436
  %2438 = vmatmul.f32.gmra.mxu0 %v291
  %v2439 = vpop.f32.mrf.mxu0
  %v2440 = vadd.f32 %v2405, %v2439
  %2441 = vdwg.mxu0
  %v2442 = vld [vmem:[%s35] sm:$0x1]
  %v2444 = vperm.slane %v2442, 0
  %v2446 = vadd.f32 %v2425, %v2444
  %v2447 = vadd.f32 %v2428, %v2444
  %v2448 = vadd.f32 %v2431, %v2444
  %v2449 = vadd.f32 %v2434, %v2444
  %v2450 = vadd.f32 %v2437, %v2444
  %v2451 = vadd.f32 %v2440, %v2444
  %2452 = vmatpush.msra.mxu0 0.0
  %2453 = vmatpush.msra.mxu0 0.0
  %2454 = vmatpush.msra.mxu0 0.0
  %2455 = vmatpush.msra.mxu0 0.0
  %2456 = vmatpush.msra.mxu0 0.0
  %2457 = vmatpush.msra.mxu0 0.0
  %2458 = vmatpush.msra.mxu0 0.0
  %2459 = vmatpush.msra.mxu0 0.0
  %2460 = vmatpush.msra.mxu0 0.0
  %2461 = vmatpush.msra.mxu0 0.0
  %2462 = vmatpush.msra.mxu0 %v2451
  %2463 = vmatpush.msra.mxu0 %v2450
  %2464 = vmatpush.msra.mxu0 %v2449
  %2465 = vmatpush.msra.mxu0 %v2448
  %2466 = vmatpush.msra.mxu0 %v2447
  %2467 = vmatpush.msra.mxu0 %v2446
  %2468 = vmatmul.f32.gmra.mxu0 %v340
  %v2469 = vpop.f32.mrf.mxu0
  %v2470 = vadd.f32 0.0, %v2469
  %2471 = vmatmul.f32.gmra.mxu0 %v343
  %v2472 = vpop.f32.mrf.mxu0
  %v2473 = vadd.f32 0.0, %v2472
  %2474 = vdwg.mxu0
  %v2475 = vmul.f32 %v2446, %v2446
  %v2476 = vmul.f32 %v2447, %v2447
  %v2477 = vmul.f32 %v2448, %v2448
  %v2478 = vmul.f32 %v2449, %v2449
  %v2479 = vmul.f32 %v2450, %v2450
  %v2480 = vmul.f32 %v2451, %v2451
  %2481 = vmatpush.msra.mxu0 0.0
  %2482 = vmatpush.msra.mxu0 0.0
  %2483 = vmatpush.msra.mxu0 0.0
  %2484 = vmatpush.msra.mxu0 0.0
  %2485 = vmatpush.msra.mxu0 0.0
  %2486 = vmatpush.msra.mxu0 0.0
  %2487 = vmatpush.msra.mxu0 0.0
  %2488 = vmatpush.msra.mxu0 0.0
  %2489 = vmatpush.msra.mxu0 0.0
  %2490 = vmatpush.msra.mxu0 0.0
  %2491 = vmatpush.msra.mxu0 %v2480
  %2492 = vmatpush.msra.mxu0 %v2479
  %2493 = vmatpush.msra.mxu0 %v2478
  %2494 = vmatpush.msra.mxu0 %v2477
  %2495 = vmatpush.msra.mxu0 %v2476
  %2496 = vmatpush.msra.mxu0 %v2475
  %2497 = vmatmul.f32.gmra.mxu0 %v340
  %v2498 = vpop.f32.mrf.mxu0
  %v2499 = vadd.f32 0.0, %v2498
  %2500 = vmatmul.f32.gmra.mxu0 %v343
  %v2501 = vpop.f32.mrf.mxu0
  %v2502 = vadd.f32 0.0, %v2501
  %2503 = vdwg.mxu0
  %v2504 = vmul.f32 %v2470, %v400
  %v2505 = vmul.f32 %v2473, %v405
  %v2506 = vmul.f32 %v2499, %v400
  %v2507 = vmul.f32 %v2502, %v405
  %v2508 = vmul.f32 %v2504, %v2504
  %v2509 = vmul.f32 %v2505, %v2505
  %v2510 = vsub.f32 %v2506, %v2508
  %v2511 = vsub.f32 %v2507, %v2509
  %v2512 = vmax.f32 %v2510, 0.0
  %v2513 = vmax.f32 %v2511, 0.0
  %v2514 = vadd.f32 %v2512, 1e-05
  %v2515 = vadd.f32 %v2513, 1e-05
  %v2516 = vrsqrt.pop %v2514
  %v2517 = vmul.f32 %v2516, %v2514
  %v2518 = vmul.f32 %v2517, %v2516
  %v2519 = vmul.f32 0.5, %v2518
  %v2520 = vsub.f32 1.5, %v2519
  %v2521 = vmul.f32 %v2516, %v2520
  %v2522 = vmul.f32 %v2514, %v2521
  %vm2523 = vcmp.eq.f32.partialorder %v2514, inf
  %v2524 = vsel %vm2523, %v2514, %v2522
  %vm2525 = vcmp.eq.f32.partialorder %v2514, 0.0
  %v2526 = vand.u32 %v2514, 2147483648
  %v2527 = vsel %vm2525, %v2526, %v2524
  %v2528 = vrsqrt.pop %v2515
  %v2529 = vmul.f32 %v2528, %v2515
  %v2530 = vmul.f32 %v2529, %v2528
  %v2531 = vmul.f32 0.5, %v2530
  %v2532 = vsub.f32 1.5, %v2531
  %v2533 = vmul.f32 %v2528, %v2532
  %v2534 = vmul.f32 %v2515, %v2533
  %vm2535 = vcmp.eq.f32.partialorder %v2515, inf
  %v2536 = vsel %vm2535, %v2515, %v2534
  %vm2537 = vcmp.eq.f32.partialorder %v2515, 0.0
  %v2538 = vand.u32 %v2515, 2147483648
  %v2539 = vsel %vm2537, %v2538, %v2536
  %2540 = vst [vmem:[#allocation3] sm:$0xff] %v2446
  %2541 = vst [vmem:[#allocation3 + $0x8] sm:$0xff] %v2447
  %2542 = vst [vmem:[#allocation3 + $0x10] sm:$0xff] %v2448
  %2543 = vst [vmem:[#allocation3 + $0x18] sm:$0xff] %v2449
  %2544 = vst [vmem:[#allocation3 + $0x20] sm:$0xff] %v2450
  %2545 = vst [vmem:[#allocation3 + $0x28] sm:$0xff] %v2451
  %v2546 = vld [vmem:[#allocation3] sm:$0xff]
  %v2547 = vld [vmem:[%s5] sm:$0xff]
  %v2548 = vsub.f32 1.0, %v2547
  %v2549 = vmul.f32 %v2548, 1e+30
  %v2551 = vrot.slane %v2546, 1
  %v2552 = vrot.slane %v2546, 2
  %v2553 = vrot.slane %v2546, 3
  %v2554 = vrot.slane %v2546, 4
  %v2555 = vrot.slane %v2546, 5
  %v2556 = vrot.slane %v2546, 6
  %v2557 = vrot.slane %v2546, 7
  %v2558 = vperm.slane %v2549, 0
  %v2559 = vlaneseq
  %v2560 = vshrl.u32 %v2559, 7
  %2562 = vset.pattern.permute.xlu0 %v2560
  %2563 = vperm.xlu0 %2562, %v2558
  %v2564 = vpop.permute.xlu0 %2563
  %v2565 = vlaneseq
  %v2566 = vshrl.u32 %v2565, 7
  %v2567 = vadd.s32 %v2566, 8
  %2568 = vset.pattern.permute.xlu0 %v2567
  %2569 = vperm.xlu0 %2568, %v2558
  %v2570 = vpop.permute.xlu0 %2569
  %v2571 = vperm.slane %v2549, 1
  %v2572 = vlaneseq
  %v2573 = vshrl.u32 %v2572, 7
  %2575 = vset.pattern.permute.xlu0 %v2573
  %2576 = vperm.xlu0 %2575, %v2571
  %v2577 = vpop.permute.xlu0 %2576
  %v2578 = vlaneseq
  %v2579 = vshrl.u32 %v2578, 7
  %v2580 = vadd.s32 %v2579, 8
  %2581 = vset.pattern.permute.xlu0 %v2580
  %2582 = vperm.xlu0 %2581, %v2571
  %v2583 = vpop.permute.xlu0 %2582
  %v2584 = vperm.slane %v2549, 2
  %v2585 = vlaneseq
  %v2586 = vshrl.u32 %v2585, 7
  %2588 = vset.pattern.permute.xlu0 %v2586
  %2589 = vperm.xlu0 %2588, %v2584
  %v2590 = vpop.permute.xlu0 %2589
  %v2591 = vlaneseq
  %v2592 = vshrl.u32 %v2591, 7
  %v2593 = vadd.s32 %v2592, 8
  %2594 = vset.pattern.permute.xlu0 %v2593
  %2595 = vperm.xlu0 %2594, %v2584
  %v2596 = vpop.permute.xlu0 %2595
  %v2597 = vperm.slane %v2549, 3
  %v2598 = vlaneseq
  %v2599 = vshrl.u32 %v2598, 7
  %2601 = vset.pattern.permute.xlu0 %v2599
  %2602 = vperm.xlu0 %2601, %v2597
  %v2603 = vpop.permute.xlu0 %2602
  %v2604 = vlaneseq
  %v2605 = vshrl.u32 %v2604, 7
  %v2606 = vadd.s32 %v2605, 8
  %2607 = vset.pattern.permute.xlu0 %v2606
  %2608 = vperm.xlu0 %2607, %v2597
  %v2609 = vpop.permute.xlu0 %2608
  %v2610 = vperm.slane %v2549, 4
  %v2611 = vlaneseq
  %v2612 = vshrl.u32 %v2611, 7
  %2614 = vset.pattern.permute.xlu0 %v2612
  %2615 = vperm.xlu0 %2614, %v2610
  %v2616 = vpop.permute.xlu0 %2615
  %v2617 = vlaneseq
  %v2618 = vshrl.u32 %v2617, 7
  %v2619 = vadd.s32 %v2618, 8
  %2620 = vset.pattern.permute.xlu0 %v2619
  %2621 = vperm.xlu0 %2620, %v2610
  %v2622 = vpop.permute.xlu0 %2621
  %v2623 = vperm.slane %v2549, 5
  %v2624 = vlaneseq
  %v2625 = vshrl.u32 %v2624, 7
  %2627 = vset.pattern.permute.xlu0 %v2625
  %2628 = vperm.xlu0 %2627, %v2623
  %v2629 = vpop.permute.xlu0 %2628
  %v2630 = vlaneseq
  %v2631 = vshrl.u32 %v2630, 7
  %v2632 = vadd.s32 %v2631, 8
  %2633 = vset.pattern.permute.xlu0 %v2632
  %2634 = vperm.xlu0 %2633, %v2623
  %v2635 = vpop.permute.xlu0 %2634
  %v2636 = vperm.slane %v2549, 6
  %v2637 = vlaneseq
  %v2638 = vshrl.u32 %v2637, 7
  %2640 = vset.pattern.permute.xlu0 %v2638
  %2641 = vperm.xlu0 %2640, %v2636
  %v2642 = vpop.permute.xlu0 %2641
  %v2643 = vlaneseq
  %v2644 = vshrl.u32 %v2643, 7
  %v2645 = vadd.s32 %v2644, 8
  %2646 = vset.pattern.permute.xlu0 %v2645
  %2647 = vperm.xlu0 %2646, %v2636
  %v2648 = vpop.permute.xlu0 %2647
  %v2649 = vperm.slane %v2549, 7
  %v2650 = vlaneseq
  %v2651 = vshrl.u32 %v2650, 7
  %2653 = vset.pattern.permute.xlu0 %v2651
  %2654 = vperm.xlu0 %2653, %v2649
  %v2655 = vpop.permute.xlu0 %2654
  %v2656 = vlaneseq
  %v2657 = vshrl.u32 %v2656, 7
  %v2658 = vadd.s32 %v2657, 8
  %2659 = vset.pattern.permute.xlu0 %v2658
  %2660 = vperm.xlu0 %2659, %v2649
  %v2661 = vpop.permute.xlu0 %2660
  %v2662 = vperm.slane %v2546, 0
  %v2663 = vperm.slane %v2551, 0
  %v2664 = vperm.slane %v2552, 0
  %v2665 = vperm.slane %v2553, 0
  %v2666 = vperm.slane %v2554, 0
  %v2667 = vperm.slane %v2555, 0
  %v2668 = vperm.slane %v2556, 0
  %v2669 = vperm.slane %v2557, 0
  %v2678 = vadd.f32 %v2662, %v2564
  %v2679 = vadd.f32 %v2662, %v2570
  %v2680 = vadd.f32 %v2663, %v2577
  %v2681 = vadd.f32 %v2663, %v2583
  %v2682 = vadd.f32 %v2664, %v2590
  %v2683 = vadd.f32 %v2664, %v2596
  %v2684 = vadd.f32 %v2665, %v2603
  %v2685 = vadd.f32 %v2665, %v2609
  %v2686 = vadd.f32 %v2666, %v2616
  %v2687 = vadd.f32 %v2666, %v2622
  %v2688 = vadd.f32 %v2667, %v2629
  %v2689 = vadd.f32 %v2667, %v2635
  %v2690 = vadd.f32 %v2668, %v2642
  %v2691 = vadd.f32 %v2668, %v2648
  %v2692 = vadd.f32 %v2669, %v2655
  %v2693 = vadd.f32 %v2669, %v2661
  %v2694 = vmin.f32 %v2678, %v2682
  %v2695 = vmin.f32 %v2680, %v2684
  %v2696 = vmin.f32 %v2694, %v2686
  %v2697 = vmin.f32 %v2695, %v2688
  %v2698 = vmin.f32 %v2696, %v2690
  %v2699 = vmin.f32 %v2697, %v2692
  %v2700 = vmin.f32 %v2698, %v2699
  %v2701 = vmin.f32 %v2679, %v2683
  %v2702 = vmin.f32 %v2681, %v2685
  %v2703 = vmin.f32 %v2701, %v2687
  %v2704 = vmin.f32 %v2702, %v2689
  %v2705 = vmin.f32 %v2703, %v2691
  %v2706 = vmin.f32 %v2704, %v2693
  %v2707 = vmin.f32 %v2705, %v2706
  %v2708 = vmin.f32 %v2700, 1e+30
  %v2709 = vmin.f32 %v2707, 1e+30
  %v2710 = vsub.f32 %v2662, %v2564
  %v2711 = vsub.f32 %v2662, %v2570
  %v2712 = vsub.f32 %v2663, %v2577
  %v2713 = vsub.f32 %v2663, %v2583
  %v2714 = vsub.f32 %v2664, %v2590
  %v2715 = vsub.f32 %v2664, %v2596
  %v2716 = vsub.f32 %v2665, %v2603
  %v2717 = vsub.f32 %v2665, %v2609
  %v2718 = vsub.f32 %v2666, %v2616
  %v2719 = vsub.f32 %v2666, %v2622
  %v2720 = vsub.f32 %v2667, %v2629
  %v2721 = vsub.f32 %v2667, %v2635
  %v2722 = vsub.f32 %v2668, %v2642
  %v2723 = vsub.f32 %v2668, %v2648
  %v2724 = vsub.f32 %v2669, %v2655
  %v2725 = vsub.f32 %v2669, %v2661
  %v2726 = vmax.f32 %v2710, %v2714
  %v2727 = vmax.f32 %v2712, %v2716
  %v2728 = vmax.f32 %v2726, %v2718
  %v2729 = vmax.f32 %v2727, %v2720
  %v2730 = vmax.f32 %v2728, %v2722
  %v2731 = vmax.f32 %v2729, %v2724
  %v2732 = vmax.f32 %v2730, %v2731
  %v2733 = vmax.f32 %v2711, %v2715
  %v2734 = vmax.f32 %v2713, %v2717
  %v2735 = vmax.f32 %v2733, %v2719
  %v2736 = vmax.f32 %v2734, %v2721
  %v2737 = vmax.f32 %v2735, %v2723
  %v2738 = vmax.f32 %v2736, %v2725
  %v2739 = vmax.f32 %v2737, %v2738
  %v2740 = vmax.f32 %v2732, -1e+30
  %v2741 = vmax.f32 %v2739, -1e+30
  %v2742 = vld [vmem:[#allocation3 + $0x8] sm:$0xff]
  %v2743 = vld [vmem:[%s5 + $0x8] sm:$0xff]
  %v2744 = vsub.f32 1.0, %v2743
  %v2745 = vmul.f32 %v2744, 1e+30
  %v2747 = vrot.slane %v2742, 1
  %v2748 = vrot.slane %v2742, 2
  %v2749 = vrot.slane %v2742, 3
  %v2750 = vrot.slane %v2742, 4
  %v2751 = vrot.slane %v2742, 5
  %v2752 = vrot.slane %v2742, 6
  %v2753 = vrot.slane %v2742, 7
  %v2754 = vperm.slane %v2745, 0
  %v2755 = vlaneseq
  %v2756 = vshrl.u32 %v2755, 7
  %2758 = vset.pattern.permute.xlu0 %v2756
  %2759 = vperm.xlu0 %2758, %v2754
  %v2760 = vpop.permute.xlu0 %2759
  %v2761 = vlaneseq
  %v2762 = vshrl.u32 %v2761, 7
  %v2763 = vadd.s32 %v2762, 8
  %2764 = vset.pattern.permute.xlu0 %v2763
  %2765 = vperm.xlu0 %2764, %v2754
  %v2766 = vpop.permute.xlu0 %2765
  %v2767 = vperm.slane %v2745, 1
  %v2768 = vlaneseq
  %v2769 = vshrl.u32 %v2768, 7
  %2771 = vset.pattern.permute.xlu0 %v2769
  %2772 = vperm.xlu0 %2771, %v2767
  %v2773 = vpop.permute.xlu0 %2772
  %v2774 = vlaneseq
  %v2775 = vshrl.u32 %v2774, 7
  %v2776 = vadd.s32 %v2775, 8
  %2777 = vset.pattern.permute.xlu0 %v2776
  %2778 = vperm.xlu0 %2777, %v2767
  %v2779 = vpop.permute.xlu0 %2778
  %v2780 = vperm.slane %v2745, 2
  %v2781 = vlaneseq
  %v2782 = vshrl.u32 %v2781, 7
  %2784 = vset.pattern.permute.xlu0 %v2782
  %2785 = vperm.xlu0 %2784, %v2780
  %v2786 = vpop.permute.xlu0 %2785
  %v2787 = vlaneseq
  %v2788 = vshrl.u32 %v2787, 7
  %v2789 = vadd.s32 %v2788, 8
  %2790 = vset.pattern.permute.xlu0 %v2789
  %2791 = vperm.xlu0 %2790, %v2780
  %v2792 = vpop.permute.xlu0 %2791
  %v2793 = vperm.slane %v2745, 3
  %v2794 = vlaneseq
  %v2795 = vshrl.u32 %v2794, 7
  %2797 = vset.pattern.permute.xlu0 %v2795
  %2798 = vperm.xlu0 %2797, %v2793
  %v2799 = vpop.permute.xlu0 %2798
  %v2800 = vlaneseq
  %v2801 = vshrl.u32 %v2800, 7
  %v2802 = vadd.s32 %v2801, 8
  %2803 = vset.pattern.permute.xlu0 %v2802
  %2804 = vperm.xlu0 %2803, %v2793
  %v2805 = vpop.permute.xlu0 %2804
  %v2806 = vperm.slane %v2745, 4
  %v2807 = vlaneseq
  %v2808 = vshrl.u32 %v2807, 7
  %2810 = vset.pattern.permute.xlu0 %v2808
  %2811 = vperm.xlu0 %2810, %v2806
  %v2812 = vpop.permute.xlu0 %2811
  %v2813 = vlaneseq
  %v2814 = vshrl.u32 %v2813, 7
  %v2815 = vadd.s32 %v2814, 8
  %2816 = vset.pattern.permute.xlu0 %v2815
  %2817 = vperm.xlu0 %2816, %v2806
  %v2818 = vpop.permute.xlu0 %2817
  %v2819 = vperm.slane %v2745, 5
  %v2820 = vlaneseq
  %v2821 = vshrl.u32 %v2820, 7
  %2823 = vset.pattern.permute.xlu0 %v2821
  %2824 = vperm.xlu0 %2823, %v2819
  %v2825 = vpop.permute.xlu0 %2824
  %v2826 = vlaneseq
  %v2827 = vshrl.u32 %v2826, 7
  %v2828 = vadd.s32 %v2827, 8
  %2829 = vset.pattern.permute.xlu0 %v2828
  %2830 = vperm.xlu0 %2829, %v2819
  %v2831 = vpop.permute.xlu0 %2830
  %v2832 = vperm.slane %v2745, 6
  %v2833 = vlaneseq
  %v2834 = vshrl.u32 %v2833, 7
  %2836 = vset.pattern.permute.xlu0 %v2834
  %2837 = vperm.xlu0 %2836, %v2832
  %v2838 = vpop.permute.xlu0 %2837
  %v2839 = vlaneseq
  %v2840 = vshrl.u32 %v2839, 7
  %v2841 = vadd.s32 %v2840, 8
  %2842 = vset.pattern.permute.xlu0 %v2841
  %2843 = vperm.xlu0 %2842, %v2832
  %v2844 = vpop.permute.xlu0 %2843
  %v2845 = vperm.slane %v2745, 7
  %v2846 = vlaneseq
  %v2847 = vshrl.u32 %v2846, 7
  %2849 = vset.pattern.permute.xlu0 %v2847
  %2850 = vperm.xlu0 %2849, %v2845
  %v2851 = vpop.permute.xlu0 %2850
  %v2852 = vlaneseq
  %v2853 = vshrl.u32 %v2852, 7
  %v2854 = vadd.s32 %v2853, 8
  %2855 = vset.pattern.permute.xlu0 %v2854
  %2856 = vperm.xlu0 %2855, %v2845
  %v2857 = vpop.permute.xlu0 %2856
  %v2858 = vperm.slane %v2742, 0
  %v2859 = vperm.slane %v2747, 0
  %v2860 = vperm.slane %v2748, 0
  %v2861 = vperm.slane %v2749, 0
  %v2862 = vperm.slane %v2750, 0
  %v2863 = vperm.slane %v2751, 0
  %v2864 = vperm.slane %v2752, 0
  %v2865 = vperm.slane %v2753, 0
  %v2874 = vadd.f32 %v2858, %v2760
  %v2875 = vadd.f32 %v2858, %v2766
  %v2876 = vadd.f32 %v2859, %v2773
  %v2877 = vadd.f32 %v2859, %v2779
  %v2878 = vadd.f32 %v2860, %v2786
  %v2879 = vadd.f32 %v2860, %v2792
  %v2880 = vadd.f32 %v2861, %v2799
  %v2881 = vadd.f32 %v2861, %v2805
  %v2882 = vadd.f32 %v2862, %v2812
  %v2883 = vadd.f32 %v2862, %v2818
  %v2884 = vadd.f32 %v2863, %v2825
  %v2885 = vadd.f32 %v2863, %v2831
  %v2886 = vadd.f32 %v2864, %v2838
  %v2887 = vadd.f32 %v2864, %v2844
  %v2888 = vadd.f32 %v2865, %v2851
  %v2889 = vadd.f32 %v2865, %v2857
  %v2890 = vmin.f32 %v2874, %v2878
  %v2891 = vmin.f32 %v2876, %v2880
  %v2892 = vmin.f32 %v2890, %v2882
  %v2893 = vmin.f32 %v2891, %v2884
  %v2894 = vmin.f32 %v2892, %v2886
  %v2895 = vmin.f32 %v2893, %v2888
  %v2896 = vmin.f32 %v2894, %v2895
  %v2897 = vmin.f32 %v2875, %v2879
  %v2898 = vmin.f32 %v2877, %v2881
  %v2899 = vmin.f32 %v2897, %v2883
  %v2900 = vmin.f32 %v2898, %v2885
  %v2901 = vmin.f32 %v2899, %v2887
  %v2902 = vmin.f32 %v2900, %v2889
  %v2903 = vmin.f32 %v2901, %v2902
  %v2904 = vmin.f32 %v2708, %v2896
  %v2905 = vmin.f32 %v2709, %v2903
  %v2906 = vsub.f32 %v2858, %v2760
  %v2907 = vsub.f32 %v2858, %v2766
  %v2908 = vsub.f32 %v2859, %v2773
  %v2909 = vsub.f32 %v2859, %v2779
  %v2910 = vsub.f32 %v2860, %v2786
  %v2911 = vsub.f32 %v2860, %v2792
  %v2912 = vsub.f32 %v2861, %v2799
  %v2913 = vsub.f32 %v2861, %v2805
  %v2914 = vsub.f32 %v2862, %v2812
  %v2915 = vsub.f32 %v2862, %v2818
  %v2916 = vsub.f32 %v2863, %v2825
  %v2917 = vsub.f32 %v2863, %v2831
  %v2918 = vsub.f32 %v2864, %v2838
  %v2919 = vsub.f32 %v2864, %v2844
  %v2920 = vsub.f32 %v2865, %v2851
  %v2921 = vsub.f32 %v2865, %v2857
  %v2922 = vmax.f32 %v2906, %v2910
  %v2923 = vmax.f32 %v2908, %v2912
  %v2924 = vmax.f32 %v2922, %v2914
  %v2925 = vmax.f32 %v2923, %v2916
  %v2926 = vmax.f32 %v2924, %v2918
  %v2927 = vmax.f32 %v2925, %v2920
  %v2928 = vmax.f32 %v2926, %v2927
  %v2929 = vmax.f32 %v2907, %v2911
  %v2930 = vmax.f32 %v2909, %v2913
  %v2931 = vmax.f32 %v2929, %v2915
  %v2932 = vmax.f32 %v2930, %v2917
  %v2933 = vmax.f32 %v2931, %v2919
  %v2934 = vmax.f32 %v2932, %v2921
  %v2935 = vmax.f32 %v2933, %v2934
  %v2936 = vmax.f32 %v2740, %v2928
  %v2937 = vmax.f32 %v2741, %v2935
  %v2938 = vld [vmem:[#allocation3 + $0x10] sm:$0xff]
  %v2939 = vld [vmem:[%s5 + $0x10] sm:$0xff]
  %v2940 = vsub.f32 1.0, %v2939
  %v2941 = vmul.f32 %v2940, 1e+30
  %v2943 = vrot.slane %v2938, 1
  %v2944 = vrot.slane %v2938, 2
  %v2945 = vrot.slane %v2938, 3
  %v2946 = vrot.slane %v2938, 4
  %v2947 = vrot.slane %v2938, 5
  %v2948 = vrot.slane %v2938, 6
  %v2949 = vrot.slane %v2938, 7
  %v2950 = vperm.slane %v2941, 0
  %v2951 = vlaneseq
  %v2952 = vshrl.u32 %v2951, 7
  %2954 = vset.pattern.permute.xlu0 %v2952
  %2955 = vperm.xlu0 %2954, %v2950
  %v2956 = vpop.permute.xlu0 %2955
  %v2957 = vlaneseq
  %v2958 = vshrl.u32 %v2957, 7
  %v2959 = vadd.s32 %v2958, 8
  %2960 = vset.pattern.permute.xlu0 %v2959
  %2961 = vperm.xlu0 %2960, %v2950
  %v2962 = vpop.permute.xlu0 %2961
  %v2963 = vperm.slane %v2941, 1
  %v2964 = vlaneseq
  %v2965 = vshrl.u32 %v2964, 7
  %2967 = vset.pattern.permute.xlu0 %v2965
  %2968 = vperm.xlu0 %2967, %v2963
  %v2969 = vpop.permute.xlu0 %2968
  %v2970 = vlaneseq
  %v2971 = vshrl.u32 %v2970, 7
  %v2972 = vadd.s32 %v2971, 8
  %2973 = vset.pattern.permute.xlu0 %v2972
  %2974 = vperm.xlu0 %2973, %v2963
  %v2975 = vpop.permute.xlu0 %2974
  %v2976 = vperm.slane %v2941, 2
  %v2977 = vlaneseq
  %v2978 = vshrl.u32 %v2977, 7
  %2980 = vset.pattern.permute.xlu0 %v2978
  %2981 = vperm.xlu0 %2980, %v2976
  %v2982 = vpop.permute.xlu0 %2981
  %v2983 = vlaneseq
  %v2984 = vshrl.u32 %v2983, 7
  %v2985 = vadd.s32 %v2984, 8
  %2986 = vset.pattern.permute.xlu0 %v2985
  %2987 = vperm.xlu0 %2986, %v2976
  %v2988 = vpop.permute.xlu0 %2987
  %v2989 = vperm.slane %v2941, 3
  %v2990 = vlaneseq
  %v2991 = vshrl.u32 %v2990, 7
  %2993 = vset.pattern.permute.xlu0 %v2991
  %2994 = vperm.xlu0 %2993, %v2989
  %v2995 = vpop.permute.xlu0 %2994
  %v2996 = vlaneseq
  %v2997 = vshrl.u32 %v2996, 7
  %v2998 = vadd.s32 %v2997, 8
  %2999 = vset.pattern.permute.xlu0 %v2998
  %3000 = vperm.xlu0 %2999, %v2989
  %v3001 = vpop.permute.xlu0 %3000
  %v3002 = vperm.slane %v2941, 4
  %v3003 = vlaneseq
  %v3004 = vshrl.u32 %v3003, 7
  %3006 = vset.pattern.permute.xlu0 %v3004
  %3007 = vperm.xlu0 %3006, %v3002
  %v3008 = vpop.permute.xlu0 %3007
  %v3009 = vlaneseq
  %v3010 = vshrl.u32 %v3009, 7
  %v3011 = vadd.s32 %v3010, 8
  %3012 = vset.pattern.permute.xlu0 %v3011
  %3013 = vperm.xlu0 %3012, %v3002
  %v3014 = vpop.permute.xlu0 %3013
  %v3015 = vperm.slane %v2941, 5
  %v3016 = vlaneseq
  %v3017 = vshrl.u32 %v3016, 7
  %3019 = vset.pattern.permute.xlu0 %v3017
  %3020 = vperm.xlu0 %3019, %v3015
  %v3021 = vpop.permute.xlu0 %3020
  %v3022 = vlaneseq
  %v3023 = vshrl.u32 %v3022, 7
  %v3024 = vadd.s32 %v3023, 8
  %3025 = vset.pattern.permute.xlu0 %v3024
  %3026 = vperm.xlu0 %3025, %v3015
  %v3027 = vpop.permute.xlu0 %3026
  %v3028 = vperm.slane %v2941, 6
  %v3029 = vlaneseq
  %v3030 = vshrl.u32 %v3029, 7
  %3032 = vset.pattern.permute.xlu0 %v3030
  %3033 = vperm.xlu0 %3032, %v3028
  %v3034 = vpop.permute.xlu0 %3033
  %v3035 = vlaneseq
  %v3036 = vshrl.u32 %v3035, 7
  %v3037 = vadd.s32 %v3036, 8
  %3038 = vset.pattern.permute.xlu0 %v3037
  %3039 = vperm.xlu0 %3038, %v3028
  %v3040 = vpop.permute.xlu0 %3039
  %v3041 = vperm.slane %v2941, 7
  %v3042 = vlaneseq
  %v3043 = vshrl.u32 %v3042, 7
  %3045 = vset.pattern.permute.xlu0 %v3043
  %3046 = vperm.xlu0 %3045, %v3041
  %v3047 = vpop.permute.xlu0 %3046
  %v3048 = vlaneseq
  %v3049 = vshrl.u32 %v3048, 7
  %v3050 = vadd.s32 %v3049, 8
  %3051 = vset.pattern.permute.xlu0 %v3050
  %3052 = vperm.xlu0 %3051, %v3041
  %v3053 = vpop.permute.xlu0 %3052
  %v3054 = vperm.slane %v2938, 0
  %v3055 = vperm.slane %v2943, 0
  %v3056 = vperm.slane %v2944, 0
  %v3057 = vperm.slane %v2945, 0
  %v3058 = vperm.slane %v2946, 0
  %v3059 = vperm.slane %v2947, 0
  %v3060 = vperm.slane %v2948, 0
  %v3061 = vperm.slane %v2949, 0
  %v3070 = vadd.f32 %v3054, %v2956
  %v3071 = vadd.f32 %v3054, %v2962
  %v3072 = vadd.f32 %v3055, %v2969
  %v3073 = vadd.f32 %v3055, %v2975
  %v3074 = vadd.f32 %v3056, %v2982
  %v3075 = vadd.f32 %v3056, %v2988
  %v3076 = vadd.f32 %v3057, %v2995
  %v3077 = vadd.f32 %v3057, %v3001
  %v3078 = vadd.f32 %v3058, %v3008
  %v3079 = vadd.f32 %v3058, %v3014
  %v3080 = vadd.f32 %v3059, %v3021
  %v3081 = vadd.f32 %v3059, %v3027
  %v3082 = vadd.f32 %v3060, %v3034
  %v3083 = vadd.f32 %v3060, %v3040
  %v3084 = vadd.f32 %v3061, %v3047
  %v3085 = vadd.f32 %v3061, %v3053
  %v3086 = vmin.f32 %v3070, %v3074
  %v3087 = vmin.f32 %v3072, %v3076
  %v3088 = vmin.f32 %v3086, %v3078
  %v3089 = vmin.f32 %v3087, %v3080
  %v3090 = vmin.f32 %v3088, %v3082
  %v3091 = vmin.f32 %v3089, %v3084
  %v3092 = vmin.f32 %v3090, %v3091
  %v3093 = vmin.f32 %v3071, %v3075
  %v3094 = vmin.f32 %v3073, %v3077
  %v3095 = vmin.f32 %v3093, %v3079
  %v3096 = vmin.f32 %v3094, %v3081
  %v3097 = vmin.f32 %v3095, %v3083
  %v3098 = vmin.f32 %v3096, %v3085
  %v3099 = vmin.f32 %v3097, %v3098
  %v3100 = vmin.f32 %v2904, %v3092
  %v3101 = vmin.f32 %v2905, %v3099
  %v3102 = vsub.f32 %v3054, %v2956
  %v3103 = vsub.f32 %v3054, %v2962
  %v3104 = vsub.f32 %v3055, %v2969
  %v3105 = vsub.f32 %v3055, %v2975
  %v3106 = vsub.f32 %v3056, %v2982
  %v3107 = vsub.f32 %v3056, %v2988
  %v3108 = vsub.f32 %v3057, %v2995
  %v3109 = vsub.f32 %v3057, %v3001
  %v3110 = vsub.f32 %v3058, %v3008
  %v3111 = vsub.f32 %v3058, %v3014
  %v3112 = vsub.f32 %v3059, %v3021
  %v3113 = vsub.f32 %v3059, %v3027
  %v3114 = vsub.f32 %v3060, %v3034
  %v3115 = vsub.f32 %v3060, %v3040
  %v3116 = vsub.f32 %v3061, %v3047
  %v3117 = vsub.f32 %v3061, %v3053
  %v3118 = vmax.f32 %v3102, %v3106
  %v3119 = vmax.f32 %v3104, %v3108
  %v3120 = vmax.f32 %v3118, %v3110
  %v3121 = vmax.f32 %v3119, %v3112
  %v3122 = vmax.f32 %v3120, %v3114
  %v3123 = vmax.f32 %v3121, %v3116
  %v3124 = vmax.f32 %v3122, %v3123
  %v3125 = vmax.f32 %v3103, %v3107
  %v3126 = vmax.f32 %v3105, %v3109
  %v3127 = vmax.f32 %v3125, %v3111
  %v3128 = vmax.f32 %v3126, %v3113
  %v3129 = vmax.f32 %v3127, %v3115
  %v3130 = vmax.f32 %v3128, %v3117
  %v3131 = vmax.f32 %v3129, %v3130
  %v3132 = vmax.f32 %v2936, %v3124
  %v3133 = vmax.f32 %v2937, %v3131
  %v3134 = vld [vmem:[#allocation3 + $0x18] sm:$0xff]
  %v3135 = vld [vmem:[%s5 + $0x18] sm:$0xff]
  %v3136 = vsub.f32 1.0, %v3135
  %v3137 = vmul.f32 %v3136, 1e+30
  %v3139 = vrot.slane %v3134, 1
  %v3140 = vrot.slane %v3134, 2
  %v3141 = vrot.slane %v3134, 3
  %v3142 = vrot.slane %v3134, 4
  %v3143 = vrot.slane %v3134, 5
  %v3144 = vrot.slane %v3134, 6
  %v3145 = vrot.slane %v3134, 7
  %v3146 = vperm.slane %v3137, 0
  %v3147 = vlaneseq
  %v3148 = vshrl.u32 %v3147, 7
  %3150 = vset.pattern.permute.xlu0 %v3148
  %3151 = vperm.xlu0 %3150, %v3146
  %v3152 = vpop.permute.xlu0 %3151
  %v3153 = vlaneseq
  %v3154 = vshrl.u32 %v3153, 7
  %v3155 = vadd.s32 %v3154, 8
  %3156 = vset.pattern.permute.xlu0 %v3155
  %3157 = vperm.xlu0 %3156, %v3146
  %v3158 = vpop.permute.xlu0 %3157
  %v3159 = vperm.slane %v3137, 1
  %v3160 = vlaneseq
  %v3161 = vshrl.u32 %v3160, 7
  %3163 = vset.pattern.permute.xlu0 %v3161
  %3164 = vperm.xlu0 %3163, %v3159
  %v3165 = vpop.permute.xlu0 %3164
  %v3166 = vlaneseq
  %v3167 = vshrl.u32 %v3166, 7
  %v3168 = vadd.s32 %v3167, 8
  %3169 = vset.pattern.permute.xlu0 %v3168
  %3170 = vperm.xlu0 %3169, %v3159
  %v3171 = vpop.permute.xlu0 %3170
  %v3172 = vperm.slane %v3137, 2
  %v3173 = vlaneseq
  %v3174 = vshrl.u32 %v3173, 7
  %3176 = vset.pattern.permute.xlu0 %v3174
  %3177 = vperm.xlu0 %3176, %v3172
  %v3178 = vpop.permute.xlu0 %3177
  %v3179 = vlaneseq
  %v3180 = vshrl.u32 %v3179, 7
  %v3181 = vadd.s32 %v3180, 8
  %3182 = vset.pattern.permute.xlu0 %v3181
  %3183 = vperm.xlu0 %3182, %v3172
  %v3184 = vpop.permute.xlu0 %3183
  %v3185 = vperm.slane %v3137, 3
  %v3186 = vlaneseq
  %v3187 = vshrl.u32 %v3186, 7
  %3189 = vset.pattern.permute.xlu0 %v3187
  %3190 = vperm.xlu0 %3189, %v3185
  %v3191 = vpop.permute.xlu0 %3190
  %v3192 = vlaneseq
  %v3193 = vshrl.u32 %v3192, 7
  %v3194 = vadd.s32 %v3193, 8
  %3195 = vset.pattern.permute.xlu0 %v3194
  %3196 = vperm.xlu0 %3195, %v3185
  %v3197 = vpop.permute.xlu0 %3196
  %v3198 = vperm.slane %v3137, 4
  %v3199 = vlaneseq
  %v3200 = vshrl.u32 %v3199, 7
  %3202 = vset.pattern.permute.xlu0 %v3200
  %3203 = vperm.xlu0 %3202, %v3198
  %v3204 = vpop.permute.xlu0 %3203
  %v3205 = vlaneseq
  %v3206 = vshrl.u32 %v3205, 7
  %v3207 = vadd.s32 %v3206, 8
  %3208 = vset.pattern.permute.xlu0 %v3207
  %3209 = vperm.xlu0 %3208, %v3198
  %v3210 = vpop.permute.xlu0 %3209
  %v3211 = vperm.slane %v3137, 5
  %v3212 = vlaneseq
  %v3213 = vshrl.u32 %v3212, 7
  %3215 = vset.pattern.permute.xlu0 %v3213
  %3216 = vperm.xlu0 %3215, %v3211
  %v3217 = vpop.permute.xlu0 %3216
  %v3218 = vlaneseq
  %v3219 = vshrl.u32 %v3218, 7
  %v3220 = vadd.s32 %v3219, 8
  %3221 = vset.pattern.permute.xlu0 %v3220
  %3222 = vperm.xlu0 %3221, %v3211
  %v3223 = vpop.permute.xlu0 %3222
  %v3224 = vperm.slane %v3137, 6
  %v3225 = vlaneseq
  %v3226 = vshrl.u32 %v3225, 7
  %3228 = vset.pattern.permute.xlu0 %v3226
  %3229 = vperm.xlu0 %3228, %v3224
  %v3230 = vpop.permute.xlu0 %3229
  %v3231 = vlaneseq
  %v3232 = vshrl.u32 %v3231, 7
  %v3233 = vadd.s32 %v3232, 8
  %3234 = vset.pattern.permute.xlu0 %v3233
  %3235 = vperm.xlu0 %3234, %v3224
  %v3236 = vpop.permute.xlu0 %3235
  %v3237 = vperm.slane %v3137, 7
  %v3238 = vlaneseq
  %v3239 = vshrl.u32 %v3238, 7
  %3241 = vset.pattern.permute.xlu0 %v3239
  %3242 = vperm.xlu0 %3241, %v3237
  %v3243 = vpop.permute.xlu0 %3242
  %v3244 = vlaneseq
  %v3245 = vshrl.u32 %v3244, 7
  %v3246 = vadd.s32 %v3245, 8
  %3247 = vset.pattern.permute.xlu0 %v3246
  %3248 = vperm.xlu0 %3247, %v3237
  %v3249 = vpop.permute.xlu0 %3248
  %v3250 = vperm.slane %v3134, 0
  %v3251 = vperm.slane %v3139, 0
  %v3252 = vperm.slane %v3140, 0
  %v3253 = vperm.slane %v3141, 0
  %v3254 = vperm.slane %v3142, 0
  %v3255 = vperm.slane %v3143, 0
  %v3256 = vperm.slane %v3144, 0
  %v3257 = vperm.slane %v3145, 0
  %v3266 = vadd.f32 %v3250, %v3152
  %v3267 = vadd.f32 %v3250, %v3158
  %v3268 = vadd.f32 %v3251, %v3165
  %v3269 = vadd.f32 %v3251, %v3171
  %v3270 = vadd.f32 %v3252, %v3178
  %v3271 = vadd.f32 %v3252, %v3184
  %v3272 = vadd.f32 %v3253, %v3191
  %v3273 = vadd.f32 %v3253, %v3197
  %v3274 = vadd.f32 %v3254, %v3204
  %v3275 = vadd.f32 %v3254, %v3210
  %v3276 = vadd.f32 %v3255, %v3217
  %v3277 = vadd.f32 %v3255, %v3223
  %v3278 = vadd.f32 %v3256, %v3230
  %v3279 = vadd.f32 %v3256, %v3236
  %v3280 = vadd.f32 %v3257, %v3243
  %v3281 = vadd.f32 %v3257, %v3249
  %v3282 = vmin.f32 %v3266, %v3270
  %v3283 = vmin.f32 %v3268, %v3272
  %v3284 = vmin.f32 %v3282, %v3274
  %v3285 = vmin.f32 %v3283, %v3276
  %v3286 = vmin.f32 %v3284, %v3278
  %v3287 = vmin.f32 %v3285, %v3280
  %v3288 = vmin.f32 %v3286, %v3287
  %v3289 = vmin.f32 %v3267, %v3271
  %v3290 = vmin.f32 %v3269, %v3273
  %v3291 = vmin.f32 %v3289, %v3275
  %v3292 = vmin.f32 %v3290, %v3277
  %v3293 = vmin.f32 %v3291, %v3279
  %v3294 = vmin.f32 %v3292, %v3281
  %v3295 = vmin.f32 %v3293, %v3294
  %v3296 = vmin.f32 %v3100, %v3288
  %v3297 = vmin.f32 %v3101, %v3295
  %v3298 = vsub.f32 %v3250, %v3152
  %v3299 = vsub.f32 %v3250, %v3158
  %v3300 = vsub.f32 %v3251, %v3165
  %v3301 = vsub.f32 %v3251, %v3171
  %v3302 = vsub.f32 %v3252, %v3178
  %v3303 = vsub.f32 %v3252, %v3184
  %v3304 = vsub.f32 %v3253, %v3191
  %v3305 = vsub.f32 %v3253, %v3197
  %v3306 = vsub.f32 %v3254, %v3204
  %v3307 = vsub.f32 %v3254, %v3210
  %v3308 = vsub.f32 %v3255, %v3217
  %v3309 = vsub.f32 %v3255, %v3223
  %v3310 = vsub.f32 %v3256, %v3230
  %v3311 = vsub.f32 %v3256, %v3236
  %v3312 = vsub.f32 %v3257, %v3243
  %v3313 = vsub.f32 %v3257, %v3249
  %v3314 = vmax.f32 %v3298, %v3302
  %v3315 = vmax.f32 %v3300, %v3304
  %v3316 = vmax.f32 %v3314, %v3306
  %v3317 = vmax.f32 %v3315, %v3308
  %v3318 = vmax.f32 %v3316, %v3310
  %v3319 = vmax.f32 %v3317, %v3312
  %v3320 = vmax.f32 %v3318, %v3319
  %v3321 = vmax.f32 %v3299, %v3303
  %v3322 = vmax.f32 %v3301, %v3305
  %v3323 = vmax.f32 %v3321, %v3307
  %v3324 = vmax.f32 %v3322, %v3309
  %v3325 = vmax.f32 %v3323, %v3311
  %v3326 = vmax.f32 %v3324, %v3313
  %v3327 = vmax.f32 %v3325, %v3326
  %v3328 = vmax.f32 %v3132, %v3320
  %v3329 = vmax.f32 %v3133, %v3327
  %v3330 = vld [vmem:[#allocation3 + $0x20] sm:$0xff]
  %v3331 = vld [vmem:[%s5 + $0x20] sm:$0xff]
  %v3332 = vsub.f32 1.0, %v3331
  %v3333 = vmul.f32 %v3332, 1e+30
  %v3335 = vrot.slane %v3330, 1
  %v3336 = vrot.slane %v3330, 2
  %v3337 = vrot.slane %v3330, 3
  %v3338 = vrot.slane %v3330, 4
  %v3339 = vrot.slane %v3330, 5
  %v3340 = vrot.slane %v3330, 6
  %v3341 = vrot.slane %v3330, 7
  %v3342 = vperm.slane %v3333, 0
  %v3343 = vlaneseq
  %v3344 = vshrl.u32 %v3343, 7
  %3346 = vset.pattern.permute.xlu0 %v3344
  %3347 = vperm.xlu0 %3346, %v3342
  %v3348 = vpop.permute.xlu0 %3347
  %v3349 = vlaneseq
  %v3350 = vshrl.u32 %v3349, 7
  %v3351 = vadd.s32 %v3350, 8
  %3352 = vset.pattern.permute.xlu0 %v3351
  %3353 = vperm.xlu0 %3352, %v3342
  %v3354 = vpop.permute.xlu0 %3353
  %v3355 = vperm.slane %v3333, 1
  %v3356 = vlaneseq
  %v3357 = vshrl.u32 %v3356, 7
  %3359 = vset.pattern.permute.xlu0 %v3357
  %3360 = vperm.xlu0 %3359, %v3355
  %v3361 = vpop.permute.xlu0 %3360
  %v3362 = vlaneseq
  %v3363 = vshrl.u32 %v3362, 7
  %v3364 = vadd.s32 %v3363, 8
  %3365 = vset.pattern.permute.xlu0 %v3364
  %3366 = vperm.xlu0 %3365, %v3355
  %v3367 = vpop.permute.xlu0 %3366
  %v3368 = vperm.slane %v3333, 2
  %v3369 = vlaneseq
  %v3370 = vshrl.u32 %v3369, 7
  %3372 = vset.pattern.permute.xlu0 %v3370
  %3373 = vperm.xlu0 %3372, %v3368
  %v3374 = vpop.permute.xlu0 %3373
  %v3375 = vlaneseq
  %v3376 = vshrl.u32 %v3375, 7
  %v3377 = vadd.s32 %v3376, 8
  %3378 = vset.pattern.permute.xlu0 %v3377
  %3379 = vperm.xlu0 %3378, %v3368
  %v3380 = vpop.permute.xlu0 %3379
  %v3381 = vperm.slane %v3333, 3
  %v3382 = vlaneseq
  %v3383 = vshrl.u32 %v3382, 7
  %3385 = vset.pattern.permute.xlu0 %v3383
  %3386 = vperm.xlu0 %3385, %v3381
  %v3387 = vpop.permute.xlu0 %3386
  %v3388 = vlaneseq
  %v3389 = vshrl.u32 %v3388, 7
  %v3390 = vadd.s32 %v3389, 8
  %3391 = vset.pattern.permute.xlu0 %v3390
  %3392 = vperm.xlu0 %3391, %v3381
  %v3393 = vpop.permute.xlu0 %3392
  %v3394 = vperm.slane %v3333, 4
  %v3395 = vlaneseq
  %v3396 = vshrl.u32 %v3395, 7
  %3398 = vset.pattern.permute.xlu0 %v3396
  %3399 = vperm.xlu0 %3398, %v3394
  %v3400 = vpop.permute.xlu0 %3399
  %v3401 = vlaneseq
  %v3402 = vshrl.u32 %v3401, 7
  %v3403 = vadd.s32 %v3402, 8
  %3404 = vset.pattern.permute.xlu0 %v3403
  %3405 = vperm.xlu0 %3404, %v3394
  %v3406 = vpop.permute.xlu0 %3405
  %v3407 = vperm.slane %v3333, 5
  %v3408 = vlaneseq
  %v3409 = vshrl.u32 %v3408, 7
  %3411 = vset.pattern.permute.xlu0 %v3409
  %3412 = vperm.xlu0 %3411, %v3407
  %v3413 = vpop.permute.xlu0 %3412
  %v3414 = vlaneseq
  %v3415 = vshrl.u32 %v3414, 7
  %v3416 = vadd.s32 %v3415, 8
  %3417 = vset.pattern.permute.xlu0 %v3416
  %3418 = vperm.xlu0 %3417, %v3407
  %v3419 = vpop.permute.xlu0 %3418
  %v3420 = vperm.slane %v3333, 6
  %v3421 = vlaneseq
  %v3422 = vshrl.u32 %v3421, 7
  %3424 = vset.pattern.permute.xlu0 %v3422
  %3425 = vperm.xlu0 %3424, %v3420
  %v3426 = vpop.permute.xlu0 %3425
  %v3427 = vlaneseq
  %v3428 = vshrl.u32 %v3427, 7
  %v3429 = vadd.s32 %v3428, 8
  %3430 = vset.pattern.permute.xlu0 %v3429
  %3431 = vperm.xlu0 %3430, %v3420
  %v3432 = vpop.permute.xlu0 %3431
  %v3433 = vperm.slane %v3333, 7
  %v3434 = vlaneseq
  %v3435 = vshrl.u32 %v3434, 7
  %3437 = vset.pattern.permute.xlu0 %v3435
  %3438 = vperm.xlu0 %3437, %v3433
  %v3439 = vpop.permute.xlu0 %3438
  %v3440 = vlaneseq
  %v3441 = vshrl.u32 %v3440, 7
  %v3442 = vadd.s32 %v3441, 8
  %3443 = vset.pattern.permute.xlu0 %v3442
  %3444 = vperm.xlu0 %3443, %v3433
  %v3445 = vpop.permute.xlu0 %3444
  %v3446 = vperm.slane %v3330, 0
  %v3447 = vperm.slane %v3335, 0
  %v3448 = vperm.slane %v3336, 0
  %v3449 = vperm.slane %v3337, 0
  %v3450 = vperm.slane %v3338, 0
  %v3451 = vperm.slane %v3339, 0
  %v3452 = vperm.slane %v3340, 0
  %v3453 = vperm.slane %v3341, 0
  %v3462 = vadd.f32 %v3446, %v3348
  %v3463 = vadd.f32 %v3446, %v3354
  %v3464 = vadd.f32 %v3447, %v3361
  %v3465 = vadd.f32 %v3447, %v3367
  %v3466 = vadd.f32 %v3448, %v3374
  %v3467 = vadd.f32 %v3448, %v3380
  %v3468 = vadd.f32 %v3449, %v3387
  %v3469 = vadd.f32 %v3449, %v3393
  %v3470 = vadd.f32 %v3450, %v3400
  %v3471 = vadd.f32 %v3450, %v3406
  %v3472 = vadd.f32 %v3451, %v3413
  %v3473 = vadd.f32 %v3451, %v3419
  %v3474 = vadd.f32 %v3452, %v3426
  %v3475 = vadd.f32 %v3452, %v3432
  %v3476 = vadd.f32 %v3453, %v3439
  %v3477 = vadd.f32 %v3453, %v3445
  %v3478 = vmin.f32 %v3462, %v3466
  %v3479 = vmin.f32 %v3464, %v3468
  %v3480 = vmin.f32 %v3478, %v3470
  %v3481 = vmin.f32 %v3479, %v3472
  %v3482 = vmin.f32 %v3480, %v3474
  %v3483 = vmin.f32 %v3481, %v3476
  %v3484 = vmin.f32 %v3482, %v3483
  %v3485 = vmin.f32 %v3463, %v3467
  %v3486 = vmin.f32 %v3465, %v3469
  %v3487 = vmin.f32 %v3485, %v3471
  %v3488 = vmin.f32 %v3486, %v3473
  %v3489 = vmin.f32 %v3487, %v3475
  %v3490 = vmin.f32 %v3488, %v3477
  %v3491 = vmin.f32 %v3489, %v3490
  %v3492 = vmin.f32 %v3296, %v3484
  %v3493 = vmin.f32 %v3297, %v3491
  %v3494 = vsub.f32 %v3446, %v3348
  %v3495 = vsub.f32 %v3446, %v3354
  %v3496 = vsub.f32 %v3447, %v3361
  %v3497 = vsub.f32 %v3447, %v3367
  %v3498 = vsub.f32 %v3448, %v3374
  %v3499 = vsub.f32 %v3448, %v3380
  %v3500 = vsub.f32 %v3449, %v3387
  %v3501 = vsub.f32 %v3449, %v3393
  %v3502 = vsub.f32 %v3450, %v3400
  %v3503 = vsub.f32 %v3450, %v3406
  %v3504 = vsub.f32 %v3451, %v3413
  %v3505 = vsub.f32 %v3451, %v3419
  %v3506 = vsub.f32 %v3452, %v3426
  %v3507 = vsub.f32 %v3452, %v3432
  %v3508 = vsub.f32 %v3453, %v3439
  %v3509 = vsub.f32 %v3453, %v3445
  %v3510 = vmax.f32 %v3494, %v3498
  %v3511 = vmax.f32 %v3496, %v3500
  %v3512 = vmax.f32 %v3510, %v3502
  %v3513 = vmax.f32 %v3511, %v3504
  %v3514 = vmax.f32 %v3512, %v3506
  %v3515 = vmax.f32 %v3513, %v3508
  %v3516 = vmax.f32 %v3514, %v3515
  %v3517 = vmax.f32 %v3495, %v3499
  %v3518 = vmax.f32 %v3497, %v3501
  %v3519 = vmax.f32 %v3517, %v3503
  %v3520 = vmax.f32 %v3518, %v3505
  %v3521 = vmax.f32 %v3519, %v3507
  %v3522 = vmax.f32 %v3520, %v3509
  %v3523 = vmax.f32 %v3521, %v3522
  %v3524 = vmax.f32 %v3328, %v3516
  %v3525 = vmax.f32 %v3329, %v3523
  %v3526 = vld [vmem:[#allocation3 + $0x28] sm:$0xff]
  %v3527 = vld [vmem:[%s5 + $0x28] sm:$0xff]
  %v3528 = vsub.f32 1.0, %v3527
  %v3529 = vmul.f32 %v3528, 1e+30
  %v3531 = vrot.slane %v3526, 1
  %v3532 = vrot.slane %v3526, 2
  %v3533 = vrot.slane %v3526, 3
  %v3534 = vrot.slane %v3526, 4
  %v3535 = vrot.slane %v3526, 5
  %v3536 = vrot.slane %v3526, 6
  %v3537 = vrot.slane %v3526, 7
  %v3538 = vperm.slane %v3529, 0
  %v3539 = vlaneseq
  %v3540 = vshrl.u32 %v3539, 7
  %3542 = vset.pattern.permute.xlu0 %v3540
  %3543 = vperm.xlu0 %3542, %v3538
  %v3544 = vpop.permute.xlu0 %3543
  %v3545 = vlaneseq
  %v3546 = vshrl.u32 %v3545, 7
  %v3547 = vadd.s32 %v3546, 8
  %3548 = vset.pattern.permute.xlu0 %v3547
  %3549 = vperm.xlu0 %3548, %v3538
  %v3550 = vpop.permute.xlu0 %3549
  %v3551 = vperm.slane %v3529, 1
  %v3552 = vlaneseq
  %v3553 = vshrl.u32 %v3552, 7
  %3555 = vset.pattern.permute.xlu0 %v3553
  %3556 = vperm.xlu0 %3555, %v3551
  %v3557 = vpop.permute.xlu0 %3556
  %v3558 = vlaneseq
  %v3559 = vshrl.u32 %v3558, 7
  %v3560 = vadd.s32 %v3559, 8
  %3561 = vset.pattern.permute.xlu0 %v3560
  %3562 = vperm.xlu0 %3561, %v3551
  %v3563 = vpop.permute.xlu0 %3562
  %v3564 = vperm.slane %v3529, 2
  %v3565 = vlaneseq
  %v3566 = vshrl.u32 %v3565, 7
  %3568 = vset.pattern.permute.xlu0 %v3566
  %3569 = vperm.xlu0 %3568, %v3564
  %v3570 = vpop.permute.xlu0 %3569
  %v3571 = vlaneseq
  %v3572 = vshrl.u32 %v3571, 7
  %v3573 = vadd.s32 %v3572, 8
  %3574 = vset.pattern.permute.xlu0 %v3573
  %3575 = vperm.xlu0 %3574, %v3564
  %v3576 = vpop.permute.xlu0 %3575
  %v3577 = vperm.slane %v3529, 3
  %v3578 = vlaneseq
  %v3579 = vshrl.u32 %v3578, 7
  %3581 = vset.pattern.permute.xlu0 %v3579
  %3582 = vperm.xlu0 %3581, %v3577
  %v3583 = vpop.permute.xlu0 %3582
  %v3584 = vlaneseq
  %v3585 = vshrl.u32 %v3584, 7
  %v3586 = vadd.s32 %v3585, 8
  %3587 = vset.pattern.permute.xlu0 %v3586
  %3588 = vperm.xlu0 %3587, %v3577
  %v3589 = vpop.permute.xlu0 %3588
  %v3590 = vperm.slane %v3529, 4
  %v3591 = vlaneseq
  %v3592 = vshrl.u32 %v3591, 7
  %3594 = vset.pattern.permute.xlu0 %v3592
  %3595 = vperm.xlu0 %3594, %v3590
  %v3596 = vpop.permute.xlu0 %3595
  %v3597 = vlaneseq
  %v3598 = vshrl.u32 %v3597, 7
  %v3599 = vadd.s32 %v3598, 8
  %3600 = vset.pattern.permute.xlu0 %v3599
  %3601 = vperm.xlu0 %3600, %v3590
  %v3602 = vpop.permute.xlu0 %3601
  %v3603 = vperm.slane %v3529, 5
  %v3604 = vlaneseq
  %v3605 = vshrl.u32 %v3604, 7
  %3607 = vset.pattern.permute.xlu0 %v3605
  %3608 = vperm.xlu0 %3607, %v3603
  %v3609 = vpop.permute.xlu0 %3608
  %v3610 = vlaneseq
  %v3611 = vshrl.u32 %v3610, 7
  %v3612 = vadd.s32 %v3611, 8
  %3613 = vset.pattern.permute.xlu0 %v3612
  %3614 = vperm.xlu0 %3613, %v3603
  %v3615 = vpop.permute.xlu0 %3614
  %v3616 = vperm.slane %v3529, 6
  %v3617 = vlaneseq
  %v3618 = vshrl.u32 %v3617, 7
  %3620 = vset.pattern.permute.xlu0 %v3618
  %3621 = vperm.xlu0 %3620, %v3616
  %v3622 = vpop.permute.xlu0 %3621
  %v3623 = vlaneseq
  %v3624 = vshrl.u32 %v3623, 7
  %v3625 = vadd.s32 %v3624, 8
  %3626 = vset.pattern.permute.xlu0 %v3625
  %3627 = vperm.xlu0 %3626, %v3616
  %v3628 = vpop.permute.xlu0 %3627
  %v3629 = vperm.slane %v3529, 7
  %v3630 = vlaneseq
  %v3631 = vshrl.u32 %v3630, 7
  %3633 = vset.pattern.permute.xlu0 %v3631
  %3634 = vperm.xlu0 %3633, %v3629
  %v3635 = vpop.permute.xlu0 %3634
  %v3636 = vlaneseq
  %v3637 = vshrl.u32 %v3636, 7
  %v3638 = vadd.s32 %v3637, 8
  %3639 = vset.pattern.permute.xlu0 %v3638
  %3640 = vperm.xlu0 %3639, %v3629
  %v3641 = vpop.permute.xlu0 %3640
  %v3642 = vperm.slane %v3526, 0
  %v3643 = vperm.slane %v3531, 0
  %v3644 = vperm.slane %v3532, 0
  %v3645 = vperm.slane %v3533, 0
  %v3646 = vperm.slane %v3534, 0
  %v3647 = vperm.slane %v3535, 0
  %v3648 = vperm.slane %v3536, 0
  %v3649 = vperm.slane %v3537, 0
  %v3658 = vadd.f32 %v3642, %v3544
  %v3659 = vadd.f32 %v3642, %v3550
  %v3660 = vadd.f32 %v3643, %v3557
  %v3661 = vadd.f32 %v3643, %v3563
  %v3662 = vadd.f32 %v3644, %v3570
  %v3663 = vadd.f32 %v3644, %v3576
  %v3664 = vadd.f32 %v3645, %v3583
  %v3665 = vadd.f32 %v3645, %v3589
  %v3666 = vadd.f32 %v3646, %v3596
  %v3667 = vadd.f32 %v3646, %v3602
  %v3668 = vadd.f32 %v3647, %v3609
  %v3669 = vadd.f32 %v3647, %v3615
  %v3670 = vadd.f32 %v3648, %v3622
  %v3671 = vadd.f32 %v3648, %v3628
  %v3672 = vadd.f32 %v3649, %v3635
  %v3673 = vadd.f32 %v3649, %v3641
  %v3674 = vmin.f32 %v3658, %v3662
  %v3675 = vmin.f32 %v3660, %v3664
  %v3676 = vmin.f32 %v3674, %v3666
  %v3677 = vmin.f32 %v3675, %v3668
  %v3678 = vmin.f32 %v3676, %v3670
  %v3679 = vmin.f32 %v3677, %v3672
  %v3680 = vmin.f32 %v3678, %v3679
  %v3681 = vmin.f32 %v3659, %v3663
  %v3682 = vmin.f32 %v3661, %v3665
  %v3683 = vmin.f32 %v3681, %v3667
  %v3684 = vmin.f32 %v3682, %v3669
  %v3685 = vmin.f32 %v3683, %v3671
  %v3686 = vmin.f32 %v3684, %v3673
  %v3687 = vmin.f32 %v3685, %v3686
  %v3688 = vmin.f32 %v3492, %v3680
  %v3689 = vmin.f32 %v3493, %v3687
  %v3690 = vsub.f32 %v3642, %v3544
  %v3691 = vsub.f32 %v3642, %v3550
  %v3692 = vsub.f32 %v3643, %v3557
  %v3693 = vsub.f32 %v3643, %v3563
  %v3694 = vsub.f32 %v3644, %v3570
  %v3695 = vsub.f32 %v3644, %v3576
  %v3696 = vsub.f32 %v3645, %v3583
  %v3697 = vsub.f32 %v3645, %v3589
  %v3698 = vsub.f32 %v3646, %v3596
  %v3699 = vsub.f32 %v3646, %v3602
  %v3700 = vsub.f32 %v3647, %v3609
  %v3701 = vsub.f32 %v3647, %v3615
  %v3702 = vsub.f32 %v3648, %v3622
  %v3703 = vsub.f32 %v3648, %v3628
  %v3704 = vsub.f32 %v3649, %v3635
  %v3705 = vsub.f32 %v3649, %v3641
  %v3706 = vmax.f32 %v3690, %v3694
  %v3707 = vmax.f32 %v3692, %v3696
  %v3708 = vmax.f32 %v3706, %v3698
  %v3709 = vmax.f32 %v3707, %v3700
  %v3710 = vmax.f32 %v3708, %v3702
  %v3711 = vmax.f32 %v3709, %v3704
  %v3712 = vmax.f32 %v3710, %v3711
  %v3713 = vmax.f32 %v3691, %v3695
  %v3714 = vmax.f32 %v3693, %v3697
  %v3715 = vmax.f32 %v3713, %v3699
  %v3716 = vmax.f32 %v3714, %v3701
  %v3717 = vmax.f32 %v3715, %v3703
  %v3718 = vmax.f32 %v3716, %v3705
  %v3719 = vmax.f32 %v3717, %v3718
  %v3720 = vmax.f32 %v3524, %v3712
  %v3721 = vmax.f32 %v3525, %v3719
  %v3722 = vsel %vm1826, %v3688, 0.0
  %v3723 = vsel %vm1827, %v3689, 0.0
  %v3724 = vsel %vm1826, %v3720, 0.0
  %v3725 = vsel %vm1827, %v3721, 0.0
  %v3726 = vld [vmem:[%s39] sm:$0xff]
  %v3727 = vld [vmem:[%s39 + $0x8] sm:$0xff]
  %v3728 = vld [vmem:[%s39 + $0x10] sm:$0xff]
  %v3729 = vld [vmem:[%s39 + $0x18] sm:$0xff]
  %v3730 = vld [vmem:[%s39 + $0x20] sm:$0xff]
  %v3731 = vld [vmem:[%s39 + $0x28] sm:$0xff]
  %v3732 = vld [vmem:[%s39 + $0x30] sm:$0xff]
  %v3733 = vld [vmem:[%s39 + $0x38] sm:$0xff]
  %v3734 = vld [vmem:[%s39 + $0x40] sm:$0xff]
  %v3735 = vld [vmem:[%s39 + $0x48] sm:$0xff]
  %v3736 = vld [vmem:[%s39 + $0x50] sm:$0xff]
  %v3737 = vld [vmem:[%s39 + $0x58] sm:$0xff]
  %v3738 = vld [vmem:[%s39 + $0x60] sm:$0xff]
  %v3739 = vld [vmem:[%s39 + $0x68] sm:$0xff]
  %v3740 = vld [vmem:[%s39 + $0x70] sm:$0xff]
  %v3741 = vld [vmem:[%s39 + $0x78] sm:$0xff]
  %s3742 = scalar_lea.vmem %s39, 128
  %v3743 = vld [vmem:[%s3742] sm:$0xff]
  %v3744 = vld [vmem:[%s3742 + $0x8] sm:$0xff]
  %v3745 = vld [vmem:[%s3742 + $0x10] sm:$0xff]
  %v3746 = vld [vmem:[%s3742 + $0x18] sm:$0xff]
  %v3747 = vld [vmem:[%s3742 + $0x20] sm:$0xff]
  %v3748 = vld [vmem:[%s3742 + $0x28] sm:$0xff]
  %v3749 = vld [vmem:[%s3742 + $0x30] sm:$0xff]
  %v3750 = vld [vmem:[%s3742 + $0x38] sm:$0xff]
  %v3751 = vld [vmem:[%s3742 + $0x40] sm:$0xff]
  %v3752 = vld [vmem:[%s3742 + $0x48] sm:$0xff]
  %v3753 = vld [vmem:[%s3742 + $0x50] sm:$0xff]
  %v3754 = vld [vmem:[%s3742 + $0x58] sm:$0xff]
  %v3755 = vld [vmem:[%s3742 + $0x60] sm:$0xff]
  %v3756 = vld [vmem:[%s3742 + $0x68] sm:$0xff]
  %v3757 = vld [vmem:[%s3742 + $0x70] sm:$0xff]
  %v3758 = vld [vmem:[%s3742 + $0x78] sm:$0xff]
  %s3759 = scalar_lea.vmem %s39, 256
  %v3760 = vld [vmem:[%s3759] sm:$0xff]
  %v3761 = vld [vmem:[%s3759 + $0x8] sm:$0xff]
  %v3762 = vld [vmem:[%s3759 + $0x10] sm:$0xff]
  %v3763 = vld [vmem:[%s3759 + $0x18] sm:$0xff]
  %v3764 = vld [vmem:[%s3759 + $0x20] sm:$0xff]
  %v3765 = vld [vmem:[%s3759 + $0x28] sm:$0xff]
  %v3766 = vld [vmem:[%s3759 + $0x30] sm:$0xff]
  %v3767 = vld [vmem:[%s3759 + $0x38] sm:$0xff]
  %v3768 = vld [vmem:[%s3759 + $0x40] sm:$0xff]
  %v3769 = vld [vmem:[%s3759 + $0x48] sm:$0xff]
  %v3770 = vld [vmem:[%s3759 + $0x50] sm:$0xff]
  %v3771 = vld [vmem:[%s3759 + $0x58] sm:$0xff]
  %v3772 = vld [vmem:[%s3759 + $0x60] sm:$0xff]
  %v3773 = vld [vmem:[%s3759 + $0x68] sm:$0xff]
  %v3774 = vld [vmem:[%s3759 + $0x70] sm:$0xff]
  %v3775 = vld [vmem:[%s3759 + $0x78] sm:$0xff]
  %s3776 = scalar_lea.vmem %s39, 384
  %v3777 = vld [vmem:[%s3776] sm:$0xff]
  %v3778 = vld [vmem:[%s3776 + $0x8] sm:$0xff]
  %v3779 = vld [vmem:[%s3776 + $0x10] sm:$0xff]
  %v3780 = vld [vmem:[%s3776 + $0x18] sm:$0xff]
  %v3781 = vld [vmem:[%s3776 + $0x20] sm:$0xff]
  %v3782 = vld [vmem:[%s3776 + $0x28] sm:$0xff]
  %v3783 = vld [vmem:[%s3776 + $0x30] sm:$0xff]
  %v3784 = vld [vmem:[%s3776 + $0x38] sm:$0xff]
  %v3785 = vld [vmem:[%s3776 + $0x40] sm:$0xff]
  %v3786 = vld [vmem:[%s3776 + $0x48] sm:$0xff]
  %v3787 = vld [vmem:[%s3776 + $0x50] sm:$0xff]
  %v3788 = vld [vmem:[%s3776 + $0x58] sm:$0xff]
  %v3789 = vld [vmem:[%s3776 + $0x60] sm:$0xff]
  %v3790 = vld [vmem:[%s3776 + $0x68] sm:$0xff]
  %v3791 = vld [vmem:[%s3776 + $0x70] sm:$0xff]
  %v3792 = vld [vmem:[%s3776 + $0x78] sm:$0xff]
  %3793 = vmatpush.msra.mxu0 %v3792
  %3794 = vmatpush.msra.mxu0 %v3791
  %3795 = vmatpush.msra.mxu0 %v3790
  %3796 = vmatpush.msra.mxu0 %v3789
  %3797 = vmatpush.msra.mxu0 %v3788
  %3798 = vmatpush.msra.mxu0 %v3787
  %3799 = vmatpush.msra.mxu0 %v3786
  %3800 = vmatpush.msra.mxu0 %v3785
  %3801 = vmatpush.msra.mxu0 %v3784
  %3802 = vmatpush.msra.mxu0 %v3783
  %3803 = vmatpush.msra.mxu0 %v3782
  %3804 = vmatpush.msra.mxu0 %v3781
  %3805 = vmatpush.msra.mxu0 %v3780
  %3806 = vmatpush.msra.mxu0 %v3779
  %3807 = vmatpush.msra.mxu0 %v3778
  %3808 = vmatpush.msra.mxu0 %v3777
  %3809 = vmatmul.f32.gmra.mxu0 %v3722
  %v3810 = vpop.f32.mrf.mxu0
  %v3811 = vadd.f32 0.0, %v3810
  %3812 = vmatmul.f32.gmra.mxu0 %v3723
  %v3813 = vpop.f32.mrf.mxu0
  %v3814 = vadd.f32 0.0, %v3813
  %3815 = vdwg.mxu0
  %3816 = vmatpush.msra.mxu0 %v3741
  %3817 = vmatpush.msra.mxu0 %v3740
  %3818 = vmatpush.msra.mxu0 %v3739
  %3819 = vmatpush.msra.mxu0 %v3738
  %3820 = vmatpush.msra.mxu0 %v3737
  %3821 = vmatpush.msra.mxu0 %v3736
  %3822 = vmatpush.msra.mxu0 %v3735
  %3823 = vmatpush.msra.mxu0 %v3734
  %3824 = vmatpush.msra.mxu0 %v3733
  %3825 = vmatpush.msra.mxu0 %v3732
  %3826 = vmatpush.msra.mxu0 %v3731
  %3827 = vmatpush.msra.mxu0 %v3730
  %3828 = vmatpush.msra.mxu0 %v3729
  %3829 = vmatpush.msra.mxu0 %v3728
  %3830 = vmatpush.msra.mxu0 %v3727
  %3831 = vmatpush.msra.mxu0 %v3726
  %3832 = vmatmul.f32.gmra.mxu0 %v2504
  %v3833 = vpop.f32.mrf.mxu0
  %v3834 = vadd.f32 %v3811, %v3833
  %3835 = vmatmul.f32.gmra.mxu0 %v2505
  %v3836 = vpop.f32.mrf.mxu0
  %v3837 = vadd.f32 %v3814, %v3836
  %3838 = vdwg.mxu0
  %s3839 = scalar_lea.vmem %s39, 512
  %v3840 = vld [vmem:[%s3839] sm:$0xff]
  %v3841 = vld [vmem:[%s3839 + $0x8] sm:$0xff]
  %v3842 = vld [vmem:[%s3839 + $0x10] sm:$0xff]
  %v3843 = vld [vmem:[%s3839 + $0x18] sm:$0xff]
  %v3844 = vld [vmem:[%s3839 + $0x20] sm:$0xff]
  %v3845 = vld [vmem:[%s3839 + $0x28] sm:$0xff]
  %v3846 = vld [vmem:[%s3839 + $0x30] sm:$0xff]
  %v3847 = vld [vmem:[%s3839 + $0x38] sm:$0xff]
  %v3848 = vld [vmem:[%s3839 + $0x40] sm:$0xff]
  %v3849 = vld [vmem:[%s3839 + $0x48] sm:$0xff]
  %v3850 = vld [vmem:[%s3839 + $0x50] sm:$0xff]
  %v3851 = vld [vmem:[%s3839 + $0x58] sm:$0xff]
  %v3852 = vld [vmem:[%s3839 + $0x60] sm:$0xff]
  %v3853 = vld [vmem:[%s3839 + $0x68] sm:$0xff]
  %v3854 = vld [vmem:[%s3839 + $0x70] sm:$0xff]
  %v3855 = vld [vmem:[%s3839 + $0x78] sm:$0xff]
  %3856 = vmatpush.msra.mxu0 %v3855
  %3857 = vmatpush.msra.mxu0 %v3854
  %3858 = vmatpush.msra.mxu0 %v3853
  %3859 = vmatpush.msra.mxu0 %v3852
  %3860 = vmatpush.msra.mxu0 %v3851
  %3861 = vmatpush.msra.mxu0 %v3850
  %3862 = vmatpush.msra.mxu0 %v3849
  %3863 = vmatpush.msra.mxu0 %v3848
  %3864 = vmatpush.msra.mxu0 %v3847
  %3865 = vmatpush.msra.mxu0 %v3846
  %3866 = vmatpush.msra.mxu0 %v3845
  %3867 = vmatpush.msra.mxu0 %v3844
  %3868 = vmatpush.msra.mxu0 %v3843
  %3869 = vmatpush.msra.mxu0 %v3842
  %3870 = vmatpush.msra.mxu0 %v3841
  %3871 = vmatpush.msra.mxu0 %v3840
  %3872 = vmatmul.f32.gmra.mxu0 %v3722
  %v3873 = vpop.f32.mrf.mxu0
  %v3874 = vadd.f32 0.0, %v3873
  %3875 = vmatmul.f32.gmra.mxu0 %v3723
  %v3876 = vpop.f32.mrf.mxu0
  %v3877 = vadd.f32 0.0, %v3876
  %3878 = vdwg.mxu0
  %3879 = vmatpush.msra.mxu0 %v3758
  %3880 = vmatpush.msra.mxu0 %v3757
  %3881 = vmatpush.msra.mxu0 %v3756
  %3882 = vmatpush.msra.mxu0 %v3755
  %3883 = vmatpush.msra.mxu0 %v3754
  %3884 = vmatpush.msra.mxu0 %v3753
  %3885 = vmatpush.msra.mxu0 %v3752
  %3886 = vmatpush.msra.mxu0 %v3751
  %3887 = vmatpush.msra.mxu0 %v3750
  %3888 = vmatpush.msra.mxu0 %v3749
  %3889 = vmatpush.msra.mxu0 %v3748
  %3890 = vmatpush.msra.mxu0 %v3747
  %3891 = vmatpush.msra.mxu0 %v3746
  %3892 = vmatpush.msra.mxu0 %v3745
  %3893 = vmatpush.msra.mxu0 %v3744
  %3894 = vmatpush.msra.mxu0 %v3743
  %3895 = vmatmul.f32.gmra.mxu0 %v2504
  %v3896 = vpop.f32.mrf.mxu0
  %v3897 = vadd.f32 %v3874, %v3896
  %3898 = vmatmul.f32.gmra.mxu0 %v2505
  %v3899 = vpop.f32.mrf.mxu0
  %v3900 = vadd.f32 %v3877, %v3899
  %3901 = vdwg.mxu0
  %s3902 = scalar_lea.vmem %s39, 640
  %v3903 = vld [vmem:[%s3902] sm:$0xff]
  %v3904 = vld [vmem:[%s3902 + $0x8] sm:$0xff]
  %v3905 = vld [vmem:[%s3902 + $0x10] sm:$0xff]
  %v3906 = vld [vmem:[%s3902 + $0x18] sm:$0xff]
  %v3907 = vld [vmem:[%s3902 + $0x20] sm:$0xff]
  %v3908 = vld [vmem:[%s3902 + $0x28] sm:$0xff]
  %v3909 = vld [vmem:[%s3902 + $0x30] sm:$0xff]
  %v3910 = vld [vmem:[%s3902 + $0x38] sm:$0xff]
  %v3911 = vld [vmem:[%s3902 + $0x40] sm:$0xff]
  %v3912 = vld [vmem:[%s3902 + $0x48] sm:$0xff]
  %v3913 = vld [vmem:[%s3902 + $0x50] sm:$0xff]
  %v3914 = vld [vmem:[%s3902 + $0x58] sm:$0xff]
  %v3915 = vld [vmem:[%s3902 + $0x60] sm:$0xff]
  %v3916 = vld [vmem:[%s3902 + $0x68] sm:$0xff]
  %v3917 = vld [vmem:[%s3902 + $0x70] sm:$0xff]
  %v3918 = vld [vmem:[%s3902 + $0x78] sm:$0xff]
  %3919 = vmatpush.msra.mxu0 %v3918
  %3920 = vmatpush.msra.mxu0 %v3917
  %3921 = vmatpush.msra.mxu0 %v3916
  %3922 = vmatpush.msra.mxu0 %v3915
  %3923 = vmatpush.msra.mxu0 %v3914
  %3924 = vmatpush.msra.mxu0 %v3913
  %3925 = vmatpush.msra.mxu0 %v3912
  %3926 = vmatpush.msra.mxu0 %v3911
  %3927 = vmatpush.msra.mxu0 %v3910
  %3928 = vmatpush.msra.mxu0 %v3909
  %3929 = vmatpush.msra.mxu0 %v3908
  %3930 = vmatpush.msra.mxu0 %v3907
  %3931 = vmatpush.msra.mxu0 %v3906
  %3932 = vmatpush.msra.mxu0 %v3905
  %3933 = vmatpush.msra.mxu0 %v3904
  %3934 = vmatpush.msra.mxu0 %v3903
  %3935 = vmatmul.f32.gmra.mxu0 %v3722
  %v3936 = vpop.f32.mrf.mxu0
  %v3937 = vadd.f32 0.0, %v3936
  %3938 = vmatmul.f32.gmra.mxu0 %v3723
  %v3939 = vpop.f32.mrf.mxu0
  %v3940 = vadd.f32 0.0, %v3939
  %3941 = vdwg.mxu0
  %3942 = vmatpush.msra.mxu0 %v3775
  %3943 = vmatpush.msra.mxu0 %v3774
  %3944 = vmatpush.msra.mxu0 %v3773
  %3945 = vmatpush.msra.mxu0 %v3772
  %3946 = vmatpush.msra.mxu0 %v3771
  %3947 = vmatpush.msra.mxu0 %v3770
  %3948 = vmatpush.msra.mxu0 %v3769
  %3949 = vmatpush.msra.mxu0 %v3768
  %3950 = vmatpush.msra.mxu0 %v3767
  %3951 = vmatpush.msra.mxu0 %v3766
  %3952 = vmatpush.msra.mxu0 %v3765
  %3953 = vmatpush.msra.mxu0 %v3764
  %3954 = vmatpush.msra.mxu0 %v3763
  %3955 = vmatpush.msra.mxu0 %v3762
  %3956 = vmatpush.msra.mxu0 %v3761
  %3957 = vmatpush.msra.mxu0 %v3760
  %3958 = vmatmul.f32.gmra.mxu0 %v2504
  %v3959 = vpop.f32.mrf.mxu0
  %v3960 = vadd.f32 %v3937, %v3959
  %3961 = vmatmul.f32.gmra.mxu0 %v2505
  %v3962 = vpop.f32.mrf.mxu0
  %v3963 = vadd.f32 %v3940, %v3962
  %3964 = vdwg.mxu0
  %s3965 = scalar_lea.vmem %s39, 768
  %v3966 = vld [vmem:[%s3965] sm:$0xff]
  %v3967 = vld [vmem:[%s3965 + $0x8] sm:$0xff]
  %v3968 = vld [vmem:[%s3965 + $0x10] sm:$0xff]
  %v3969 = vld [vmem:[%s3965 + $0x18] sm:$0xff]
  %v3970 = vld [vmem:[%s3965 + $0x20] sm:$0xff]
  %v3971 = vld [vmem:[%s3965 + $0x28] sm:$0xff]
  %v3972 = vld [vmem:[%s3965 + $0x30] sm:$0xff]
  %v3973 = vld [vmem:[%s3965 + $0x38] sm:$0xff]
  %v3974 = vld [vmem:[%s3965 + $0x40] sm:$0xff]
  %v3975 = vld [vmem:[%s3965 + $0x48] sm:$0xff]
  %v3976 = vld [vmem:[%s3965 + $0x50] sm:$0xff]
  %v3977 = vld [vmem:[%s3965 + $0x58] sm:$0xff]
  %v3978 = vld [vmem:[%s3965 + $0x60] sm:$0xff]
  %v3979 = vld [vmem:[%s3965 + $0x68] sm:$0xff]
  %v3980 = vld [vmem:[%s3965 + $0x70] sm:$0xff]
  %v3981 = vld [vmem:[%s3965 + $0x78] sm:$0xff]
  %3982 = vmatpush.msra.mxu0 %v3981
  %3983 = vmatpush.msra.mxu0 %v3980
  %3984 = vmatpush.msra.mxu0 %v3979
  %3985 = vmatpush.msra.mxu0 %v3978
  %3986 = vmatpush.msra.mxu0 %v3977
  %3987 = vmatpush.msra.mxu0 %v3976
  %3988 = vmatpush.msra.mxu0 %v3975
  %3989 = vmatpush.msra.mxu0 %v3974
  %3990 = vmatpush.msra.mxu0 %v3973
  %3991 = vmatpush.msra.mxu0 %v3972
  %3992 = vmatpush.msra.mxu0 %v3971
  %3993 = vmatpush.msra.mxu0 %v3970
  %3994 = vmatpush.msra.mxu0 %v3969
  %3995 = vmatpush.msra.mxu0 %v3968
  %3996 = vmatpush.msra.mxu0 %v3967
  %3997 = vmatpush.msra.mxu0 %v3966
  %3998 = vmatmul.f32.gmra.mxu0 %v3724
  %v3999 = vpop.f32.mrf.mxu0
  %v4000 = vadd.f32 0.0, %v3999
  %4001 = vmatmul.f32.gmra.mxu0 %v3725
  %v4002 = vpop.f32.mrf.mxu0
  %v4003 = vadd.f32 0.0, %v4002
  %4004 = vdwg.mxu0
  %v4005 = vadd.f32 %v3834, %v4000
  %v4006 = vadd.f32 %v3837, %v4003
  %s4007 = scalar_lea.vmem %s39, 896
  %v4008 = vld [vmem:[%s4007] sm:$0xff]
  %v4009 = vld [vmem:[%s4007 + $0x8] sm:$0xff]
  %v4010 = vld [vmem:[%s4007 + $0x10] sm:$0xff]
  %v4011 = vld [vmem:[%s4007 + $0x18] sm:$0xff]
  %v4012 = vld [vmem:[%s4007 + $0x20] sm:$0xff]
  %v4013 = vld [vmem:[%s4007 + $0x28] sm:$0xff]
  %v4014 = vld [vmem:[%s4007 + $0x30] sm:$0xff]
  %v4015 = vld [vmem:[%s4007 + $0x38] sm:$0xff]
  %v4016 = vld [vmem:[%s4007 + $0x40] sm:$0xff]
  %v4017 = vld [vmem:[%s4007 + $0x48] sm:$0xff]
  %v4018 = vld [vmem:[%s4007 + $0x50] sm:$0xff]
  %v4019 = vld [vmem:[%s4007 + $0x58] sm:$0xff]
  %v4020 = vld [vmem:[%s4007 + $0x60] sm:$0xff]
  %v4021 = vld [vmem:[%s4007 + $0x68] sm:$0xff]
  %v4022 = vld [vmem:[%s4007 + $0x70] sm:$0xff]
  %v4023 = vld [vmem:[%s4007 + $0x78] sm:$0xff]
  %4024 = vmatpush.msra.mxu0 %v4023
  %4025 = vmatpush.msra.mxu0 %v4022
  %4026 = vmatpush.msra.mxu0 %v4021
  %4027 = vmatpush.msra.mxu0 %v4020
  %4028 = vmatpush.msra.mxu0 %v4019
  %4029 = vmatpush.msra.mxu0 %v4018
  %4030 = vmatpush.msra.mxu0 %v4017
  %4031 = vmatpush.msra.mxu0 %v4016
  %4032 = vmatpush.msra.mxu0 %v4015
  %4033 = vmatpush.msra.mxu0 %v4014
  %4034 = vmatpush.msra.mxu0 %v4013
  %4035 = vmatpush.msra.mxu0 %v4012
  %4036 = vmatpush.msra.mxu0 %v4011
  %4037 = vmatpush.msra.mxu0 %v4010
  %4038 = vmatpush.msra.mxu0 %v4009
  %4039 = vmatpush.msra.mxu0 %v4008
  %4040 = vmatmul.f32.gmra.mxu0 %v3724
  %v4041 = vpop.f32.mrf.mxu0
  %v4042 = vadd.f32 0.0, %v4041
  %4043 = vmatmul.f32.gmra.mxu0 %v3725
  %v4044 = vpop.f32.mrf.mxu0
  %v4045 = vadd.f32 0.0, %v4044
  %4046 = vdwg.mxu0
  %v4047 = vadd.f32 %v3897, %v4042
  %v4048 = vadd.f32 %v3900, %v4045
  %s4049 = scalar_lea.vmem %s39, 1024
  %v4050 = vld [vmem:[%s4049] sm:$0xff]
  %v4051 = vld [vmem:[%s4049 + $0x8] sm:$0xff]
  %v4052 = vld [vmem:[%s4049 + $0x10] sm:$0xff]
  %v4053 = vld [vmem:[%s4049 + $0x18] sm:$0xff]
  %v4054 = vld [vmem:[%s4049 + $0x20] sm:$0xff]
  %v4055 = vld [vmem:[%s4049 + $0x28] sm:$0xff]
  %v4056 = vld [vmem:[%s4049 + $0x30] sm:$0xff]
  %v4057 = vld [vmem:[%s4049 + $0x38] sm:$0xff]
  %v4058 = vld [vmem:[%s4049 + $0x40] sm:$0xff]
  %v4059 = vld [vmem:[%s4049 + $0x48] sm:$0xff]
  %v4060 = vld [vmem:[%s4049 + $0x50] sm:$0xff]
  %v4061 = vld [vmem:[%s4049 + $0x58] sm:$0xff]
  %v4062 = vld [vmem:[%s4049 + $0x60] sm:$0xff]
  %v4063 = vld [vmem:[%s4049 + $0x68] sm:$0xff]
  %v4064 = vld [vmem:[%s4049 + $0x70] sm:$0xff]
  %v4065 = vld [vmem:[%s4049 + $0x78] sm:$0xff]
  %4066 = vmatpush.msra.mxu0 %v4065
  %4067 = vmatpush.msra.mxu0 %v4064
  %4068 = vmatpush.msra.mxu0 %v4063
  %4069 = vmatpush.msra.mxu0 %v4062
  %4070 = vmatpush.msra.mxu0 %v4061
  %4071 = vmatpush.msra.mxu0 %v4060
  %4072 = vmatpush.msra.mxu0 %v4059
  %4073 = vmatpush.msra.mxu0 %v4058
  %4074 = vmatpush.msra.mxu0 %v4057
  %4075 = vmatpush.msra.mxu0 %v4056
  %4076 = vmatpush.msra.mxu0 %v4055
  %4077 = vmatpush.msra.mxu0 %v4054
  %4078 = vmatpush.msra.mxu0 %v4053
  %4079 = vmatpush.msra.mxu0 %v4052
  %4080 = vmatpush.msra.mxu0 %v4051
  %4081 = vmatpush.msra.mxu0 %v4050
  %4082 = vmatmul.f32.gmra.mxu0 %v3724
  %v4083 = vpop.f32.mrf.mxu0
  %v4084 = vadd.f32 0.0, %v4083
  %4085 = vmatmul.f32.gmra.mxu0 %v3725
  %v4086 = vpop.f32.mrf.mxu0
  %v4087 = vadd.f32 0.0, %v4086
  %4088 = vdwg.mxu0
  %v4089 = vadd.f32 %v3960, %v4084
  %v4090 = vadd.f32 %v3963, %v4087
  %s4091 = scalar_lea.vmem %s39, 1152
  %v4092 = vld [vmem:[%s4091] sm:$0xff]
  %v4093 = vld [vmem:[%s4091 + $0x8] sm:$0xff]
  %v4094 = vld [vmem:[%s4091 + $0x10] sm:$0xff]
  %v4095 = vld [vmem:[%s4091 + $0x18] sm:$0xff]
  %v4096 = vld [vmem:[%s4091 + $0x20] sm:$0xff]
  %v4097 = vld [vmem:[%s4091 + $0x28] sm:$0xff]
  %v4098 = vld [vmem:[%s4091 + $0x30] sm:$0xff]
  %v4099 = vld [vmem:[%s4091 + $0x38] sm:$0xff]
  %v4100 = vld [vmem:[%s4091 + $0x40] sm:$0xff]
  %v4101 = vld [vmem:[%s4091 + $0x48] sm:$0xff]
  %v4102 = vld [vmem:[%s4091 + $0x50] sm:$0xff]
  %v4103 = vld [vmem:[%s4091 + $0x58] sm:$0xff]
  %v4104 = vld [vmem:[%s4091 + $0x60] sm:$0xff]
  %v4105 = vld [vmem:[%s4091 + $0x68] sm:$0xff]
  %v4106 = vld [vmem:[%s4091 + $0x70] sm:$0xff]
  %v4107 = vld [vmem:[%s4091 + $0x78] sm:$0xff]
  %4108 = vmatpush.msra.mxu0 %v4107
  %4109 = vmatpush.msra.mxu0 %v4106
  %4110 = vmatpush.msra.mxu0 %v4105
  %4111 = vmatpush.msra.mxu0 %v4104
  %4112 = vmatpush.msra.mxu0 %v4103
  %4113 = vmatpush.msra.mxu0 %v4102
  %4114 = vmatpush.msra.mxu0 %v4101
  %4115 = vmatpush.msra.mxu0 %v4100
  %4116 = vmatpush.msra.mxu0 %v4099
  %4117 = vmatpush.msra.mxu0 %v4098
  %4118 = vmatpush.msra.mxu0 %v4097
  %4119 = vmatpush.msra.mxu0 %v4096
  %4120 = vmatpush.msra.mxu0 %v4095
  %4121 = vmatpush.msra.mxu0 %v4094
  %4122 = vmatpush.msra.mxu0 %v4093
  %4123 = vmatpush.msra.mxu0 %v4092
  %4124 = vmatmul.f32.gmra.mxu0 %v2527
  %v4125 = vpop.f32.mrf.mxu0
  %v4126 = vadd.f32 0.0, %v4125
  %4127 = vmatmul.f32.gmra.mxu0 %v2539
  %v4128 = vpop.f32.mrf.mxu0
  %v4129 = vadd.f32 0.0, %v4128
  %4130 = vdwg.mxu0
  %v4131 = vadd.f32 %v4005, %v4126
  %v4132 = vadd.f32 %v4006, %v4129
  %s4133 = scalar_lea.vmem %s39, 1280
  %v4134 = vld [vmem:[%s4133] sm:$0xff]
  %v4135 = vld [vmem:[%s4133 + $0x8] sm:$0xff]
  %v4136 = vld [vmem:[%s4133 + $0x10] sm:$0xff]
  %v4137 = vld [vmem:[%s4133 + $0x18] sm:$0xff]
  %v4138 = vld [vmem:[%s4133 + $0x20] sm:$0xff]
  %v4139 = vld [vmem:[%s4133 + $0x28] sm:$0xff]
  %v4140 = vld [vmem:[%s4133 + $0x30] sm:$0xff]
  %v4141 = vld [vmem:[%s4133 + $0x38] sm:$0xff]
  %v4142 = vld [vmem:[%s4133 + $0x40] sm:$0xff]
  %v4143 = vld [vmem:[%s4133 + $0x48] sm:$0xff]
  %v4144 = vld [vmem:[%s4133 + $0x50] sm:$0xff]
  %v4145 = vld [vmem:[%s4133 + $0x58] sm:$0xff]
  %v4146 = vld [vmem:[%s4133 + $0x60] sm:$0xff]
  %v4147 = vld [vmem:[%s4133 + $0x68] sm:$0xff]
  %v4148 = vld [vmem:[%s4133 + $0x70] sm:$0xff]
  %v4149 = vld [vmem:[%s4133 + $0x78] sm:$0xff]
  %4150 = vmatpush.msra.mxu0 %v4149
  %4151 = vmatpush.msra.mxu0 %v4148
  %4152 = vmatpush.msra.mxu0 %v4147
  %4153 = vmatpush.msra.mxu0 %v4146
  %4154 = vmatpush.msra.mxu0 %v4145
  %4155 = vmatpush.msra.mxu0 %v4144
  %4156 = vmatpush.msra.mxu0 %v4143
  %4157 = vmatpush.msra.mxu0 %v4142
  %4158 = vmatpush.msra.mxu0 %v4141
  %4159 = vmatpush.msra.mxu0 %v4140
  %4160 = vmatpush.msra.mxu0 %v4139
  %4161 = vmatpush.msra.mxu0 %v4138
  %4162 = vmatpush.msra.mxu0 %v4137
  %4163 = vmatpush.msra.mxu0 %v4136
  %4164 = vmatpush.msra.mxu0 %v4135
  %4165 = vmatpush.msra.mxu0 %v4134
  %4166 = vmatmul.f32.gmra.mxu0 %v2527
  %v4167 = vpop.f32.mrf.mxu0
  %v4168 = vadd.f32 0.0, %v4167
  %4169 = vmatmul.f32.gmra.mxu0 %v2539
  %v4170 = vpop.f32.mrf.mxu0
  %v4171 = vadd.f32 0.0, %v4170
  %4172 = vdwg.mxu0
  %v4173 = vadd.f32 %v4047, %v4168
  %v4174 = vadd.f32 %v4048, %v4171
  %s4175 = scalar_lea.vmem %s39, 1408
  %v4176 = vld [vmem:[%s4175] sm:$0xff]
  %v4177 = vld [vmem:[%s4175 + $0x8] sm:$0xff]
  %v4178 = vld [vmem:[%s4175 + $0x10] sm:$0xff]
  %v4179 = vld [vmem:[%s4175 + $0x18] sm:$0xff]
  %v4180 = vld [vmem:[%s4175 + $0x20] sm:$0xff]
  %v4181 = vld [vmem:[%s4175 + $0x28] sm:$0xff]
  %v4182 = vld [vmem:[%s4175 + $0x30] sm:$0xff]
  %v4183 = vld [vmem:[%s4175 + $0x38] sm:$0xff]
  %v4184 = vld [vmem:[%s4175 + $0x40] sm:$0xff]
  %v4185 = vld [vmem:[%s4175 + $0x48] sm:$0xff]
  %v4186 = vld [vmem:[%s4175 + $0x50] sm:$0xff]
  %v4187 = vld [vmem:[%s4175 + $0x58] sm:$0xff]
  %v4188 = vld [vmem:[%s4175 + $0x60] sm:$0xff]
  %v4189 = vld [vmem:[%s4175 + $0x68] sm:$0xff]
  %v4190 = vld [vmem:[%s4175 + $0x70] sm:$0xff]
  %v4191 = vld [vmem:[%s4175 + $0x78] sm:$0xff]
  %4192 = vmatpush.msra.mxu0 %v4191
  %4193 = vmatpush.msra.mxu0 %v4190
  %4194 = vmatpush.msra.mxu0 %v4189
  %4195 = vmatpush.msra.mxu0 %v4188
  %4196 = vmatpush.msra.mxu0 %v4187
  %4197 = vmatpush.msra.mxu0 %v4186
  %4198 = vmatpush.msra.mxu0 %v4185
  %4199 = vmatpush.msra.mxu0 %v4184
  %4200 = vmatpush.msra.mxu0 %v4183
  %4201 = vmatpush.msra.mxu0 %v4182
  %4202 = vmatpush.msra.mxu0 %v4181
  %4203 = vmatpush.msra.mxu0 %v4180
  %4204 = vmatpush.msra.mxu0 %v4179
  %4205 = vmatpush.msra.mxu0 %v4178
  %4206 = vmatpush.msra.mxu0 %v4177
  %4207 = vmatpush.msra.mxu0 %v4176
  %4208 = vmatmul.f32.gmra.mxu0 %v2527
  %v4209 = vpop.f32.mrf.mxu0
  %v4210 = vadd.f32 0.0, %v4209
  %4211 = vmatmul.f32.gmra.mxu0 %v2539
  %v4212 = vpop.f32.mrf.mxu0
  %v4213 = vadd.f32 0.0, %v4212
  %4214 = vdwg.mxu0
  %v4215 = vadd.f32 %v4089, %v4210
  %v4216 = vadd.f32 %v4090, %v4213
  %v4217 = vld [vmem:[%s37] sm:$0xff]
  %v4218 = vld [vmem:[%s37 + $0x8] sm:$0xff]
  %v4219 = vld [vmem:[%s37 + $0x10] sm:$0xff]
  %v4220 = vld [vmem:[%s37 + $0x18] sm:$0xff]
  %4221 = vmatpush.msra.mxu0 0.0
  %4222 = vmatpush.msra.mxu0 0.0
  %4223 = vmatpush.msra.mxu0 0.0
  %4224 = vmatpush.msra.mxu0 0.0
  %4225 = vmatpush.msra.mxu0 0.0
  %4226 = vmatpush.msra.mxu0 0.0
  %4227 = vmatpush.msra.mxu0 0.0
  %4228 = vmatpush.msra.mxu0 0.0
  %4229 = vmatpush.msra.mxu0 0.0
  %4230 = vmatpush.msra.mxu0 0.0
  %4231 = vmatpush.msra.mxu0 0.0
  %4232 = vmatpush.msra.mxu0 0.0
  %4233 = vmatpush.msra.mxu0 %v4220
  %4234 = vmatpush.msra.mxu0 %v4219
  %4235 = vmatpush.msra.mxu0 %v4218
  %4236 = vmatpush.msra.mxu0 %v4217
  %4237 = vmatmul.f32.gmra.mxu0 %v2317
  %v4238 = vpop.f32.mrf.mxu0
  %v4239 = vadd.f32 %v4131, %v4238
  %4240 = vmatmul.f32.gmra.mxu0 %v2320
  %v4241 = vpop.f32.mrf.mxu0
  %v4242 = vadd.f32 %v4132, %v4241
  %4243 = vdwg.mxu0
  %v4244 = vmul.f32 %v2230, %v4173
  %v4245 = vmul.f32 %v2235, %v4174
  %v4246 = vadd.f32 %v4239, %v4244
  %v4247 = vadd.f32 %v4242, %v4245
  %v4248 = vmul.f32 %v2244, %v4215
  %v4249 = vmul.f32 %v2249, %v4216
  %v4250 = vadd.f32 %v4246, %v4248
  %v4251 = vadd.f32 %v4247, %v4249
  %v4252 = vld [vmem:[%s41] sm:$0x1]
  %v4254 = vperm.slane %v4252, 0
  %v4256 = vadd.f32 %v4250, %v4254
  %v4257 = vadd.f32 %v4251, %v4254
  %v4258 = vld [vmem:[%s43] sm:$0xff]
  %v4259 = vld [vmem:[%s43 + $0x8] sm:$0xff]
  %v4260 = vld [vmem:[%s43 + $0x10] sm:$0xff]
  %v4261 = vld [vmem:[%s43 + $0x18] sm:$0xff]
  %v4262 = vld [vmem:[%s45] sm:$0x1]
  %v4264 = vperm.slane %v4262, 0
  %v4267 = vsel %vm443, %v4256, 0
  %v4270 = vsel %vm443, %v4257, 0
  %4272 = vmatpush.msra.mxu0 0.0
  %4273 = vmatpush.msra.mxu0 0.0
  %4274 = vmatpush.msra.mxu0 0.0
  %4275 = vmatpush.msra.mxu0 0.0
  %4276 = vmatpush.msra.mxu0 0.0
  %4277 = vmatpush.msra.mxu0 0.0
  %4278 = vmatpush.msra.mxu0 0.0
  %4279 = vmatpush.msra.mxu0 0.0
  %4280 = vmatpush.msra.mxu0 0.0
  %4281 = vmatpush.msra.mxu0 0.0
  %4282 = vmatpush.msra.mxu0 0.0
  %4283 = vmatpush.msra.mxu0 0.0
  %4284 = vmatpush.msra.mxu0 %v4261
  %4285 = vmatpush.msra.mxu0 %v4260
  %4286 = vmatpush.msra.mxu0 %v4259
  %4287 = vmatpush.msra.mxu0 %v4258
  %4288 = vmatmul.f32.gmra.mxu0 %v4267
  %v4289 = vpop.f32.mrf.mxu0
  %v4290 = vadd.f32 %v4264, %v4289
  %4291 = vmatmul.f32.gmra.mxu0 %v4270
  %v4292 = vpop.f32.mrf.mxu0
  %v4293 = vadd.f32 %v4264, %v4292
  %4294 = vdwg.mxu0
  %v4295 = vld [vmem:[%s47] sm:$0x1]
  %v4297 = vperm.slane %v4295, 0
  %v4299 = vmul.f32 %v4290, %v4297
  %v4300 = vmul.f32 %v4293, %v4297
  %v4301 = vld [vmem:[%s49] sm:$0x1]
  %v4303 = vperm.slane %v4301, 0
  %v4305 = vadd.f32 %v4299, %v4303
  %v4306 = vadd.f32 %v4300, %v4303
  %v4307 = vmax.f32 %v4305, 0.0
  %v4308 = vmax.f32 %v4306, 0.0
  %v4309 = vld [vmem:[%s51] sm:$0xff]
  %v4310 = vld [vmem:[%s51 + $0x8] sm:$0xff]
  %v4311 = vld [vmem:[%s51 + $0x10] sm:$0xff]
  %v4312 = vld [vmem:[%s51 + $0x18] sm:$0xff]
  %v4313 = vld [vmem:[%s53] sm:$0x1]
  %v4315 = vperm.slane %v4313, 0
  %v4318 = vsel %vm443, %v4307, 0
  %v4321 = vsel %vm443, %v4308, 0
  %4323 = vmatpush.msra.mxu0 0.0
  %4324 = vmatpush.msra.mxu0 0.0
  %4325 = vmatpush.msra.mxu0 0.0
  %4326 = vmatpush.msra.mxu0 0.0
  %4327 = vmatpush.msra.mxu0 0.0
  %4328 = vmatpush.msra.mxu0 0.0
  %4329 = vmatpush.msra.mxu0 0.0
  %4330 = vmatpush.msra.mxu0 0.0
  %4331 = vmatpush.msra.mxu0 0.0
  %4332 = vmatpush.msra.mxu0 0.0
  %4333 = vmatpush.msra.mxu0 0.0
  %4334 = vmatpush.msra.mxu0 0.0
  %4335 = vmatpush.msra.mxu0 %v4312
  %4336 = vmatpush.msra.mxu0 %v4311
  %4337 = vmatpush.msra.mxu0 %v4310
  %4338 = vmatpush.msra.mxu0 %v4309
  %4339 = vmatmul.f32.gmra.mxu0 %v4318
  %v4340 = vpop.f32.mrf.mxu0
  %v4341 = vadd.f32 %v4315, %v4340
  %4342 = vmatmul.f32.gmra.mxu0 %v4321
  %v4343 = vpop.f32.mrf.mxu0
  %v4344 = vadd.f32 %v4315, %v4343
  %4345 = vdwg.mxu0
  %v4346 = vmax.f32 %v4341, 0.0
  %v4347 = vmax.f32 %v4344, 0.0
  %v4348 = vld [vmem:[%s55] sm:$0xff]
  %v4349 = vld [vmem:[%s55 + $0x8] sm:$0xff]
  %v4350 = vld [vmem:[%s55 + $0x10] sm:$0x1f]
  %v4351 = vld [vmem:[%s57] sm:$0x1]
  %v4353 = vperm.slane %v4351, 0
  %vm4355 = vcmask 171008
  %v4357 = vsel %vm4355, %v4346, 0
  %v4360 = vsel %vm4355, %v4347, 0
  %vm4362 = vcmask 1044480
  %v4364 = vsel %vm4362, %v4350, 0
  %4366 = vmatpush.msra.mxu0 0.0
  %4367 = vmatpush.msra.mxu0 0.0
  %4368 = vmatpush.msra.mxu0 0.0
  %4369 = vmatpush.msra.mxu0 0.0
  %4370 = vmatpush.msra.mxu0 0.0
  %4371 = vmatpush.msra.mxu0 0.0
  %4372 = vmatpush.msra.mxu0 0.0
  %4373 = vmatpush.msra.mxu0 0.0
  %4374 = vmatpush.msra.mxu0 0.0
  %4375 = vmatpush.msra.mxu0 0.0
  %4376 = vmatpush.msra.mxu0 0.0
  %4377 = vmatpush.msra.mxu0 0.0
  %4378 = vmatpush.msra.mxu0 0.0
  %4379 = vmatpush.msra.mxu0 %v4364
  %4380 = vmatpush.msra.mxu0 %v4349
  %4381 = vmatpush.msra.mxu0 %v4348
  %4382 = vmatmul.f32.gmra.mxu0 %v4357
  %v4383 = vpop.f32.mrf.mxu0
  %v4384 = vadd.f32 %v4353, %v4383
  %4385 = vmatmul.f32.gmra.mxu0 %v4360
  %v4386 = vpop.f32.mrf.mxu0
  %v4387 = vadd.f32 %v4353, %v4386
  %4388 = vdwg.mxu0
  %v4389 = vmax.f32 %v4384, 0.0
  %v4390 = vmax.f32 %v4387, 0.0
  %v4391 = vld [vmem:[%s59] sm:$0xff]
  %v4392 = vld [vmem:[%s59 + $0x8] sm:$0x3]
  %v4393 = vld [vmem:[%s61] sm:$0x1]
  %v4395 = vperm.slane %v4393, 0
  %vm4397 = vcmask 80896
  %v4399 = vsel %vm4397, %v4389, 0
  %v4402 = vsel %vm4397, %v4390, 0
  %vm4404 = vcmask 1041408
  %v4406 = vsel %vm4404, %v4392, 0
  %4408 = vmatpush.msra.mxu0 0.0
  %4409 = vmatpush.msra.mxu0 0.0
  %4410 = vmatpush.msra.mxu0 0.0
  %4411 = vmatpush.msra.mxu0 0.0
  %4412 = vmatpush.msra.mxu0 0.0
  %4413 = vmatpush.msra.mxu0 0.0
  %4414 = vmatpush.msra.mxu0 0.0
  %4415 = vmatpush.msra.mxu0 0.0
  %4416 = vmatpush.msra.mxu0 0.0
  %4417 = vmatpush.msra.mxu0 0.0
  %4418 = vmatpush.msra.mxu0 0.0
  %4419 = vmatpush.msra.mxu0 0.0
  %4420 = vmatpush.msra.mxu0 0.0
  %4421 = vmatpush.msra.mxu0 0.0
  %4422 = vmatpush.msra.mxu0 %v4406
  %4423 = vmatpush.msra.mxu0 %v4391
  %4424 = vmatmul.f32.gmra.mxu0 %v4399
  %v4425 = vpop.f32.mrf.mxu0
  %v4426 = vadd.f32 %v4395, %v4425
  %4427 = vmatmul.f32.gmra.mxu0 %v4402
  %v4428 = vpop.f32.mrf.mxu0
  %v4429 = vadd.f32 %v4395, %v4428
  %4430 = vdwg.mxu0
  %vm4431 = vcmask 31744
  %v4432 = vsel %vm4431, %v4426, -inf
  %4433 = vmax.xlane.f32.xlu0 %v4432
  %v4434 = vpop.xlane.xlu0 %4433
  %v4435 = vsel %vm4431, %v4429, -inf
  %4436 = vmax.xlane.f32.xlu0 %v4435
  %v4437 = vpop.xlane.xlu0 %4436
  %v4438 = vsub.f32 %v4426, %v4434
  %v4439 = vsub.f32 %v4429, %v4437
  %v4440 = vmul.f32 %v4438, 1.442695
  %v4441 = vpow.pop %v4440
  %v4442 = vmul.f32 %v4439, 1.442695
  %v4443 = vpow.pop %v4442
  %v4444 = vsel %vm4431, %v4441, 0.0
  %4445 = vadd.xlane.f32.xlu0 %v4444
  %v4446 = vpop.xlane.xlu0 %4445
  %v4447 = vsel %vm4431, %v4443, 0.0
  %4448 = vadd.xlane.f32.xlu0 %v4447
  %v4449 = vpop.xlane.xlu0 %4448
  %v4450 = vlog2.pop %v4446
  %v4451 = vmul.f32 %v4450, 0.6931472
  %v4452 = vlog2.pop %v4449
  %v4453 = vmul.f32 %v4452, 0.6931472
  %v4454 = vadd.f32 %v4451, %v4434
  %v4455 = vadd.f32 %v4453, %v4437
  %v4456 = vsub.f32 %v4426, %v4454
  %v4457 = vsub.f32 %v4429, %v4455
  %4458 = vst.msk [vmem:[%s63] sm:$0xff] %vm4431, %v4456
  %4459 = vst.msk [vmem:[%s63 + $0x8] sm:$0xff] %vm4431, %v4457
  // Predicated region
  $region126: #{tpu_custom_call.1} parent=0 // pred_check
    _
  $region127: #{tpu_custom_call.1} parent=0 // pred_check_branch
    %4461 = sbr.rel (0) target = $region129
  $region128: #{tpu_custom_call.1} parent=0 // pred_region
    _
  $region129: #{tpu_custom_call.1} parent=0 // pred_fallthru
    _
  // Predicated region
  $region130: #{tpu_custom_call.1} parent=0 // pred_check
    _
  $region131: #{tpu_custom_call.1} parent=0 // pred_check_branch
    %4463 = sbr.rel (0) target = $region133
  $region132: #{tpu_custom_call.1} parent=0 // pred_region
    _
  $region133: #{tpu_custom_call.1} parent=0 // pred_fallthru
    _

</llo_original>
